<compile_context>
chip_gen: v6e
topology: v6e:2x2x1
jax: 0.10.0
libtpu: 0.0.40
codegen_flags: <defaults>
</compile_context>

<pallas_src>
import jax
import jax.numpy as jnp
from jax.experimental import pallas as pl
from jax.experimental.pallas import tpu as pltpu

_EPS = 1e-5
_SLOPE = 0.1  # nn.LeakyReLU(0.1) in the reference module


def _leaky(v):
    return jnp.where(v >= 0, v, _SLOPE * v)


def _instance_norm(v):
    # Two-pass per-row normalization over the feature axis (biased var, eps=1e-5),
    # matching nn.InstanceNorm1d(affine=False) on a [B, 1, C] input.
    m = jnp.mean(v, axis=-1, keepdims=True)
    c = v - m
    var = jnp.mean(c * c, axis=-1, keepdims=True)
    return c * jax.lax.rsqrt(var + _EPS)


def solarnet_kernel(
    x_ref,
    attn_w, attn_b,
    w7, w6, b64,
    s1_wdlrd,
    w1, b1,
    fc2_w, fc2_b,
    s2_w, s2_b,
    fc3_w, fc3_b,
    fc4_w, fc4_b,
    out_ref,
):
    f32 = jnp.float32
    bf16 = jnp.bfloat16

    def mm(v_bf16, w_ref):
        # bf16 MXU operands, f32 accumulation.
        return jnp.dot(v_bf16, w_ref[...], preferred_element_type=f32)

    x = x_ref[...]                                                    # [TB, F] f32

    # attention gate
    gate = jax.nn.sigmoid(mm(x.astype(bf16), attn_w) + attn_b[...])
    xg = x * gate                                                     # [TB, F] f32

    # daylight | radiation first layers (K=1) as rank-1 VPU updates, built
    # directly as one [TB, 64] block (cols 0:32 = daylight, 32:64 = radiation).
    dlrd = _leaky(xg[:, 7:8] * w7[...] + xg[:, 6:7] * w6[...] + b64[...])

    # fused fc1 | skip1-x dot (one [F, 768] weight), sliced at lane 512.
    big = mm(xg.astype(bf16), w1) + b1[...]                           # [TB, 768]
    h = big[:, :512]                                                  # fc1 out
    # skip1 with dl2/rad2 folded in: one [64, 256] dot on the dl|rd block.
    identity1 = big[:, 512:] + mm(dlrd.astype(bf16), s1_wdlrd)        # [TB, 256]

    # main trunk (dropout skipped: eval path)
    h = _leaky(_instance_norm(h))
    h = mm(h.astype(bf16), fc2_w) + fc2_b[...] + identity1            # [TB, 256]
    identity2 = mm(h.astype(bf16), s2_w) + s2_b[...]                  # [TB, 128]
    h = _leaky(_instance_norm(h))
    h = mm(h.astype(bf16), fc3_w) + fc3_b[...] + identity2            # [TB, 128]
    h = _leaky(_instance_norm(h))

    # fc4 (128 -> 1) as an in-kernel lane reduction: 4 B/row output.
    out_ref[...] = jnp.sum(h * fc4_w[...], axis=-1, keepdims=True) + fc4_b[...]


def _round_up(a, m):
    return ((a + m - 1) // m) * m


def _choose_tile(B, tb_req):
    # Multiple of 8 sublanes; capped at 4096 (v7x: 64 MiB VMEM, 48 MiB scoped).
    tb = max(8, min(_round_up(tb_req, 8), 4096))
    tb = min(tb, _round_up(B, 8))
    # Prefer >= 2 grid steps so the "parallel" batch axis can use both
    # TensorCores on v7x (no-op on v5e/v6e).
    if B > 8 and _round_up(B, tb) // tb < 2:
        tb = max(8, _round_up((B + 1) // 2, 8))
    return tb


def solarnet_forward(x, params, *, tb=2048):
    """Eval-mode SolarNet forward. x: [B, input_size] f32. Returns [B, 1] f32."""
    B, F = x.shape
    assert F >= 8, "columns 6 and 7 are sliced; input_size must be >= 8"
    f32, bf16 = jnp.float32, jnp.bfloat16

    tb = _choose_tile(B, tb)
    Bp = _round_up(B, tb)
    if Bp != B:
        x = jnp.pad(x, ((0, Bp - B), (0, 0)))   # zero rows are numerically safe
    n_steps = Bp // tb

    attn_w, attn_b = params["attn"]
    dl1_w, dl1_b = params["dl1"]
    dl2_w, dl2_b = params["dl2"]
    rad1_w, rad1_b = params["rad1"]
    rad2_w, rad2_b = params["rad2"]
    s1_w, s1_b = params["skip1"]
    s2_w, s2_b = params["skip2"]
    fc1_w, fc1_b = params["fc1"]
    fc2_w, fc2_b = params["fc2"]
    fc3_w, fc3_b = params["fc3"]
    fc4_w, fc4_b = params["fc4"]

    # Split skip1 rows (x | daylight | radiation); fold dl2/rad2 into skip1
    # (no nonlinearity between their dots and skip1's consumption of them).
    s1_wx = s1_w[:F]                                       # [F, 256]
    s1_wdl = s1_w[F:F + 32]                                # [32, 256]
    s1_wrd = s1_w[F + 32:F + 64]                           # [32, 256]
    s1_wdl_f = dl2_w @ s1_wdl                              # [32, 256] (f32 fold)
    s1_wrd_f = rad2_w @ s1_wrd                             # [32, 256]
    s1_b_f = s1_b + dl2_b @ s1_wdl + rad2_b @ s1_wrd       # [1, 256]
    s1_wdlrd = jnp.concatenate([s1_wdl_f, s1_wrd_f], axis=0)   # [64, 256]

    # Fuse same-LHS dots along N: fc1 | skip1-x share the gated-x LHS.
    w1 = jnp.concatenate([fc1_w, s1_wx], axis=1)           # [F, 768]
    b1 = jnp.concatenate([fc1_b, s1_b_f], axis=1)          # [1, 768]

    # Rank-1 daylight/radiation first layers laid out as one [1, 64] row each
    # (no in-kernel concat): cols 0:32 daylight, 32:64 radiation.
    zeros32 = jnp.zeros((1, 32), f32)
    w7 = jnp.concatenate([dl1_w, zeros32], axis=1)         # [1, 64]
    w6 = jnp.concatenate([zeros32, rad1_w], axis=1)        # [1, 64]
    b64 = jnp.concatenate([dl1_b, rad1_b], axis=1)         # [1, 64]

    fc4_w_row = fc4_w.T                                    # [1, 128]
    # fc4_b is already [1, 1]

    weight_args = (
        attn_w.astype(bf16), attn_b,
        w7, w6, b64,                                       # rank-1 VPU path, f32
        s1_wdlrd.astype(bf16),
        w1.astype(bf16), b1,
        fc2_w.astype(bf16), fc2_b,
        s2_w.astype(bf16), s2_b,
        fc3_w.astype(bf16), fc3_b,
        fc4_w_row, fc4_b,
    )

    def const_spec(a):
        # Whole-array block, same block every step => weights stay VMEM-resident.
        return pl.BlockSpec(a.shape, lambda i: (0,) * a.ndim)

    out = pl.pallas_call(
        solarnet_kernel,
        out_shape=jax.ShapeDtypeStruct((Bp, 1), f32),
        grid=(n_steps,),
        in_specs=[pl.BlockSpec((tb, F), lambda i: (i, 0))]
                 + [const_spec(a) for a in weight_args],
        out_specs=pl.BlockSpec((tb, 1), lambda i: (i, 0)),
        compiler_params=pltpu.CompilerParams(
            dimension_semantics=("parallel",),
            # Explicit scoped-VMEM ceiling: comfortable for tb<=4096 here,
            # and leaves headroom under v7x's 64 MiB physical VMEM.
            vmem_limit_bytes=48 * 1024 * 1024,
        ),
    )(x, *weight_args)

    return out[:B]


def init_params(key, input_size):
    """Deterministic synthetic parameters. Linear(in, out) stored as
    (weight_T: [in, out], bias: [1, out]), all float32."""
    def lin(k, fan_in, fan_out):
        kw, kb = jax.random.split(k)
        scale = 1.0 / jnp.sqrt(jnp.float32(fan_in))
        w = jax.random.uniform(kw, (fan_in, fan_out), jnp.float32, -scale, scale)
        b = jax.random.uniform(kb, (1, fan_out), jnp.float32, -scale, scale)
        return w, b

    keys = jax.random.split(key, 11)
    p = {}
    p["attn"] = lin(keys[0], input_size, input_size)
    p["dl1"] = lin(keys[1], 1, 32)
    p["dl2"] = lin(keys[2], 32, 32)
    p["rad1"] = lin(keys[3], 1, 32)
    p["rad2"] = lin(keys[4], 32, 32)
    p["skip1"] = lin(keys[5], input_size + 64, 256)
    p["skip2"] = lin(keys[6], 256, 128)
    p["fc1"] = lin(keys[7], input_size, 512)
    p["fc2"] = lin(keys[8], 512, 256)
    p["fc3"] = lin(keys[9], 256, 128)
    p["fc4"] = lin(keys[10], 128, 1)
    return p


def reference_forward(x, params):
    """Pure-JAX f32 reference mirroring the PyTorch forward (eval mode)."""
    def lin(v, p):
        return v @ p[0] + p[1]

    def inorm(v):
        m = jnp.mean(v, axis=-1, keepdims=True)
        var = jnp.mean((v - m) ** 2, axis=-1, keepdims=True)
        return (v - m) / jnp.sqrt(var + _EPS)

    att = jax.nn.sigmoid(lin(x, params["attn"]))
    x = x * att
    dl = lin(_leaky(lin(x[:, 7:8], params["dl1"])), params["dl2"])
    rd = lin(_leaky(lin(x[:, 6:7], params["rad1"])), params["rad2"])
    identity1 = lin(jnp.concatenate([x, dl, rd], axis=1), params["skip1"])
    h = _leaky(inorm(lin(x, params["fc1"])))
    h = lin(h, params["fc2"]) + identity1
    identity2 = lin(h, params["skip2"])
    h = _leaky(inorm(h))
    h = lin(h, params["fc3"]) + identity2
    h = _leaky(inorm(h))
    return lin(h, params["fc4"])


if __name__ == "__main__":
    INPUT_SIZE = 16   # must be >= 8 (columns 6 and 7 are sliced)
    BATCH = 256       # small demo batch; tile selection yields 2 grid steps

    key = jax.random.PRNGKey(0)
    kx, kp = jax.random.split(key)
    x = jax.random.normal(kx, (BATCH, INPUT_SIZE), jnp.float32)
    params = init_params(kp, INPUT_SIZE)

    out = solarnet_forward(x, params)
    jax.block_until_ready(out)

    assert out.shape == (BATCH, 1) and out.dtype == jnp.float32
    assert bool(jnp.all(jnp.isfinite(out)))

    # Loose correctness check vs the f32 reference (kernel uses bf16 matmuls).
    ref = reference_forward(x, params)
    max_err = float(jnp.max(jnp.abs(out - ref)))
    assert max_err < 0.2, f"max abs error vs reference too large: {max_err}"

    print("KERNEL_OK")
</pallas_src>

<mosaic_0001>
module attributes {stable_mosaic.version = 11 : i64} {
  func.func @solarnet_kernel(%arg0: i32, %arg1: memref<128x16xf32, #tpu.memory_space<vmem>>, %arg2: memref<16x16xbf16, #tpu.memory_space<vmem>>, %arg3: memref<1x16xf32, #tpu.memory_space<vmem>>, %arg4: memref<1x64xf32, #tpu.memory_space<vmem>>, %arg5: memref<1x64xf32, #tpu.memory_space<vmem>>, %arg6: memref<1x64xf32, #tpu.memory_space<vmem>>, %arg7: memref<64x256xbf16, #tpu.memory_space<vmem>>, %arg8: memref<16x768xbf16, #tpu.memory_space<vmem>>, %arg9: memref<1x768xf32, #tpu.memory_space<vmem>>, %arg10: memref<512x256xbf16, #tpu.memory_space<vmem>>, %arg11: memref<1x256xf32, #tpu.memory_space<vmem>>, %arg12: memref<256x128xbf16, #tpu.memory_space<vmem>>, %arg13: memref<1x128xf32, #tpu.memory_space<vmem>>, %arg14: memref<256x128xbf16, #tpu.memory_space<vmem>>, %arg15: memref<1x128xf32, #tpu.memory_space<vmem>>, %arg16: memref<1x128xf32, #tpu.memory_space<vmem>>, %arg17: memref<1x1xf32, #tpu.memory_space<vmem>>, %arg18: memref<128x1xf32, #tpu.memory_space<vmem>>) attributes {dimension_semantics = [#tpu.dimension_semantics<parallel>], iteration_bounds = array<i64: 2>, scalar_prefetch = 0 : i64, scratch_operands = 0 : i64, tpu.core_type = #tpu.core_type<tc>, window_params = [{transform_indices = @transform_0, window_bounds = array<i64: 128, 16>}, {pipeline_mode = #tpu.pipeline_mode<synchronous>, transform_indices = @transform_1, window_bounds = array<i64: 16, 16>}, {pipeline_mode = #tpu.pipeline_mode<synchronous>, transform_indices = @transform_2, window_bounds = array<i64: 1, 16>}, {pipeline_mode = #tpu.pipeline_mode<synchronous>, transform_indices = @transform_3, window_bounds = array<i64: 1, 64>}, {pipeline_mode = #tpu.pipeline_mode<synchronous>, transform_indices = @transform_4, window_bounds = array<i64: 1, 64>}, {pipeline_mode = #tpu.pipeline_mode<synchronous>, transform_indices = @transform_5, window_bounds = array<i64: 1, 64>}, {pipeline_mode = #tpu.pipeline_mode<synchronous>, transform_indices = @transform_6, window_bounds = array<i64: 64, 256>}, {pipeline_mode = #tpu.pipeline_mode<synchronous>, transform_indices = @transform_7, window_bounds = array<i64: 16, 768>}, {pipeline_mode = #tpu.pipeline_mode<synchronous>, transform_indices = @transform_8, window_bounds = array<i64: 1, 768>}, {pipeline_mode = #tpu.pipeline_mode<synchronous>, transform_indices = @transform_9, window_bounds = array<i64: 512, 256>}, {pipeline_mode = #tpu.pipeline_mode<synchronous>, transform_indices = @transform_10, window_bounds = array<i64: 1, 256>}, {pipeline_mode = #tpu.pipeline_mode<synchronous>, transform_indices = @transform_11, window_bounds = array<i64: 256, 128>}, {pipeline_mode = #tpu.pipeline_mode<synchronous>, transform_indices = @transform_12, window_bounds = array<i64: 1, 128>}, {pipeline_mode = #tpu.pipeline_mode<synchronous>, transform_indices = @transform_13, window_bounds = array<i64: 256, 128>}, {pipeline_mode = #tpu.pipeline_mode<synchronous>, transform_indices = @transform_14, window_bounds = array<i64: 1, 128>}, {pipeline_mode = #tpu.pipeline_mode<synchronous>, transform_indices = @transform_15, window_bounds = array<i64: 1, 128>}, {pipeline_mode = #tpu.pipeline_mode<synchronous>, transform_indices = @transform_16, window_bounds = array<i64: 1, 1>}, {transform_indices = @transform_17, window_bounds = array<i64: 128, 1>}]} {
    %c0 = arith.constant 0 : index
    %c0_0 = arith.constant 0 : index
    %0 = vector.load %arg1[%c0, %c0_0] : memref<128x16xf32, #tpu.memory_space<vmem>>, vector<128x16xf32>
    %1 = arith.truncf %0 : vector<128x16xf32> to vector<128x16xbf16>
    %c0_1 = arith.constant 0 : index
    %c0_2 = arith.constant 0 : index
    %2 = vector.load %arg2[%c0_1, %c0_2] : memref<16x16xbf16, #tpu.memory_space<vmem>>, vector<16x16xbf16>
    %cst = arith.constant dense<0.000000e+00> : vector<128x16xf32>
    %3 = tpu.matmul %1, %2, %cst {dimension_numbers = #tpu.dot_dimension_numbers<[1], [0], [0], [1], [0, 0, 1, 1], [], []>} : vector<128x16xbf16>, vector<16x16xbf16>, vector<128x16xf32> -> vector<128x16xf32>
    %c0_3 = arith.constant 0 : index
    %c0_4 = arith.constant 0 : index
    %4 = vector.load %arg3[%c0_3, %c0_4] : memref<1x16xf32, #tpu.memory_space<vmem>>, vector<1x16xf32>
    %5 = vector.broadcast %4 : vector<1x16xf32> to vector<128x16xf32>
    %6 = arith.addf %3, %5 : vector<128x16xf32>
    %7 = arith.negf %6 : vector<128x16xf32>
    %8 = math.exp %7 : vector<128x16xf32>
    %cst_5 = arith.constant 1.000000e+00 : f32
    %9 = vector.broadcast %cst_5 : f32 to vector<128x16xf32>
    %10 = arith.addf %9, %8 : vector<128x16xf32>
    %11 = arith.divf %9, %10 : vector<128x16xf32>
    %12 = arith.mulf %0, %11 : vector<128x16xf32>
    %13 = vector.extract_strided_slice %12 {offsets = [0, 7], sizes = [128, 1], strides = [1, 1]} : vector<128x16xf32> to vector<128x1xf32>
    %c0_6 = arith.constant 0 : index
    %c0_7 = arith.constant 0 : index
    %14 = vector.load %arg4[%c0_6, %c0_7] : memref<1x64xf32, #tpu.memory_space<vmem>>, vector<1x64xf32>
    %15 = vector.broadcast %13 : vector<128x1xf32> to vector<128x64xf32>
    %16 = vector.broadcast %14 : vector<1x64xf32> to vector<128x64xf32>
    %17 = arith.mulf %15, %16 : vector<128x64xf32>
    %18 = vector.extract_strided_slice %12 {offsets = [0, 6], sizes = [128, 1], strides = [1, 1]} : vector<128x16xf32> to vector<128x1xf32>
    %c0_8 = arith.constant 0 : index
    %c0_9 = arith.constant 0 : index
    %19 = vector.load %arg5[%c0_8, %c0_9] : memref<1x64xf32, #tpu.memory_space<vmem>>, vector<1x64xf32>
    %20 = vector.broadcast %18 : vector<128x1xf32> to vector<128x64xf32>
    %21 = vector.broadcast %19 : vector<1x64xf32> to vector<128x64xf32>
    %22 = arith.mulf %20, %21 : vector<128x64xf32>
    %23 = arith.addf %17, %22 : vector<128x64xf32>
    %c0_10 = arith.constant 0 : index
    %c0_11 = arith.constant 0 : index
    %24 = vector.load %arg6[%c0_10, %c0_11] : memref<1x64xf32, #tpu.memory_space<vmem>>, vector<1x64xf32>
    %25 = vector.broadcast %24 : vector<1x64xf32> to vector<128x64xf32>
    %26 = arith.addf %23, %25 : vector<128x64xf32>
    %cst_12 = arith.constant 0.000000e+00 : f32
    %27 = vector.broadcast %cst_12 : f32 to vector<128x64xf32>
    %28 = arith.cmpf oge, %26, %27 : vector<128x64xf32>
    %cst_13 = arith.constant 1.000000e-01 : f32
    %29 = vector.broadcast %cst_13 : f32 to vector<128x64xf32>
    %30 = arith.mulf %29, %26 : vector<128x64xf32>
    %31 = arith.select %28, %26, %30 : vector<128x64xi1>, vector<128x64xf32>
    %32 = arith.truncf %12 : vector<128x16xf32> to vector<128x16xbf16>
    %c0_14 = arith.constant 0 : index
    %c0_15 = arith.constant 0 : index
    %33 = vector.load %arg8[%c0_14, %c0_15] : memref<16x768xbf16, #tpu.memory_space<vmem>>, vector<16x768xbf16>
    %cst_16 = arith.constant dense<0.000000e+00> : vector<128x768xf32>
    %34 = tpu.matmul %32, %33, %cst_16 {dimension_numbers = #tpu.dot_dimension_numbers<[1], [0], [0], [1], [0, 0, 1, 1], [], []>} : vector<128x16xbf16>, vector<16x768xbf16>, vector<128x768xf32> -> vector<128x768xf32>
    %c0_17 = arith.constant 0 : index
    %c0_18 = arith.constant 0 : index
    %35 = vector.load %arg9[%c0_17, %c0_18] : memref<1x768xf32, #tpu.memory_space<vmem>>, vector<1x768xf32>
    %36 = vector.broadcast %35 : vector<1x768xf32> to vector<128x768xf32>
    %37 = arith.addf %34, %36 : vector<128x768xf32>
    %38 = vector.extract_strided_slice %37 {offsets = [0, 0], sizes = [128, 512], strides = [1, 1]} : vector<128x768xf32> to vector<128x512xf32>
    %39 = vector.extract_strided_slice %37 {offsets = [0, 512], sizes = [128, 256], strides = [1, 1]} : vector<128x768xf32> to vector<128x256xf32>
    %40 = arith.truncf %31 : vector<128x64xf32> to vector<128x64xbf16>
    %c0_19 = arith.constant 0 : index
    %c0_20 = arith.constant 0 : index
    %41 = vector.load %arg7[%c0_19, %c0_20] : memref<64x256xbf16, #tpu.memory_space<vmem>>, vector<64x256xbf16>
    %cst_21 = arith.constant dense<0.000000e+00> : vector<128x256xf32>
    %42 = tpu.matmul %40, %41, %cst_21 {dimension_numbers = #tpu.dot_dimension_numbers<[1], [0], [0], [1], [0, 0, 1, 1], [], []>} : vector<128x64xbf16>, vector<64x256xbf16>, vector<128x256xf32> -> vector<128x256xf32>
    %43 = arith.addf %39, %42 : vector<128x256xf32>
    %cst_22 = arith.constant dense<0.000000e+00> : vector<128xf32>
    %44 = vector.multi_reduction <add>, %38, %cst_22 [1] : vector<128x512xf32> to vector<128xf32>
    %45 = vector.shape_cast %44 : vector<128xf32> to vector<128x1xf32>
    %cst_23 = arith.constant 5.120000e+02 : f32
    %46 = vector.broadcast %cst_23 : f32 to vector<128x1xf32>
    %47 = arith.divf %45, %46 : vector<128x1xf32>
    %48 = vector.broadcast %47 : vector<128x1xf32> to vector<128x512xf32>
    %49 = arith.subf %38, %48 : vector<128x512xf32>
    %50 = arith.mulf %49, %49 : vector<128x512xf32>
    %cst_24 = arith.constant dense<0.000000e+00> : vector<128xf32>
    %51 = vector.multi_reduction <add>, %50, %cst_24 [1] : vector<128x512xf32> to vector<128xf32>
    %52 = vector.shape_cast %51 : vector<128xf32> to vector<128x1xf32>
    %cst_25 = arith.constant 5.120000e+02 : f32
    %53 = vector.broadcast %cst_25 : f32 to vector<128x1xf32>
    %54 = arith.divf %52, %53 : vector<128x1xf32>
    %cst_26 = arith.constant 9.99999974E-6 : f32
    %55 = vector.broadcast %cst_26 : f32 to vector<128x1xf32>
    %56 = arith.addf %54, %55 : vector<128x1xf32>
    %57 = math.rsqrt %56 : vector<128x1xf32>
    %58 = vector.broadcast %57 : vector<128x1xf32> to vector<128x512xf32>
    %59 = arith.mulf %49, %58 : vector<128x512xf32>
    %cst_27 = arith.constant 0.000000e+00 : f32
    %60 = vector.broadcast %cst_27 : f32 to vector<128x512xf32>
    %61 = arith.cmpf oge, %59, %60 : vector<128x512xf32>
    %cst_28 = arith.constant 1.000000e-01 : f32
    %62 = vector.broadcast %cst_28 : f32 to vector<128x512xf32>
    %63 = arith.mulf %62, %59 : vector<128x512xf32>
    %64 = arith.select %61, %59, %63 : vector<128x512xi1>, vector<128x512xf32>
    %65 = arith.truncf %64 : vector<128x512xf32> to vector<128x512xbf16>
    %c0_29 = arith.constant 0 : index
    %c0_30 = arith.constant 0 : index
    %66 = vector.load %arg10[%c0_29, %c0_30] : memref<512x256xbf16, #tpu.memory_space<vmem>>, vector<512x256xbf16>
    %cst_31 = arith.constant dense<0.000000e+00> : vector<128x256xf32>
    %67 = tpu.matmul %65, %66, %cst_31 {dimension_numbers = #tpu.dot_dimension_numbers<[1], [0], [0], [1], [0, 0, 1, 1], [], []>} : vector<128x512xbf16>, vector<512x256xbf16>, vector<128x256xf32> -> vector<128x256xf32>
    %c0_32 = arith.constant 0 : index
    %c0_33 = arith.constant 0 : index
    %68 = vector.load %arg11[%c0_32, %c0_33] : memref<1x256xf32, #tpu.memory_space<vmem>>, vector<1x256xf32>
    %69 = vector.broadcast %68 : vector<1x256xf32> to vector<128x256xf32>
    %70 = arith.addf %67, %69 : vector<128x256xf32>
    %71 = arith.addf %70, %43 : vector<128x256xf32>
    %72 = arith.truncf %71 : vector<128x256xf32> to vector<128x256xbf16>
    %c0_34 = arith.constant 0 : index
    %c0_35 = arith.constant 0 : index
    %73 = vector.load %arg12[%c0_34, %c0_35] : memref<256x128xbf16, #tpu.memory_space<vmem>>, vector<256x128xbf16>
    %cst_36 = arith.constant dense<0.000000e+00> : vector<128x128xf32>
    %74 = tpu.matmul %72, %73, %cst_36 {dimension_numbers = #tpu.dot_dimension_numbers<[1], [0], [0], [1], [0, 0, 1, 1], [], []>} : vector<128x256xbf16>, vector<256x128xbf16>, vector<128x128xf32> -> vector<128x128xf32>
    %c0_37 = arith.constant 0 : index
    %c0_38 = arith.constant 0 : index
    %75 = vector.load %arg13[%c0_37, %c0_38] : memref<1x128xf32, #tpu.memory_space<vmem>>, vector<1x128xf32>
    %76 = vector.broadcast %75 : vector<1x128xf32> to vector<128x128xf32>
    %77 = arith.addf %74, %76 : vector<128x128xf32>
    %cst_39 = arith.constant dense<0.000000e+00> : vector<128xf32>
    %78 = vector.multi_reduction <add>, %71, %cst_39 [1] : vector<128x256xf32> to vector<128xf32>
    %79 = vector.shape_cast %78 : vector<128xf32> to vector<128x1xf32>
    %cst_40 = arith.constant 2.560000e+02 : f32
    %80 = vector.broadcast %cst_40 : f32 to vector<128x1xf32>
    %81 = arith.divf %79, %80 : vector<128x1xf32>
    %82 = vector.broadcast %81 : vector<128x1xf32> to vector<128x256xf32>
    %83 = arith.subf %71, %82 : vector<128x256xf32>
    %84 = arith.mulf %83, %83 : vector<128x256xf32>
    %cst_41 = arith.constant dense<0.000000e+00> : vector<128xf32>
    %85 = vector.multi_reduction <add>, %84, %cst_41 [1] : vector<128x256xf32> to vector<128xf32>
    %86 = vector.shape_cast %85 : vector<128xf32> to vector<128x1xf32>
    %cst_42 = arith.constant 2.560000e+02 : f32
    %87 = vector.broadcast %cst_42 : f32 to vector<128x1xf32>
    %88 = arith.divf %86, %87 : vector<128x1xf32>
    %cst_43 = arith.constant 9.99999974E-6 : f32
    %89 = vector.broadcast %cst_43 : f32 to vector<128x1xf32>
    %90 = arith.addf %88, %89 : vector<128x1xf32>
    %91 = math.rsqrt %90 : vector<128x1xf32>
    %92 = vector.broadcast %91 : vector<128x1xf32> to vector<128x256xf32>
    %93 = arith.mulf %83, %92 : vector<128x256xf32>
    %cst_44 = arith.constant 0.000000e+00 : f32
    %94 = vector.broadcast %cst_44 : f32 to vector<128x256xf32>
    %95 = arith.cmpf oge, %93, %94 : vector<128x256xf32>
    %cst_45 = arith.constant 1.000000e-01 : f32
    %96 = vector.broadcast %cst_45 : f32 to vector<128x256xf32>
    %97 = arith.mulf %96, %93 : vector<128x256xf32>
    %98 = arith.select %95, %93, %97 : vector<128x256xi1>, vector<128x256xf32>
    %99 = arith.truncf %98 : vector<128x256xf32> to vector<128x256xbf16>
    %c0_46 = arith.constant 0 : index
    %c0_47 = arith.constant 0 : index
    %100 = vector.load %arg14[%c0_46, %c0_47] : memref<256x128xbf16, #tpu.memory_space<vmem>>, vector<256x128xbf16>
    %cst_48 = arith.constant dense<0.000000e+00> : vector<128x128xf32>
    %101 = tpu.matmul %99, %100, %cst_48 {dimension_numbers = #tpu.dot_dimension_numbers<[1], [0], [0], [1], [0, 0, 1, 1], [], []>} : vector<128x256xbf16>, vector<256x128xbf16>, vector<128x128xf32> -> vector<128x128xf32>
    %c0_49 = arith.constant 0 : index
    %c0_50 = arith.constant 0 : index
    %102 = vector.load %arg15[%c0_49, %c0_50] : memref<1x128xf32, #tpu.memory_space<vmem>>, vector<1x128xf32>
    %103 = vector.broadcast %102 : vector<1x128xf32> to vector<128x128xf32>
    %104 = arith.addf %101, %103 : vector<128x128xf32>
    %105 = arith.addf %104, %77 : vector<128x128xf32>
    %cst_51 = arith.constant dense<0.000000e+00> : vector<128xf32>
    %106 = vector.multi_reduction <add>, %105, %cst_51 [1] : vector<128x128xf32> to vector<128xf32>
    %107 = vector.shape_cast %106 : vector<128xf32> to vector<128x1xf32>
    %cst_52 = arith.constant 1.280000e+02 : f32
    %108 = vector.broadcast %cst_52 : f32 to vector<128x1xf32>
    %109 = arith.divf %107, %108 : vector<128x1xf32>
    %110 = vector.broadcast %109 : vector<128x1xf32> to vector<128x128xf32>
    %111 = arith.subf %105, %110 : vector<128x128xf32>
    %112 = arith.mulf %111, %111 : vector<128x128xf32>
    %cst_53 = arith.constant dense<0.000000e+00> : vector<128xf32>
    %113 = vector.multi_reduction <add>, %112, %cst_53 [1] : vector<128x128xf32> to vector<128xf32>
    %114 = vector.shape_cast %113 : vector<128xf32> to vector<128x1xf32>
    %cst_54 = arith.constant 1.280000e+02 : f32
    %115 = vector.broadcast %cst_54 : f32 to vector<128x1xf32>
    %116 = arith.divf %114, %115 : vector<128x1xf32>
    %cst_55 = arith.constant 9.99999974E-6 : f32
    %117 = vector.broadcast %cst_55 : f32 to vector<128x1xf32>
    %118 = arith.addf %116, %117 : vector<128x1xf32>
    %119 = math.rsqrt %118 : vector<128x1xf32>
    %120 = vector.broadcast %119 : vector<128x1xf32> to vector<128x128xf32>
    %121 = arith.mulf %111, %120 : vector<128x128xf32>
    %cst_56 = arith.constant 0.000000e+00 : f32
    %122 = vector.broadcast %cst_56 : f32 to vector<128x128xf32>
    %123 = arith.cmpf oge, %121, %122 : vector<128x128xf32>
    %cst_57 = arith.constant 1.000000e-01 : f32
    %124 = vector.broadcast %cst_57 : f32 to vector<128x128xf32>
    %125 = arith.mulf %124, %121 : vector<128x128xf32>
    %126 = arith.select %123, %121, %125 : vector<128x128xi1>, vector<128x128xf32>
    %c0_58 = arith.constant 0 : index
    %c0_59 = arith.constant 0 : index
    %127 = vector.load %arg16[%c0_58, %c0_59] : memref<1x128xf32, #tpu.memory_space<vmem>>, vector<1x128xf32>
    %128 = vector.broadcast %127 : vector<1x128xf32> to vector<128x128xf32>
    %129 = arith.mulf %126, %128 : vector<128x128xf32>
    %cst_60 = arith.constant dense<0.000000e+00> : vector<128xf32>
    %130 = vector.multi_reduction <add>, %129, %cst_60 [1] : vector<128x128xf32> to vector<128xf32>
    %131 = vector.shape_cast %130 : vector<128xf32> to vector<128x1xf32>
    %c0_61 = arith.constant 0 : index
    %c0_62 = arith.constant 0 : index
    %132 = vector.load %arg17[%c0_61, %c0_62] : memref<1x1xf32, #tpu.memory_space<vmem>>, vector<1x1xf32>
    %133 = vector.broadcast %132 : vector<1x1xf32> to vector<128x1xf32>
    %134 = arith.addf %131, %133 : vector<128x1xf32>
    %c0_63 = arith.constant 0 : index
    %c0_64 = arith.constant 0 : index
    %135 = vector.load %arg18[%c0_63, %c0_64] : memref<128x1xf32, #tpu.memory_space<vmem>>, vector<128x1xf32>
    tpu.vector_store %arg18[%c0_63, %c0_64], %134 {strides = array<i32>} : memref<128x1xf32, #tpu.memory_space<vmem>>, vector<128x1xf32>,
    return
  }
  func.func @transform_0(%arg0: i32) -> (i32, i32) {
    %c0_i32 = arith.constant 0 : i32
    %c0_i32_0 = arith.constant 0 : i32
    return %arg0, %c0_i32 : i32, i32
  }
  func.func @transform_1(%arg0: i32) -> (i32, i32) {
    %c0_i32 = arith.constant 0 : i32
    %c0_i32_0 = arith.constant 0 : i32
    %c0_i32_1 = arith.constant 0 : i32
    return %c0_i32, %c0_i32_0 : i32, i32
  }
  func.func @transform_2(%arg0: i32) -> (i32, i32) {
    %c0_i32 = arith.constant 0 : i32
    %c0_i32_0 = arith.constant 0 : i32
    %c0_i32_1 = arith.constant 0 : i32
    return %c0_i32, %c0_i32_0 : i32, i32
  }
  func.func @transform_3(%arg0: i32) -> (i32, i32) {
    %c0_i32 = arith.constant 0 : i32
    %c0_i32_0 = arith.constant 0 : i32
    %c0_i32_1 = arith.constant 0 : i32
    return %c0_i32, %c0_i32_0 : i32, i32
  }
  func.func @transform_4(%arg0: i32) -> (i32, i32) {
    %c0_i32 = arith.constant 0 : i32
    %c0_i32_0 = arith.constant 0 : i32
    %c0_i32_1 = arith.constant 0 : i32
    return %c0_i32, %c0_i32_0 : i32, i32
  }
  func.func @transform_5(%arg0: i32) -> (i32, i32) {
    %c0_i32 = arith.constant 0 : i32
    %c0_i32_0 = arith.constant 0 : i32
    %c0_i32_1 = arith.constant 0 : i32
    return %c0_i32, %c0_i32_0 : i32, i32
  }
  func.func @transform_6(%arg0: i32) -> (i32, i32) {
    %c0_i32 = arith.constant 0 : i32
    %c0_i32_0 = arith.constant 0 : i32
    %c0_i32_1 = arith.constant 0 : i32
    return %c0_i32, %c0_i32_0 : i32, i32
  }
  func.func @transform_7(%arg0: i32) -> (i32, i32) {
    %c0_i32 = arith.constant 0 : i32
    %c0_i32_0 = arith.constant 0 : i32
    %c0_i32_1 = arith.constant 0 : i32
    return %c0_i32, %c0_i32_0 : i32, i32
  }
  func.func @transform_8(%arg0: i32) -> (i32, i32) {
    %c0_i32 = arith.constant 0 : i32
    %c0_i32_0 = arith.constant 0 : i32
    %c0_i32_1 = arith.constant 0 : i32
    return %c0_i32, %c0_i32_0 : i32, i32
  }
  func.func @transform_9(%arg0: i32) -> (i32, i32) {
    %c0_i32 = arith.constant 0 : i32
    %c0_i32_0 = arith.constant 0 : i32
    %c0_i32_1 = arith.constant 0 : i32
    return %c0_i32, %c0_i32_0 : i32, i32
  }
  func.func @transform_10(%arg0: i32) -> (i32, i32) {
    %c0_i32 = arith.constant 0 : i32
    %c0_i32_0 = arith.constant 0 : i32
    %c0_i32_1 = arith.constant 0 : i32
    return %c0_i32, %c0_i32_0 : i32, i32
  }
  func.func @transform_11(%arg0: i32) -> (i32, i32) {
    %c0_i32 = arith.constant 0 : i32
    %c0_i32_0 = arith.constant 0 : i32
    %c0_i32_1 = arith.constant 0 : i32
    return %c0_i32, %c0_i32_0 : i32, i32
  }
  func.func @transform_12(%arg0: i32) -> (i32, i32) {
    %c0_i32 = arith.constant 0 : i32
    %c0_i32_0 = arith.constant 0 : i32
    %c0_i32_1 = arith.constant 0 : i32
    return %c0_i32, %c0_i32_0 : i32, i32
  }
  func.func @transform_13(%arg0: i32) -> (i32, i32) {
    %c0_i32 = arith.constant 0 : i32
    %c0_i32_0 = arith.constant 0 : i32
    %c0_i32_1 = arith.constant 0 : i32
    return %c0_i32, %c0_i32_0 : i32, i32
  }
  func.func @transform_14(%arg0: i32) -> (i32, i32) {
    %c0_i32 = arith.constant 0 : i32
    %c0_i32_0 = arith.constant 0 : i32
    %c0_i32_1 = arith.constant 0 : i32
    return %c0_i32, %c0_i32_0 : i32, i32
  }
  func.func @transform_15(%arg0: i32) -> (i32, i32) {
    %c0_i32 = arith.constant 0 : i32
    %c0_i32_0 = arith.constant 0 : i32
    %c0_i32_1 = arith.constant 0 : i32
    return %c0_i32, %c0_i32_0 : i32, i32
  }
  func.func @transform_16(%arg0: i32) -> (i32, i32) {
    %c0_i32 = arith.constant 0 : i32
    %c0_i32_0 = arith.constant 0 : i32
    %c0_i32_1 = arith.constant 0 : i32
    return %c0_i32, %c0_i32_0 : i32, i32
  }
  func.func @transform_17(%arg0: i32) -> (i32, i32) {
    %c0_i32 = arith.constant 0 : i32
    %c0_i32_0 = arith.constant 0 : i32
    return %arg0, %c0_i32 : i32, i32
  }
}

</mosaic_0001>

<llo_original>
// kernel: tpu_custom_call.1
$region0: #{tpu_custom_call.1}
  #allocation0 [shape = 'u32[]', space=smem, size = 0x4, offset = 0x4, fixed_abs, tag = 'smem constant byte address 0x4 - core index']
  #allocation1 [shape = 'u32[144,128]{1,0:T(1,128)}', space=vmem, size = 0x12000, scoped, tag = 'internal scratch']
  #allocation2 [shape = 'f32[1,1]{1,0:T(1,128)S(1)}', space=vmem, size = 0x200, scoped, tag = 'scoped memory for tpu_custom_call.1']
  %s0 = inlined_call_operand.vmem [shape: f32[256,16], index: 0, kind: input, shape index: {}]
  %s1 = inlined_call_operand.vmem [shape: bf16[16,16], index: 1, kind: input, shape index: {}]
  %s2 = inlined_call_operand.vmem [shape: f32[1,16], index: 2, kind: input, shape index: {}]
  %s3 = inlined_call_operand.vmem [shape: f32[1,64], index: 3, kind: input, shape index: {}]
  %s4 = inlined_call_operand.vmem [shape: f32[1,64], index: 4, kind: input, shape index: {}]
  %s5 = inlined_call_operand.vmem [shape: f32[1,64], index: 5, kind: input, shape index: {}]
  %s6 = inlined_call_operand.hbm [shape: bf16[64,256], index: 6, kind: input, shape index: {}]
  %s7 = inlined_call_operand.hbm [shape: bf16[16,768], index: 7, kind: input, shape index: {}]
  %s8 = inlined_call_operand.vmem [shape: f32[1,768], index: 8, kind: input, shape index: {}]
  %s9 = inlined_call_operand.hbm [shape: bf16[512,256], index: 9, kind: input, shape index: {}]
  %s10 = inlined_call_operand.vmem [shape: f32[1,256], index: 10, kind: input, shape index: {}]
  %s11 = inlined_call_operand.vmem [shape: bf16[256,128], index: 11, kind: input, shape index: {}]
  %s12 = inlined_call_operand.vmem [shape: f32[1,128], index: 12, kind: input, shape index: {}]
  %s13 = inlined_call_operand.vmem [shape: bf16[256,128], index: 13, kind: input, shape index: {}]
  %s14 = inlined_call_operand.vmem [shape: f32[1,128], index: 14, kind: input, shape index: {}]
  %s15 = inlined_call_operand.vmem [shape: f32[1,128], index: 15, kind: input, shape index: {}]
  %s16 = inlined_call_operand.<no memory space> [shape: f32[1,1], index: 16, kind: input, shape index: {}]
  %s17 = inlined_call_operand.vmem [shape: f32[256,1], index: 17, kind: output, shape index: {}]
  %s18 = sld [smem:[#allocation0]]
  $region113: #{tpu_custom_call.1} parent=0
    _
  %s20 = ssub.s32 1, %s18
  %s21 = scalar_select 0, %s20, %s18
  %v22 = vstv %s16
  %23 = vst [vmem:[#allocation2] sm:$0x1] %v22
  $region1: #{tpu_custom_call.1} parent=0
    #allocation3 [shape = 'u8[32768]{0}', space=vmem, size = 0x8000, scoped, tag = 'input window, operand 6, single buffered']
    #allocation4 [shape = 's32[2]{0}', space=sflag, size = 0x8, scoped, tag = 'scoped memory for tpu_custom_call.1']
    #allocation5 [shape = 'u8[24576]{0}', space=vmem, size = 0x6000, scoped, tag = 'input window, operand 7, single buffered']
    #allocation6 [shape = 's32[1]{0}', space=sflag, size = 0x4, scoped, tag = 'scoped memory for tpu_custom_call.1']
    #allocation7 [shape = 'u8[262144]{0}', space=vmem, size = 0x40000, scoped, tag = 'input window, operand 9, single buffered']
    %24 = vsyncpa [#allocation4], 0
    %25 = vsyncpa [#allocation6], 0
    loop: start=0, step=1, limit=4
    $region2: #{tpu_custom_call.1} parent=1 // loop_pre_header
      _
    $region3: #{tpu_custom_call.1} parent=1 // loop_header
      %s27 = sphi 0, %s31
      %p28 = scmp.ge.s32.totalorder %s27, 4
      %s37 = sphi 0, %s39
      %s40 = sphi 0, %s37
      %s41 = sphi 0, %s40
      %s57 = sphi 0, %s41
      %s61 = sphi 0, %s61
      %s63 = sphi 0, %s61
      %s64 = sphi 0, %s63
      %s78 = sphi 0, %s64
      %s82 = sphi 0, %s82
      %s84 = sphi 0, %s82
      %s85 = sphi 0, %s84
      %s99 = sphi 0, %s85
      %s103 = sphi 0, %s103
      %s105 = sphi 0, %s103
      %s106 = sphi 0, %s105
      %s120 = sphi 0, %s106
      %s124 = sphi 0, %s124
      %s126 = sphi 0, %s124
      %s127 = sphi 0, %s126
      %s141 = sphi 0, %s127
      %s145 = sphi 0, %s145
      %s147 = sphi 0, %s145
      %s148 = sphi 0, %s147
      %s162 = sphi 0, %s148
      %s166 = sphi 0, %s166
      %s168 = sphi 0, %s166
      %s169 = sphi 0, %s168
      %s183 = sphi 0, %s169
      %s187 = sphi 0, %s187
      %s189 = sphi 0, %s187
      %s190 = sphi 0, %s189
      %s204 = sphi 0, %s190
      %s208 = sphi 0, %s208
      %s210 = sphi 0, %s208
      %s211 = sphi 0, %s210
      %s225 = sphi 0, %s211
      %s229 = sphi 0, %s229
      %s231 = sphi 0, %s229
      %s232 = sphi 0, %s231
      %s246 = sphi 0, %s232
      %s250 = sphi 0, %s250
      %s252 = sphi 0, %s250
      %s253 = sphi 0, %s252
      %s267 = sphi 0, %s253
      %s271 = sphi 0, %s271
      %s273 = sphi 0, %s271
      %s274 = sphi 0, %s273
      %s288 = sphi 0, %s274
      %s292 = sphi 0, %s292
      %s294 = sphi 0, %s292
      %s295 = sphi 0, %s294
      %s309 = sphi 0, %s295
      %s313 = sphi 0, %s313
      %s315 = sphi 0, %s313
      %s316 = sphi 0, %s315
      %s330 = sphi 0, %s316
      %s334 = sphi 0, %s334
      %s336 = sphi 0, %s334
      %s337 = sphi 0, %s336
      %s351 = sphi 0, %s337
      %s355 = sphi 0, %s355
      %s357 = sphi 0, %s355
      %s358 = sphi 0, %s357
      %s372 = sphi 0, %s358
      %s376 = sphi 0, %s376
      %s378 = sphi 0, %s376
      %s379 = sphi 0, %s378
      %s393 = sphi 0, %s379
      %s399 = sphi 0, %s401
      %s402 = sphi 0, %s399
      %s403 = sphi 0, %s402
      %s419 = sphi 0, %s403
    $region4: #{tpu_custom_call.1} parent=1 // loop_header_branch
      %30 = sbr.rel (%p28) target = $region8
    $region5: #{tpu_custom_call.1} parent=1 // loop_body
      %s32 = ssub.s32 %s27, 1
      %s33 = ssub.s32 %s27, 2
      %s34 = sadd.s32 %s27, 1
      %s35 = ssub.s32 %s27, %s34
      %p36 = scmp.eq.s32.totalorder %s35, 0
      %s38 = sadd.s32 %s37, 1
      %s39 = scalar_select %p36, %s37, %s38
      %p42 = pneg %p36
      %p43 = scmp.eq.s32.totalorder %s27, 1
      %p44 = por %p42, %p43
      %p45 = scmp.ne.s32.totalorder %s37, %s40
      %p46 = scmp.eq.s32.totalorder %s27, 0
      %p47 = por %p45, %p46
      %p48 = scmp.ne.s32.totalorder %s37, %s40
      %p49 = scmp.eq.s32.totalorder %s32, 1
      %p50 = por %p48, %p49
      %p51 = scmp.ne.s32.totalorder %s40, %s41
      %p52 = scmp.eq.s32.totalorder %s32, 0
      %p53 = por %p51, %p52
      %p54 = scmp.ne.s32.totalorder %s40, %s41
      %p55 = scmp.eq.s32.totalorder %s33, 1
      %p56 = por %p54, %p55
      %p58 = scmp.ne.s32.totalorder %s41, %s57
      %p59 = scmp.eq.s32.totalorder %s33, 0
      %p60 = por %p58, %p59
      %s62 = sadd.s32 %s61, 1
      %p65 = scmp.eq.s32.totalorder %s27, 1
      %p66 = scmp.ne.s32.totalorder %s61, %s63
      %p67 = scmp.eq.s32.totalorder %s27, 0
      %p68 = por %p66, %p67
      %p69 = scmp.ne.s32.totalorder %s61, %s63
      %p70 = scmp.eq.s32.totalorder %s32, 1
      %p71 = por %p69, %p70
      %p72 = scmp.ne.s32.totalorder %s63, %s64
      %p73 = scmp.eq.s32.totalorder %s32, 0
      %p74 = por %p72, %p73
      %p75 = scmp.ne.s32.totalorder %s63, %s64
      %p76 = scmp.eq.s32.totalorder %s33, 1
      %p77 = por %p75, %p76
      %p79 = scmp.ne.s32.totalorder %s64, %s78
      %p80 = scmp.eq.s32.totalorder %s33, 0
      %p81 = por %p79, %p80
      %s83 = sadd.s32 %s82, 1
      %p86 = scmp.eq.s32.totalorder %s27, 1
      %p87 = scmp.ne.s32.totalorder %s82, %s84
      %p88 = scmp.eq.s32.totalorder %s27, 0
      %p89 = por %p87, %p88
      %p90 = scmp.ne.s32.totalorder %s82, %s84
      %p91 = scmp.eq.s32.totalorder %s32, 1
      %p92 = por %p90, %p91
      %p93 = scmp.ne.s32.totalorder %s84, %s85
      %p94 = scmp.eq.s32.totalorder %s32, 0
      %p95 = por %p93, %p94
      %p96 = scmp.ne.s32.totalorder %s84, %s85
      %p97 = scmp.eq.s32.totalorder %s33, 1
      %p98 = por %p96, %p97
      %p100 = scmp.ne.s32.totalorder %s85, %s99
      %p101 = scmp.eq.s32.totalorder %s33, 0
      %p102 = por %p100, %p101
      %s104 = sadd.s32 %s103, 1
      %p107 = scmp.eq.s32.totalorder %s27, 1
      %p108 = scmp.ne.s32.totalorder %s103, %s105
      %p109 = scmp.eq.s32.totalorder %s27, 0
      %p110 = por %p108, %p109
      %p111 = scmp.ne.s32.totalorder %s103, %s105
      %p112 = scmp.eq.s32.totalorder %s32, 1
      %p113 = por %p111, %p112
      %p114 = scmp.ne.s32.totalorder %s105, %s106
      %p115 = scmp.eq.s32.totalorder %s32, 0
      %p116 = por %p114, %p115
      %p117 = scmp.ne.s32.totalorder %s105, %s106
      %p118 = scmp.eq.s32.totalorder %s33, 1
      %p119 = por %p117, %p118
      %p121 = scmp.ne.s32.totalorder %s106, %s120
      %p122 = scmp.eq.s32.totalorder %s33, 0
      %p123 = por %p121, %p122
      %s125 = sadd.s32 %s124, 1
      %p128 = scmp.eq.s32.totalorder %s27, 1
      %p129 = scmp.ne.s32.totalorder %s124, %s126
      %p130 = scmp.eq.s32.totalorder %s27, 0
      %p131 = por %p129, %p130
      %p132 = scmp.ne.s32.totalorder %s124, %s126
      %p133 = scmp.eq.s32.totalorder %s32, 1
      %p134 = por %p132, %p133
      %p135 = scmp.ne.s32.totalorder %s126, %s127
      %p136 = scmp.eq.s32.totalorder %s32, 0
      %p137 = por %p135, %p136
      %p138 = scmp.ne.s32.totalorder %s126, %s127
      %p139 = scmp.eq.s32.totalorder %s33, 1
      %p140 = por %p138, %p139
      %p142 = scmp.ne.s32.totalorder %s127, %s141
      %p143 = scmp.eq.s32.totalorder %s33, 0
      %p144 = por %p142, %p143
      %s146 = sadd.s32 %s145, 1
      %p149 = scmp.eq.s32.totalorder %s27, 1
      %p150 = scmp.ne.s32.totalorder %s145, %s147
      %p151 = scmp.eq.s32.totalorder %s27, 0
      %p152 = por %p150, %p151
      %p153 = scmp.ne.s32.totalorder %s145, %s147
      %p154 = scmp.eq.s32.totalorder %s32, 1
      %p155 = por %p153, %p154
      %p156 = scmp.ne.s32.totalorder %s147, %s148
      %p157 = scmp.eq.s32.totalorder %s32, 0
      %p158 = por %p156, %p157
      %p159 = scmp.ne.s32.totalorder %s147, %s148
      %p160 = scmp.eq.s32.totalorder %s33, 1
      %p161 = por %p159, %p160
      %p163 = scmp.ne.s32.totalorder %s148, %s162
      %p164 = scmp.eq.s32.totalorder %s33, 0
      %p165 = por %p163, %p164
      %s167 = sadd.s32 %s166, 1
      %p170 = scmp.eq.s32.totalorder %s27, 1
      %p171 = scmp.ne.s32.totalorder %s166, %s168
      %p172 = scmp.eq.s32.totalorder %s27, 0
      %p173 = por %p171, %p172
      %p174 = scmp.ne.s32.totalorder %s166, %s168
      %p175 = scmp.eq.s32.totalorder %s32, 1
      %p176 = por %p174, %p175
      %p177 = scmp.ne.s32.totalorder %s168, %s169
      %p178 = scmp.eq.s32.totalorder %s32, 0
      %p179 = por %p177, %p178
      %p180 = scmp.ne.s32.totalorder %s168, %s169
      %p181 = scmp.eq.s32.totalorder %s33, 1
      %p182 = por %p180, %p181
      %p184 = scmp.ne.s32.totalorder %s169, %s183
      %p185 = scmp.eq.s32.totalorder %s33, 0
      %p186 = por %p184, %p185
      %s188 = sadd.s32 %s187, 1
      %p191 = scmp.eq.s32.totalorder %s27, 1
      %p192 = scmp.ne.s32.totalorder %s187, %s189
      %p193 = scmp.eq.s32.totalorder %s27, 0
      %p194 = por %p192, %p193
      %p195 = scmp.ne.s32.totalorder %s187, %s189
      %p196 = scmp.eq.s32.totalorder %s32, 1
      %p197 = por %p195, %p196
      %p198 = scmp.ne.s32.totalorder %s189, %s190
      %p199 = scmp.eq.s32.totalorder %s32, 0
      %p200 = por %p198, %p199
      %p201 = scmp.ne.s32.totalorder %s189, %s190
      %p202 = scmp.eq.s32.totalorder %s33, 1
      %p203 = por %p201, %p202
      %p205 = scmp.ne.s32.totalorder %s190, %s204
      %p206 = scmp.eq.s32.totalorder %s33, 0
      %p207 = por %p205, %p206
      %s209 = sadd.s32 %s208, 1
      %p212 = scmp.eq.s32.totalorder %s27, 1
      %p213 = scmp.ne.s32.totalorder %s208, %s210
      %p214 = scmp.eq.s32.totalorder %s27, 0
      %p215 = por %p213, %p214
      %p216 = scmp.ne.s32.totalorder %s208, %s210
      %p217 = scmp.eq.s32.totalorder %s32, 1
      %p218 = por %p216, %p217
      %p219 = scmp.ne.s32.totalorder %s210, %s211
      %p220 = scmp.eq.s32.totalorder %s32, 0
      %p221 = por %p219, %p220
      %p222 = scmp.ne.s32.totalorder %s210, %s211
      %p223 = scmp.eq.s32.totalorder %s33, 1
      %p224 = por %p222, %p223
      %p226 = scmp.ne.s32.totalorder %s211, %s225
      %p227 = scmp.eq.s32.totalorder %s33, 0
      %p228 = por %p226, %p227
      %s230 = sadd.s32 %s229, 1
      %p233 = scmp.eq.s32.totalorder %s27, 1
      %p234 = scmp.ne.s32.totalorder %s229, %s231
      %p235 = scmp.eq.s32.totalorder %s27, 0
      %p236 = por %p234, %p235
      %p237 = scmp.ne.s32.totalorder %s229, %s231
      %p238 = scmp.eq.s32.totalorder %s32, 1
      %p239 = por %p237, %p238
      %p240 = scmp.ne.s32.totalorder %s231, %s232
      %p241 = scmp.eq.s32.totalorder %s32, 0
      %p242 = por %p240, %p241
      %p243 = scmp.ne.s32.totalorder %s231, %s232
      %p244 = scmp.eq.s32.totalorder %s33, 1
      %p245 = por %p243, %p244
      %p247 = scmp.ne.s32.totalorder %s232, %s246
      %p248 = scmp.eq.s32.totalorder %s33, 0
      %p249 = por %p247, %p248
      %s251 = sadd.s32 %s250, 1
      %p254 = scmp.eq.s32.totalorder %s27, 1
      %p255 = scmp.ne.s32.totalorder %s250, %s252
      %p256 = scmp.eq.s32.totalorder %s27, 0
      %p257 = por %p255, %p256
      %p258 = scmp.ne.s32.totalorder %s250, %s252
      %p259 = scmp.eq.s32.totalorder %s32, 1
      %p260 = por %p258, %p259
      %p261 = scmp.ne.s32.totalorder %s252, %s253
      %p262 = scmp.eq.s32.totalorder %s32, 0
      %p263 = por %p261, %p262
      %p264 = scmp.ne.s32.totalorder %s252, %s253
      %p265 = scmp.eq.s32.totalorder %s33, 1
      %p266 = por %p264, %p265
      %p268 = scmp.ne.s32.totalorder %s253, %s267
      %p269 = scmp.eq.s32.totalorder %s33, 0
      %p270 = por %p268, %p269
      %s272 = sadd.s32 %s271, 1
      %p275 = scmp.eq.s32.totalorder %s27, 1
      %p276 = scmp.ne.s32.totalorder %s271, %s273
      %p277 = scmp.eq.s32.totalorder %s27, 0
      %p278 = por %p276, %p277
      %p279 = scmp.ne.s32.totalorder %s271, %s273
      %p280 = scmp.eq.s32.totalorder %s32, 1
      %p281 = por %p279, %p280
      %p282 = scmp.ne.s32.totalorder %s273, %s274
      %p283 = scmp.eq.s32.totalorder %s32, 0
      %p284 = por %p282, %p283
      %p285 = scmp.ne.s32.totalorder %s273, %s274
      %p286 = scmp.eq.s32.totalorder %s33, 1
      %p287 = por %p285, %p286
      %p289 = scmp.ne.s32.totalorder %s274, %s288
      %p290 = scmp.eq.s32.totalorder %s33, 0
      %p291 = por %p289, %p290
      %s293 = sadd.s32 %s292, 1
      %p296 = scmp.eq.s32.totalorder %s27, 1
      %p297 = scmp.ne.s32.totalorder %s292, %s294
      %p298 = scmp.eq.s32.totalorder %s27, 0
      %p299 = por %p297, %p298
      %p300 = scmp.ne.s32.totalorder %s292, %s294
      %p301 = scmp.eq.s32.totalorder %s32, 1
      %p302 = por %p300, %p301
      %p303 = scmp.ne.s32.totalorder %s294, %s295
      %p304 = scmp.eq.s32.totalorder %s32, 0
      %p305 = por %p303, %p304
      %p306 = scmp.ne.s32.totalorder %s294, %s295
      %p307 = scmp.eq.s32.totalorder %s33, 1
      %p308 = por %p306, %p307
      %p310 = scmp.ne.s32.totalorder %s295, %s309
      %p311 = scmp.eq.s32.totalorder %s33, 0
      %p312 = por %p310, %p311
      %s314 = sadd.s32 %s313, 1
      %p317 = scmp.eq.s32.totalorder %s27, 1
      %p318 = scmp.ne.s32.totalorder %s313, %s315
      %p319 = scmp.eq.s32.totalorder %s27, 0
      %p320 = por %p318, %p319
      %p321 = scmp.ne.s32.totalorder %s313, %s315
      %p322 = scmp.eq.s32.totalorder %s32, 1
      %p323 = por %p321, %p322
      %p324 = scmp.ne.s32.totalorder %s315, %s316
      %p325 = scmp.eq.s32.totalorder %s32, 0
      %p326 = por %p324, %p325
      %p327 = scmp.ne.s32.totalorder %s315, %s316
      %p328 = scmp.eq.s32.totalorder %s33, 1
      %p329 = por %p327, %p328
      %p331 = scmp.ne.s32.totalorder %s316, %s330
      %p332 = scmp.eq.s32.totalorder %s33, 0
      %p333 = por %p331, %p332
      %s335 = sadd.s32 %s334, 1
      %p338 = scmp.eq.s32.totalorder %s27, 1
      %p339 = scmp.ne.s32.totalorder %s334, %s336
      %p340 = scmp.eq.s32.totalorder %s27, 0
      %p341 = por %p339, %p340
      %p342 = scmp.ne.s32.totalorder %s334, %s336
      %p343 = scmp.eq.s32.totalorder %s32, 1
      %p344 = por %p342, %p343
      %p345 = scmp.ne.s32.totalorder %s336, %s337
      %p346 = scmp.eq.s32.totalorder %s32, 0
      %p347 = por %p345, %p346
      %p348 = scmp.ne.s32.totalorder %s336, %s337
      %p349 = scmp.eq.s32.totalorder %s33, 1
      %p350 = por %p348, %p349
      %p352 = scmp.ne.s32.totalorder %s337, %s351
      %p353 = scmp.eq.s32.totalorder %s33, 0
      %p354 = por %p352, %p353
      %s356 = sadd.s32 %s355, 1
      %p359 = scmp.eq.s32.totalorder %s27, 1
      %p360 = scmp.ne.s32.totalorder %s355, %s357
      %p361 = scmp.eq.s32.totalorder %s27, 0
      %p362 = por %p360, %p361
      %p363 = scmp.ne.s32.totalorder %s355, %s357
      %p364 = scmp.eq.s32.totalorder %s32, 1
      %p365 = por %p363, %p364
      %p366 = scmp.ne.s32.totalorder %s357, %s358
      %p367 = scmp.eq.s32.totalorder %s32, 0
      %p368 = por %p366, %p367
      %p369 = scmp.ne.s32.totalorder %s357, %s358
      %p370 = scmp.eq.s32.totalorder %s33, 1
      %p371 = por %p369, %p370
      %p373 = scmp.ne.s32.totalorder %s358, %s372
      %p374 = scmp.eq.s32.totalorder %s33, 0
      %p375 = por %p373, %p374
      %s377 = sadd.s32 %s376, 1
      %p380 = scmp.eq.s32.totalorder %s27, 1
      %p381 = scmp.ne.s32.totalorder %s376, %s378
      %p382 = scmp.eq.s32.totalorder %s27, 0
      %p383 = por %p381, %p382
      %p384 = scmp.ne.s32.totalorder %s376, %s378
      %p385 = scmp.eq.s32.totalorder %s32, 1
      %p386 = por %p384, %p385
      %p387 = scmp.ne.s32.totalorder %s378, %s379
      %p388 = scmp.eq.s32.totalorder %s32, 0
      %p389 = por %p387, %p388
      %p390 = scmp.ne.s32.totalorder %s378, %s379
      %p391 = scmp.eq.s32.totalorder %s33, 1
      %p392 = por %p390, %p391
      %p394 = scmp.ne.s32.totalorder %s379, %s393
      %p395 = scmp.eq.s32.totalorder %s33, 0
      %p396 = por %p394, %p395
      %s397 = ssub.s32 %s27, %s34
      %p398 = scmp.eq.s32.totalorder %s397, 0
      %s400 = sadd.s32 %s399, 1
      %s401 = scalar_select %p398, %s399, %s400
      %p404 = pneg %p398
      %p405 = scmp.eq.s32.totalorder %s27, 1
      %p406 = por %p404, %p405
      %p407 = scmp.ne.s32.totalorder %s399, %s402
      %p408 = scmp.eq.s32.totalorder %s27, 0
      %p409 = por %p407, %p408
      %p410 = scmp.ne.s32.totalorder %s399, %s402
      %p411 = scmp.eq.s32.totalorder %s32, 1
      %p412 = por %p410, %p411
      %p413 = scmp.ne.s32.totalorder %s402, %s403
      %p414 = scmp.eq.s32.totalorder %s32, 0
      %p415 = por %p413, %p414
      %p416 = scmp.ne.s32.totalorder %s402, %s403
      %p417 = scmp.eq.s32.totalorder %s33, 1
      %p418 = por %p416, %p417
      %p420 = scmp.ne.s32.totalorder %s403, %s419
      %p421 = scmp.eq.s32.totalorder %s33, 0
      %p422 = por %p420, %p421
      %p423 = scmp.le.s32.totalorder 1, %s27
      %p424 = scmp.lt.s32.totalorder %s27, 3
      %p425 = pnand %p423, %p424
      %p426 = pneg %p425
      // Predicated region
      $region9: #{tpu_custom_call.1} parent=5 // pred_check
        _
      $region10: #{tpu_custom_call.1} parent=5 // pred_check_branch
        %428 = sbr.rel (%p425) target = $region12
      $region11: #{tpu_custom_call.1} parent=5 // pred_region
        %s429 = ssub.s32 %s27, 1
        // Predicated region
        $region13: #{tpu_custom_call.1} parent=11 // pred_check
          %p430 = pneg %p74
        $region14: #{tpu_custom_call.1} parent=11 // pred_check_branch
          %432 = sbr.rel (%p430) target = $region16
        $region15: #{tpu_custom_call.1} parent=11 // pred_region
          _
        $region16: #{tpu_custom_call.1} parent=11 // pred_fallthru
          _
        // Predicated region
        $region17: #{tpu_custom_call.1} parent=11 // pred_check
          %p433 = pneg %p95
        $region18: #{tpu_custom_call.1} parent=11 // pred_check_branch
          %435 = sbr.rel (%p433) target = $region20
        $region19: #{tpu_custom_call.1} parent=11 // pred_region
          _
        $region20: #{tpu_custom_call.1} parent=11 // pred_fallthru
          _
        // Predicated region
        $region21: #{tpu_custom_call.1} parent=11 // pred_check
          %p436 = pneg %p116
        $region22: #{tpu_custom_call.1} parent=11 // pred_check_branch
          %438 = sbr.rel (%p436) target = $region24
        $region23: #{tpu_custom_call.1} parent=11 // pred_region
          _
        $region24: #{tpu_custom_call.1} parent=11 // pred_fallthru
          _
        // Predicated region
        $region25: #{tpu_custom_call.1} parent=11 // pred_check
          %p439 = pneg %p137
        $region26: #{tpu_custom_call.1} parent=11 // pred_check_branch
          %441 = sbr.rel (%p439) target = $region28
        $region27: #{tpu_custom_call.1} parent=11 // pred_region
          _
        $region28: #{tpu_custom_call.1} parent=11 // pred_fallthru
          _
        // Predicated region
        $region29: #{tpu_custom_call.1} parent=11 // pred_check
          %p442 = pneg %p158
        $region30: #{tpu_custom_call.1} parent=11 // pred_check_branch
          %444 = sbr.rel (%p442) target = $region32
        $region31: #{tpu_custom_call.1} parent=11 // pred_region
          _
        $region32: #{tpu_custom_call.1} parent=11 // pred_fallthru
          _
        // Predicated region
        $region33: #{tpu_custom_call.1} parent=11 // pred_check
          %p445 = pneg %p179
        $region34: #{tpu_custom_call.1} parent=11 // pred_check_branch
          %447 = sbr.rel (%p445) target = $region36
        $region35: #{tpu_custom_call.1} parent=11 // pred_region
          %s449 = ssub.s32 1024, 1024
          %450 = vsyncadd [#allocation4], %s449
          %s451 = sshll.u32 [#allocation3], 4
          %s452 = int_to_ptr.vmem [resolvable:$true] %s451
          %457 = dma.hbm_to_vmem [thread:$0]  %s6, 1024, %s452, [#allocation4], 128, 128, 8
        $region36: #{tpu_custom_call.1} parent=11 // pred_fallthru
          _
        // Predicated region
        $region37: #{tpu_custom_call.1} parent=11 // pred_check
          %p458 = pneg %p200
        $region38: #{tpu_custom_call.1} parent=11 // pred_check_branch
          %460 = sbr.rel (%p458) target = $region40
        $region39: #{tpu_custom_call.1} parent=11 // pred_region
          %s462 = ssub.s32 768, 768
          %463 = vsyncadd [#allocation6], %s462
          %s464 = sshll.u32 [#allocation5], 4
          %s465 = int_to_ptr.vmem [resolvable:$true] %s464
          %470 = dma.hbm_to_vmem [thread:$0]  %s7, 768, %s465, [#allocation6], 384, 384, 24
        $region40: #{tpu_custom_call.1} parent=11 // pred_fallthru
          _
        // Predicated region
        $region41: #{tpu_custom_call.1} parent=11 // pred_check
          %p471 = pneg %p221
        $region42: #{tpu_custom_call.1} parent=11 // pred_check_branch
          %473 = sbr.rel (%p471) target = $region44
        $region43: #{tpu_custom_call.1} parent=11 // pred_region
          _
        $region44: #{tpu_custom_call.1} parent=11 // pred_fallthru
          _
        // Predicated region
        $region45: #{tpu_custom_call.1} parent=11 // pred_check
          %p474 = pneg %p242
        $region46: #{tpu_custom_call.1} parent=11 // pred_check_branch
          %476 = sbr.rel (%p474) target = $region48
        $region47: #{tpu_custom_call.1} parent=11 // pred_region
          %s478 = ssub.s32 8192, 8192
          %479 = vsyncadd [#allocation6], %s478
          %s480 = sshll.u32 [#allocation7], 4
          %s481 = int_to_ptr.vmem [resolvable:$true] %s480
          %486 = dma.hbm_to_vmem [thread:$0]  %s9, 8192, %s481, [#allocation6], 128, 128, 8
        $region48: #{tpu_custom_call.1} parent=11 // pred_fallthru
          _
        // Predicated region
        $region49: #{tpu_custom_call.1} parent=11 // pred_check
          %p487 = pneg %p263
        $region50: #{tpu_custom_call.1} parent=11 // pred_check_branch
          %489 = sbr.rel (%p487) target = $region52
        $region51: #{tpu_custom_call.1} parent=11 // pred_region
          _
        $region52: #{tpu_custom_call.1} parent=11 // pred_fallthru
          _
        // Predicated region
        $region53: #{tpu_custom_call.1} parent=11 // pred_check
          %p490 = pneg %p284
        $region54: #{tpu_custom_call.1} parent=11 // pred_check_branch
          %492 = sbr.rel (%p490) target = $region56
        $region55: #{tpu_custom_call.1} parent=11 // pred_region
          _
        $region56: #{tpu_custom_call.1} parent=11 // pred_fallthru
          _
        // Predicated region
        $region57: #{tpu_custom_call.1} parent=11 // pred_check
          %p493 = pneg %p305
        $region58: #{tpu_custom_call.1} parent=11 // pred_check_branch
          %495 = sbr.rel (%p493) target = $region60
        $region59: #{tpu_custom_call.1} parent=11 // pred_region
          _
        $region60: #{tpu_custom_call.1} parent=11 // pred_fallthru
          _
        // Predicated region
        $region61: #{tpu_custom_call.1} parent=11 // pred_check
          %p496 = pneg %p326
        $region62: #{tpu_custom_call.1} parent=11 // pred_check_branch
          %498 = sbr.rel (%p496) target = $region64
        $region63: #{tpu_custom_call.1} parent=11 // pred_region
          _
        $region64: #{tpu_custom_call.1} parent=11 // pred_fallthru
          _
        // Predicated region
        $region65: #{tpu_custom_call.1} parent=11 // pred_check
          %p499 = pneg %p347
        $region66: #{tpu_custom_call.1} parent=11 // pred_check_branch
          %501 = sbr.rel (%p499) target = $region68
        $region67: #{tpu_custom_call.1} parent=11 // pred_region
          _
        $region68: #{tpu_custom_call.1} parent=11 // pred_fallthru
          _
        // Predicated region
        $region69: #{tpu_custom_call.1} parent=11 // pred_check
          %p502 = pneg %p368
        $region70: #{tpu_custom_call.1} parent=11 // pred_check_branch
          %504 = sbr.rel (%p502) target = $region72
        $region71: #{tpu_custom_call.1} parent=11 // pred_region
          _
        $region72: #{tpu_custom_call.1} parent=11 // pred_fallthru
          _
        // Predicated region
        $region73: #{tpu_custom_call.1} parent=11 // pred_check
          %p505 = pneg %p389
        $region74: #{tpu_custom_call.1} parent=11 // pred_check_branch
          %507 = sbr.rel (%p505) target = $region76
        $region75: #{tpu_custom_call.1} parent=11 // pred_region
          _
        $region76: #{tpu_custom_call.1} parent=11 // pred_fallthru
          _
      $region12: #{tpu_custom_call.1} parent=5 // pred_fallthru
        _
      %p508 = scmp.lt.s32.totalorder %s27, 2
      // Predicated region
      $region77: #{tpu_custom_call.1} parent=5 // pred_check
        %p509 = pneg %p508
      $region78: #{tpu_custom_call.1} parent=5 // pred_check_branch
        %511 = sbr.rel (%p509) target = $region80
      $region79: #{tpu_custom_call.1} parent=5 // pred_region
        // Predicated region
        $region81: #{tpu_custom_call.1} parent=79 // pred_check
          %p512 = pneg %p47
        $region82: #{tpu_custom_call.1} parent=79 // pred_check_branch
          %514 = sbr.rel (%p512) target = $region84
        $region83: #{tpu_custom_call.1} parent=79 // pred_region
          %s515 = smul.u32 16, %s27
          %p516 = scmp.lt.s32.totalorder %s515, 31
          %s517 = scalar_select %p516, %s515, 31
          %s518 = smul.addr %s517, 8
          %s519 = scalar_lea.vmem %s0, %s518
          %s520 = smul.u32 16, %s27
        $region84: #{tpu_custom_call.1} parent=79 // pred_fallthru
          _
      $region80: #{tpu_custom_call.1} parent=5 // pred_fallthru
        _
      %p521 = scmp.le.s32.totalorder 1, %s27
      %p522 = scmp.lt.s32.totalorder %s27, 3
      %p523 = pnand %p521, %p522
      %p524 = pneg %p523
      // Predicated region
      $region85: #{tpu_custom_call.1} parent=5 // pred_check
        _
      $region86: #{tpu_custom_call.1} parent=5 // pred_check_branch
        %526 = sbr.rel (%p523) target = $region88
      $region87: #{tpu_custom_call.1} parent=5 // pred_region
        %s527 = ssub.s32 %s27, 1
        // Predicated region
        $region89: #{tpu_custom_call.1} parent=87 // pred_check
          %p528 = pneg %p179
        $region90: #{tpu_custom_call.1} parent=87 // pred_check_branch
          %530 = sbr.rel (%p528) target = $region92
        $region91: #{tpu_custom_call.1} parent=87 // pred_region
          %531 = dma.done [#allocation4], 1024
        $region92: #{tpu_custom_call.1} parent=87 // pred_fallthru
          _
        // Predicated region
        $region93: #{tpu_custom_call.1} parent=87 // pred_check
          %p532 = pneg %p200
        $region94: #{tpu_custom_call.1} parent=87 // pred_check_branch
          %534 = sbr.rel (%p532) target = $region96
        $region95: #{tpu_custom_call.1} parent=87 // pred_region
          %535 = dma.done [#allocation6], 768
        $region96: #{tpu_custom_call.1} parent=87 // pred_fallthru
          _
        // Predicated region
        $region97: #{tpu_custom_call.1} parent=87 // pred_check
          %p536 = pneg %p242
        $region98: #{tpu_custom_call.1} parent=87 // pred_check_branch
          %538 = sbr.rel (%p536) target = $region100
        $region99: #{tpu_custom_call.1} parent=87 // pred_region
          %539 = dma.done [#allocation6], 8192
        $region100: #{tpu_custom_call.1} parent=87 // pred_fallthru
          _
        %s540 = smul.u32 16, %s32
        %p541 = scmp.lt.s32.totalorder %s540, 31
        %s542 = scalar_select %p541, %s540, 31
        %s543 = smul.addr %s542, 8
        %s544 = scalar_lea.vmem %s0, %s543
        %p545 = pneg %p53
        %p546 = pneg %p50
        %p547 = pneg %p74
        %p548 = pneg %p71
        %p549 = pneg %p95
        %p550 = pneg %p92
        %p551 = pneg %p116
        %p552 = pneg %p113
        %p553 = pneg %p137
        %p554 = pneg %p134
        %p555 = pneg %p158
        %p556 = pneg %p155
        %p557 = pneg %p179
        %p558 = pneg %p176
        %p559 = pneg %p200
        %p560 = pneg %p197
        %p561 = pneg %p221
        %p562 = pneg %p218
        %p563 = pneg %p242
        %p564 = pneg %p239
        %p565 = pneg %p263
        %p566 = pneg %p260
        %p567 = pneg %p284
        %p568 = pneg %p281
        %p569 = pneg %p305
        %p570 = pneg %p302
        %p571 = pneg %p326
        %p572 = pneg %p323
        %p573 = pneg %p347
        %p574 = pneg %p344
        %p575 = pneg %p368
        %p576 = pneg %p365
        %p577 = pneg %p389
        %p578 = pneg %p386
        %p579 = pneg %p415
        %p580 = pneg %p412
        %s581 = smul.u32 16, %s32
        %p582 = scmp.lt.s32.totalorder %s581, 31
        %s583 = scalar_select %p582, %s581, 31
        %s584 = smul.addr %s583, 8
        %s585 = scalar_lea.vmem %s17, %s584
        %s586 = smul.u32 16, %s32
        %p587 = scmp.lt.s32.totalorder %s586, 31
        %s588 = scalar_select %p587, %s586, 31
        %s589 = smul.addr %s588, 8
        %s590 = scalar_lea.vmem %s0, %s589
        %s591 = smul.u32 16, %s32
        %s592 = smul.u32 16, %s32
        %p593 = scmp.lt.s32.totalorder %s592, 31
        %s594 = scalar_select %p593, %s592, 31
        %s595 = smul.addr %s594, 8
        %s596 = scalar_lea.vmem %s17, %s595
        %s597 = smul.u32 16, %s32
        %v599 = vld [vmem:[%s590] sm:$0xff]
        %v600 = vld [vmem:[%s590 + $0x8] sm:$0xff]
        %v601 = vld [vmem:[%s590 + $0x10] sm:$0xff]
        %v602 = vld [vmem:[%s590 + $0x18] sm:$0xff]
        %v603 = vld [vmem:[%s590 + $0x20] sm:$0xff]
        %v604 = vld [vmem:[%s590 + $0x28] sm:$0xff]
        %v605 = vld [vmem:[%s590 + $0x30] sm:$0xff]
        %v606 = vld [vmem:[%s590 + $0x38] sm:$0xff]
        %v607 = vld [vmem:[%s590 + $0x40] sm:$0xff]
        %v608 = vld [vmem:[%s590 + $0x48] sm:$0xff]
        %v609 = vld [vmem:[%s590 + $0x50] sm:$0xff]
        %v610 = vld [vmem:[%s590 + $0x58] sm:$0xff]
        %v611 = vld [vmem:[%s590 + $0x60] sm:$0xff]
        %v612 = vld [vmem:[%s590 + $0x68] sm:$0xff]
        %v613 = vld [vmem:[%s590 + $0x70] sm:$0xff]
        %v614 = vld [vmem:[%s590 + $0x78] sm:$0xff]
        %v615 = vpack.c.bf16 %v600, %v599
        %v616 = vpack.c.bf16 %v602, %v601
        %v617 = vpack.c.bf16 %v604, %v603
        %v618 = vpack.c.bf16 %v606, %v605
        %v619 = vpack.c.bf16 %v608, %v607
        %v620 = vpack.c.bf16 %v610, %v609
        %v621 = vpack.c.bf16 %v612, %v611
        %v622 = vpack.c.bf16 %v614, %v613
        %v623 = vld [vmem:[%s1] sm:$0xf]
        %v624 = vld [vmem:[%s1 + $0x4] sm:$0xf]
        %v625 = vld [vmem:[%s2] sm:$0x1]
        %v627 = vlaneseq
        %v628 = vshrl.u32 %v627, 7
        %v629 = vsub.s32 0, %v628
        %v630 = vrot.slane %v625, %v629
        %v634 = vunpack.c.l.b16 %v623
        %v635 = vunpack.c.l.b16 %v624
        %v636 = vpack.c.b16 %v635, %v634
        %vm638 = vcmask 130048
        %v640 = vsel %vm638, %v615, 0
        %v643 = vsel %vm638, %v616, 0
        %v646 = vsel %vm638, %v617, 0
        %v649 = vsel %vm638, %v618, 0
        %v652 = vsel %vm638, %v619, 0
        %v655 = vsel %vm638, %v620, 0
        %v658 = vsel %vm638, %v621, 0
        %v661 = vsel %vm638, %v622, 0
        %663 = vmatprep.subr.bf16.mxu0 0
        %664 = vmatpush1.bf16.msra.mxu0 0
        %665 = vmatprep.subr.bf16.mxu0 0
        %666 = vmatpush1.bf16.msra.mxu0 0
        %667 = vmatprep.subr.bf16.mxu0 0
        %668 = vmatpush1.bf16.msra.mxu0 0
        %669 = vmatprep.subr.bf16.mxu0 0
        %670 = vmatpush1.bf16.msra.mxu0 0
        %671 = vmatprep.subr.bf16.mxu0 0
        %672 = vmatpush1.bf16.msra.mxu0 0
        %673 = vmatprep.subr.bf16.mxu0 0
        %674 = vmatpush1.bf16.msra.mxu0 0
        %675 = vmatprep.subr.bf16.mxu0 0
        %676 = vmatpush1.bf16.msra.mxu0 0
        %677 = vmatprep.subr.bf16.mxu0 0
        %678 = vmatpush1.bf16.msra.mxu0 %v636
        %679 = vmatprep.subr.bf16.mxu0 0
        %680 = vmatpush2.bf16.msra.mxu0 0
        %681 = vmatprep.subr.bf16.mxu0 0
        %682 = vmatpush2.bf16.msra.mxu0 0
        %683 = vmatprep.subr.bf16.mxu0 0
        %684 = vmatpush2.bf16.msra.mxu0 0
        %685 = vmatprep.subr.bf16.mxu0 0
        %686 = vmatpush2.bf16.msra.mxu0 0
        %687 = vmatprep.subr.bf16.mxu0 0
        %688 = vmatpush2.bf16.msra.mxu0 0
        %689 = vmatprep.subr.bf16.mxu0 0
        %690 = vmatpush2.bf16.msra.mxu0 0
        %691 = vmatprep.subr.bf16.mxu0 0
        %692 = vmatpush2.bf16.msra.mxu0 0
        %693 = vmatprep.subr.bf16.mxu0 0
        %694 = vmatpush2.bf16.msra.mxu0 0
        %695 = vmatprep.mubr.bf16.mxu0 0
        %696 = vmatmul.mubr.bf16.gmra.mxu0 %v640
        %v697 = vpop.f32.mrf.mxu0
        %v698 = vadd.f32 %v630, %v697
        %v699 = vpop.f32.mrf.mxu0
        %v700 = vpop.f32.mrf.mxu0
        %v701 = vadd.f32 %v630, %v700
        %v702 = vpop.f32.mrf.mxu0
        %703 = vmatprep.mubr.bf16.mxu0 0
        %704 = vmatmul.mubr.bf16.gmra.mxu0 %v643
        %v705 = vpop.f32.mrf.mxu0
        %v706 = vadd.f32 %v630, %v705
        %v707 = vpop.f32.mrf.mxu0
        %v708 = vpop.f32.mrf.mxu0
        %v709 = vadd.f32 %v630, %v708
        %v710 = vpop.f32.mrf.mxu0
        %711 = vmatprep.mubr.bf16.mxu0 0
        %712 = vmatmul.mubr.bf16.gmra.mxu0 %v646
        %v713 = vpop.f32.mrf.mxu0
        %v714 = vadd.f32 %v630, %v713
        %v715 = vpop.f32.mrf.mxu0
        %v716 = vpop.f32.mrf.mxu0
        %v717 = vadd.f32 %v630, %v716
        %v718 = vpop.f32.mrf.mxu0
        %719 = vmatprep.mubr.bf16.mxu0 0
        %720 = vmatmul.mubr.bf16.gmra.mxu0 %v649
        %v721 = vpop.f32.mrf.mxu0
        %v722 = vadd.f32 %v630, %v721
        %v723 = vpop.f32.mrf.mxu0
        %v724 = vpop.f32.mrf.mxu0
        %v725 = vadd.f32 %v630, %v724
        %v726 = vpop.f32.mrf.mxu0
        %727 = vmatprep.mubr.bf16.mxu0 0
        %728 = vmatmul.mubr.bf16.gmra.mxu0 %v652
        %v729 = vpop.f32.mrf.mxu0
        %v730 = vadd.f32 %v630, %v729
        %v731 = vpop.f32.mrf.mxu0
        %v732 = vpop.f32.mrf.mxu0
        %v733 = vadd.f32 %v630, %v732
        %v734 = vpop.f32.mrf.mxu0
        %735 = vmatprep.mubr.bf16.mxu0 0
        %736 = vmatmul.mubr.bf16.gmra.mxu0 %v655
        %v737 = vpop.f32.mrf.mxu0
        %v738 = vadd.f32 %v630, %v737
        %v739 = vpop.f32.mrf.mxu0
        %v740 = vpop.f32.mrf.mxu0
        %v741 = vadd.f32 %v630, %v740
        %v742 = vpop.f32.mrf.mxu0
        %743 = vmatprep.mubr.bf16.mxu0 0
        %744 = vmatmul.mubr.bf16.gmra.mxu0 %v658
        %v745 = vpop.f32.mrf.mxu0
        %v746 = vadd.f32 %v630, %v745
        %v747 = vpop.f32.mrf.mxu0
        %v748 = vpop.f32.mrf.mxu0
        %v749 = vadd.f32 %v630, %v748
        %v750 = vpop.f32.mrf.mxu0
        %751 = vmatprep.mubr.bf16.mxu0 0
        %752 = vmatmul.mubr.bf16.gmra.mxu0 %v661
        %v753 = vpop.f32.mrf.mxu0
        %v754 = vadd.f32 %v630, %v753
        %v755 = vpop.f32.mrf.mxu0
        %v756 = vpop.f32.mrf.mxu0
        %v757 = vadd.f32 %v630, %v756
        %v758 = vpop.f32.mrf.mxu0
        %759 = vdwg.mxu0
        %v760 = vxor.u32 %v698, 2147483648
        %v761 = vxor.u32 %v701, 2147483648
        %v762 = vxor.u32 %v706, 2147483648
        %v763 = vxor.u32 %v709, 2147483648
        %v764 = vxor.u32 %v714, 2147483648
        %v765 = vxor.u32 %v717, 2147483648
        %v766 = vxor.u32 %v722, 2147483648
        %v767 = vxor.u32 %v725, 2147483648
        %v768 = vxor.u32 %v730, 2147483648
        %v769 = vxor.u32 %v733, 2147483648
        %v770 = vxor.u32 %v738, 2147483648
        %v771 = vxor.u32 %v741, 2147483648
        %v772 = vxor.u32 %v746, 2147483648
        %v773 = vxor.u32 %v749, 2147483648
        %v774 = vxor.u32 %v754, 2147483648
        %v775 = vxor.u32 %v757, 2147483648
        %v776 = vmul.f32 %v760, 1.442695
        %v777 = vpow.pop %v776
        %v778 = vmul.f32 %v761, 1.442695
        %v779 = vpow.pop %v778
        %v780 = vmul.f32 %v762, 1.442695
        %v781 = vpow.pop %v780
        %v782 = vmul.f32 %v763, 1.442695
        %v783 = vpow.pop %v782
        %v784 = vmul.f32 %v764, 1.442695
        %v785 = vpow.pop %v784
        %v786 = vmul.f32 %v765, 1.442695
        %v787 = vpow.pop %v786
        %v788 = vmul.f32 %v766, 1.442695
        %v789 = vpow.pop %v788
        %v790 = vmul.f32 %v767, 1.442695
        %v791 = vpow.pop %v790
        %v792 = vmul.f32 %v768, 1.442695
        %v793 = vpow.pop %v792
        %v794 = vmul.f32 %v769, 1.442695
        %v795 = vpow.pop %v794
        %v796 = vmul.f32 %v770, 1.442695
        %v797 = vpow.pop %v796
        %v798 = vmul.f32 %v771, 1.442695
        %v799 = vpow.pop %v798
        %v800 = vmul.f32 %v772, 1.442695
        %v801 = vpow.pop %v800
        %v802 = vmul.f32 %v773, 1.442695
        %v803 = vpow.pop %v802
        %v804 = vmul.f32 %v774, 1.442695
        %v805 = vpow.pop %v804
        %v806 = vmul.f32 %v775, 1.442695
        %v807 = vpow.pop %v806
        %v808 = vadd.f32 %v777, 1.0
        %v809 = vadd.f32 %v779, 1.0
        %v810 = vadd.f32 %v781, 1.0
        %v811 = vadd.f32 %v783, 1.0
        %v812 = vadd.f32 %v785, 1.0
        %v813 = vadd.f32 %v787, 1.0
        %v814 = vadd.f32 %v789, 1.0
        %v815 = vadd.f32 %v791, 1.0
        %v816 = vadd.f32 %v793, 1.0
        %v817 = vadd.f32 %v795, 1.0
        %v818 = vadd.f32 %v797, 1.0
        %v819 = vadd.f32 %v799, 1.0
        %v820 = vadd.f32 %v801, 1.0
        %v821 = vadd.f32 %v803, 1.0
        %v822 = vadd.f32 %v805, 1.0
        %v823 = vadd.f32 %v807, 1.0
        %v824 = vrcp.pop %v808
        %v825 = vmul.f32 1.0, %v824
        %v826 = vrcp.pop %v809
        %v827 = vmul.f32 1.0, %v826
        %v828 = vrcp.pop %v810
        %v829 = vmul.f32 1.0, %v828
        %v830 = vrcp.pop %v811
        %v831 = vmul.f32 1.0, %v830
        %v832 = vrcp.pop %v812
        %v833 = vmul.f32 1.0, %v832
        %v834 = vrcp.pop %v813
        %v835 = vmul.f32 1.0, %v834
        %v836 = vrcp.pop %v814
        %v837 = vmul.f32 1.0, %v836
        %v838 = vrcp.pop %v815
        %v839 = vmul.f32 1.0, %v838
        %v840 = vrcp.pop %v816
        %v841 = vmul.f32 1.0, %v840
        %v842 = vrcp.pop %v817
        %v843 = vmul.f32 1.0, %v842
        %v844 = vrcp.pop %v818
        %v845 = vmul.f32 1.0, %v844
        %v846 = vrcp.pop %v819
        %v847 = vmul.f32 1.0, %v846
        %v848 = vrcp.pop %v820
        %v849 = vmul.f32 1.0, %v848
        %v850 = vrcp.pop %v821
        %v851 = vmul.f32 1.0, %v850
        %v852 = vrcp.pop %v822
        %v853 = vmul.f32 1.0, %v852
        %v854 = vrcp.pop %v823
        %v855 = vmul.f32 1.0, %v854
        %v856 = vmul.f32 %v599, %v825
        %v857 = vmul.f32 %v600, %v827
        %v858 = vmul.f32 %v601, %v829
        %v859 = vmul.f32 %v602, %v831
        %v860 = vmul.f32 %v603, %v833
        %v861 = vmul.f32 %v604, %v835
        %v862 = vmul.f32 %v605, %v837
        %v863 = vmul.f32 %v606, %v839
        %v864 = vmul.f32 %v607, %v841
        %v865 = vmul.f32 %v608, %v843
        %v866 = vmul.f32 %v609, %v845
        %v867 = vmul.f32 %v610, %v847
        %v868 = vmul.f32 %v611, %v849
        %v869 = vmul.f32 %v612, %v851
        %v870 = vmul.f32 %v613, %v853
        %v871 = vmul.f32 %v614, %v855
        %v872 = vld [vmem:[%s3] sm:$0x1]
        %874 = vset.pattern.permute.xlu0 7
        %875 = vperm.xlu0 %874, %v856
        %v876 = vpop.permute.xlu0 %875
        %879 = vset.pattern.permute.xlu0 7
        %880 = vperm.xlu0 %879, %v857
        %v881 = vpop.permute.xlu0 %880
        %884 = vset.pattern.permute.xlu0 7
        %885 = vperm.xlu0 %884, %v858
        %v886 = vpop.permute.xlu0 %885
        %889 = vset.pattern.permute.xlu0 7
        %890 = vperm.xlu0 %889, %v859
        %v891 = vpop.permute.xlu0 %890
        %894 = vset.pattern.permute.xlu0 7
        %895 = vperm.xlu0 %894, %v860
        %v896 = vpop.permute.xlu0 %895
        %899 = vset.pattern.permute.xlu0 7
        %900 = vperm.xlu0 %899, %v861
        %v901 = vpop.permute.xlu0 %900
        %904 = vset.pattern.permute.xlu0 7
        %905 = vperm.xlu0 %904, %v862
        %v906 = vpop.permute.xlu0 %905
        %909 = vset.pattern.permute.xlu0 7
        %910 = vperm.xlu0 %909, %v863
        %v911 = vpop.permute.xlu0 %910
        %914 = vset.pattern.permute.xlu0 7
        %915 = vperm.xlu0 %914, %v864
        %v916 = vpop.permute.xlu0 %915
        %919 = vset.pattern.permute.xlu0 7
        %920 = vperm.xlu0 %919, %v865
        %v921 = vpop.permute.xlu0 %920
        %924 = vset.pattern.permute.xlu0 7
        %925 = vperm.xlu0 %924, %v866
        %v926 = vpop.permute.xlu0 %925
        %929 = vset.pattern.permute.xlu0 7
        %930 = vperm.xlu0 %929, %v867
        %v931 = vpop.permute.xlu0 %930
        %934 = vset.pattern.permute.xlu0 7
        %935 = vperm.xlu0 %934, %v868
        %v936 = vpop.permute.xlu0 %935
        %939 = vset.pattern.permute.xlu0 7
        %940 = vperm.xlu0 %939, %v869
        %v941 = vpop.permute.xlu0 %940
        %944 = vset.pattern.permute.xlu0 7
        %945 = vperm.xlu0 %944, %v870
        %v946 = vpop.permute.xlu0 %945
        %949 = vset.pattern.permute.xlu0 7
        %950 = vperm.xlu0 %949, %v871
        %v951 = vpop.permute.xlu0 %950
        %v954 = vlaneseq
        %v955 = vshrl.u32 %v954, 7
        %v956 = vsub.s32 0, %v955
        %v957 = vrot.slane %v872, %v956
        %v959 = vmul.f32 %v876, %v957
        %v960 = vmul.f32 %v881, %v957
        %v961 = vmul.f32 %v886, %v957
        %v962 = vmul.f32 %v891, %v957
        %v963 = vmul.f32 %v896, %v957
        %v964 = vmul.f32 %v901, %v957
        %v965 = vmul.f32 %v906, %v957
        %v966 = vmul.f32 %v911, %v957
        %v967 = vmul.f32 %v916, %v957
        %v968 = vmul.f32 %v921, %v957
        %v969 = vmul.f32 %v926, %v957
        %v970 = vmul.f32 %v931, %v957
        %v971 = vmul.f32 %v936, %v957
        %v972 = vmul.f32 %v941, %v957
        %v973 = vmul.f32 %v946, %v957
        %v974 = vmul.f32 %v951, %v957
        %v975 = vld [vmem:[%s4] sm:$0x1]
        %976 = vset.pattern.permute.xlu0 6
        %977 = vperm.xlu0 %976, %v856
        %v978 = vpop.permute.xlu0 %977
        %980 = vset.pattern.permute.xlu0 6
        %981 = vperm.xlu0 %980, %v857
        %v982 = vpop.permute.xlu0 %981
        %984 = vset.pattern.permute.xlu0 6
        %985 = vperm.xlu0 %984, %v858
        %v986 = vpop.permute.xlu0 %985
        %988 = vset.pattern.permute.xlu0 6
        %989 = vperm.xlu0 %988, %v859
        %v990 = vpop.permute.xlu0 %989
        %992 = vset.pattern.permute.xlu0 6
        %993 = vperm.xlu0 %992, %v860
        %v994 = vpop.permute.xlu0 %993
        %996 = vset.pattern.permute.xlu0 6
        %997 = vperm.xlu0 %996, %v861
        %v998 = vpop.permute.xlu0 %997
        %1000 = vset.pattern.permute.xlu0 6
        %1001 = vperm.xlu0 %1000, %v862
        %v1002 = vpop.permute.xlu0 %1001
        %1004 = vset.pattern.permute.xlu0 6
        %1005 = vperm.xlu0 %1004, %v863
        %v1006 = vpop.permute.xlu0 %1005
        %1008 = vset.pattern.permute.xlu0 6
        %1009 = vperm.xlu0 %1008, %v864
        %v1010 = vpop.permute.xlu0 %1009
        %1012 = vset.pattern.permute.xlu0 6
        %1013 = vperm.xlu0 %1012, %v865
        %v1014 = vpop.permute.xlu0 %1013
        %1016 = vset.pattern.permute.xlu0 6
        %1017 = vperm.xlu0 %1016, %v866
        %v1018 = vpop.permute.xlu0 %1017
        %1020 = vset.pattern.permute.xlu0 6
        %1021 = vperm.xlu0 %1020, %v867
        %v1022 = vpop.permute.xlu0 %1021
        %1024 = vset.pattern.permute.xlu0 6
        %1025 = vperm.xlu0 %1024, %v868
        %v1026 = vpop.permute.xlu0 %1025
        %1028 = vset.pattern.permute.xlu0 6
        %1029 = vperm.xlu0 %1028, %v869
        %v1030 = vpop.permute.xlu0 %1029
        %1032 = vset.pattern.permute.xlu0 6
        %1033 = vperm.xlu0 %1032, %v870
        %v1034 = vpop.permute.xlu0 %1033
        %1036 = vset.pattern.permute.xlu0 6
        %1037 = vperm.xlu0 %1036, %v871
        %v1038 = vpop.permute.xlu0 %1037
        %v1041 = vlaneseq
        %v1042 = vshrl.u32 %v1041, 7
        %v1043 = vsub.s32 0, %v1042
        %v1044 = vrot.slane %v975, %v1043
        %v1046 = vmul.f32 %v978, %v1044
        %v1047 = vmul.f32 %v982, %v1044
        %v1048 = vmul.f32 %v986, %v1044
        %v1049 = vmul.f32 %v990, %v1044
        %v1050 = vmul.f32 %v994, %v1044
        %v1051 = vmul.f32 %v998, %v1044
        %v1052 = vmul.f32 %v1002, %v1044
        %v1053 = vmul.f32 %v1006, %v1044
        %v1054 = vmul.f32 %v1010, %v1044
        %v1055 = vmul.f32 %v1014, %v1044
        %v1056 = vmul.f32 %v1018, %v1044
        %v1057 = vmul.f32 %v1022, %v1044
        %v1058 = vmul.f32 %v1026, %v1044
        %v1059 = vmul.f32 %v1030, %v1044
        %v1060 = vmul.f32 %v1034, %v1044
        %v1061 = vmul.f32 %v1038, %v1044
        %v1062 = vadd.f32 %v959, %v1046
        %v1063 = vadd.f32 %v960, %v1047
        %v1064 = vadd.f32 %v961, %v1048
        %v1065 = vadd.f32 %v962, %v1049
        %v1066 = vadd.f32 %v963, %v1050
        %v1067 = vadd.f32 %v964, %v1051
        %v1068 = vadd.f32 %v965, %v1052
        %v1069 = vadd.f32 %v966, %v1053
        %v1070 = vadd.f32 %v967, %v1054
        %v1071 = vadd.f32 %v968, %v1055
        %v1072 = vadd.f32 %v969, %v1056
        %v1073 = vadd.f32 %v970, %v1057
        %v1074 = vadd.f32 %v971, %v1058
        %v1075 = vadd.f32 %v972, %v1059
        %v1076 = vadd.f32 %v973, %v1060
        %v1077 = vadd.f32 %v974, %v1061
        %v1078 = vld [vmem:[%s5] sm:$0x1]
        %v1080 = vlaneseq
        %v1081 = vshrl.u32 %v1080, 7
        %v1082 = vsub.s32 0, %v1081
        %v1083 = vrot.slane %v1078, %v1082
        %v1085 = vadd.f32 %v1062, %v1083
        %v1086 = vadd.f32 %v1063, %v1083
        %v1087 = vadd.f32 %v1064, %v1083
        %v1088 = vadd.f32 %v1065, %v1083
        %v1089 = vadd.f32 %v1066, %v1083
        %v1090 = vadd.f32 %v1067, %v1083
        %v1091 = vadd.f32 %v1068, %v1083
        %v1092 = vadd.f32 %v1069, %v1083
        %v1093 = vadd.f32 %v1070, %v1083
        %v1094 = vadd.f32 %v1071, %v1083
        %v1095 = vadd.f32 %v1072, %v1083
        %v1096 = vadd.f32 %v1073, %v1083
        %v1097 = vadd.f32 %v1074, %v1083
        %v1098 = vadd.f32 %v1075, %v1083
        %v1099 = vadd.f32 %v1076, %v1083
        %v1100 = vadd.f32 %v1077, %v1083
        %vm1101 = vcmp.ge.f32.partialorder %v1085, 0.0
        %vm1102 = vcmp.ge.f32.partialorder %v1086, 0.0
        %vm1103 = vcmp.ge.f32.partialorder %v1087, 0.0
        %vm1104 = vcmp.ge.f32.partialorder %v1088, 0.0
        %vm1105 = vcmp.ge.f32.partialorder %v1089, 0.0
        %vm1106 = vcmp.ge.f32.partialorder %v1090, 0.0
        %vm1107 = vcmp.ge.f32.partialorder %v1091, 0.0
        %vm1108 = vcmp.ge.f32.partialorder %v1092, 0.0
        %vm1109 = vcmp.ge.f32.partialorder %v1093, 0.0
        %vm1110 = vcmp.ge.f32.partialorder %v1094, 0.0
        %vm1111 = vcmp.ge.f32.partialorder %v1095, 0.0
        %vm1112 = vcmp.ge.f32.partialorder %v1096, 0.0
        %vm1113 = vcmp.ge.f32.partialorder %v1097, 0.0
        %vm1114 = vcmp.ge.f32.partialorder %v1098, 0.0
        %vm1115 = vcmp.ge.f32.partialorder %v1099, 0.0
        %vm1116 = vcmp.ge.f32.partialorder %v1100, 0.0
        %v1117 = vmul.f32 %v1085, 0.1
        %v1118 = vmul.f32 %v1086, 0.1
        %v1119 = vmul.f32 %v1087, 0.1
        %v1120 = vmul.f32 %v1088, 0.1
        %v1121 = vmul.f32 %v1089, 0.1
        %v1122 = vmul.f32 %v1090, 0.1
        %v1123 = vmul.f32 %v1091, 0.1
        %v1124 = vmul.f32 %v1092, 0.1
        %v1125 = vmul.f32 %v1093, 0.1
        %v1126 = vmul.f32 %v1094, 0.1
        %v1127 = vmul.f32 %v1095, 0.1
        %v1128 = vmul.f32 %v1096, 0.1
        %v1129 = vmul.f32 %v1097, 0.1
        %v1130 = vmul.f32 %v1098, 0.1
        %v1131 = vmul.f32 %v1099, 0.1
        %v1132 = vmul.f32 %v1100, 0.1
        %v1133 = vsel %vm1101, %v1085, %v1117
        %v1134 = vsel %vm1102, %v1086, %v1118
        %v1135 = vsel %vm1103, %v1087, %v1119
        %v1136 = vsel %vm1104, %v1088, %v1120
        %v1137 = vsel %vm1105, %v1089, %v1121
        %v1138 = vsel %vm1106, %v1090, %v1122
        %v1139 = vsel %vm1107, %v1091, %v1123
        %v1140 = vsel %vm1108, %v1092, %v1124
        %v1141 = vsel %vm1109, %v1093, %v1125
        %v1142 = vsel %vm1110, %v1094, %v1126
        %v1143 = vsel %vm1111, %v1095, %v1127
        %v1144 = vsel %vm1112, %v1096, %v1128
        %v1145 = vsel %vm1113, %v1097, %v1129
        %v1146 = vsel %vm1114, %v1098, %v1130
        %v1147 = vsel %vm1115, %v1099, %v1131
        %v1148 = vsel %vm1116, %v1100, %v1132
        %v1149 = vpack.c.bf16 %v857, %v856
        %v1150 = vpack.c.bf16 %v859, %v858
        %v1151 = vpack.c.bf16 %v861, %v860
        %v1152 = vpack.c.bf16 %v863, %v862
        %v1153 = vpack.c.bf16 %v865, %v864
        %v1154 = vpack.c.bf16 %v867, %v866
        %v1155 = vpack.c.bf16 %v869, %v868
        %v1156 = vpack.c.bf16 %v871, %v870
        %v1157 = vld [vmem:[#allocation5] sm:$0xff]
        %v1158 = vld [vmem:[#allocation5 + $0x8] sm:$0xff]
        %v1159 = vld [vmem:[#allocation5 + $0x10] sm:$0xff]
        %v1160 = vld [vmem:[#allocation5 + $0x18] sm:$0xff]
        %v1161 = vld [vmem:[#allocation5 + $0x20] sm:$0xff]
        %v1162 = vld [vmem:[#allocation5 + $0x28] sm:$0xff]
        %v1163 = vld [vmem:[%s8] sm:$0x3f]
        %v1165 = vlaneseq
        %v1166 = vshrl.u32 %v1165, 7
        %v1167 = vsub.s32 0, %v1166
        %v1168 = vrot.slane %v1163, %v1167
        %v1169 = vlaneseq
        %v1170 = vshrl.u32 %v1169, 7
        %v1171 = vsub.s32 1, %v1170
        %v1172 = vrot.slane %v1163, %v1171
        %v1173 = vlaneseq
        %v1174 = vshrl.u32 %v1173, 7
        %v1175 = vsub.s32 2, %v1174
        %v1176 = vrot.slane %v1163, %v1175
        %v1177 = vlaneseq
        %v1178 = vshrl.u32 %v1177, 7
        %v1179 = vsub.s32 3, %v1178
        %v1180 = vrot.slane %v1163, %v1179
        %v1181 = vlaneseq
        %v1182 = vshrl.u32 %v1181, 7
        %v1183 = vsub.s32 4, %v1182
        %v1184 = vrot.slane %v1163, %v1183
        %v1185 = vlaneseq
        %v1186 = vshrl.u32 %v1185, 7
        %v1187 = vsub.s32 5, %v1186
        %v1188 = vrot.slane %v1163, %v1187
        %v1201 = vunpack.c.l.b16 %v1157
        %v1202 = vunpack.c.h.b16 %v1157
        %v1203 = vunpack.c.l.b16 %v1158
        %v1204 = vunpack.c.h.b16 %v1158
        %v1205 = vunpack.c.l.b16 %v1159
        %v1206 = vunpack.c.h.b16 %v1159
        %v1207 = vunpack.c.l.b16 %v1160
        %v1208 = vunpack.c.h.b16 %v1160
        %v1209 = vunpack.c.l.b16 %v1161
        %v1210 = vunpack.c.h.b16 %v1161
        %v1211 = vunpack.c.l.b16 %v1162
        %v1212 = vunpack.c.h.b16 %v1162
        %v1213 = vpack.c.b16 %v1207, %v1201
        %v1214 = vpack.c.b16 %v1208, %v1202
        %v1215 = vpack.c.b16 %v1209, %v1203
        %v1216 = vpack.c.b16 %v1210, %v1204
        %v1217 = vpack.c.b16 %v1211, %v1205
        %v1218 = vpack.c.b16 %v1212, %v1206
        %v1226 = vsel %vm638, %v1149, 0
        %v1229 = vsel %vm638, %v1150, 0
        %v1232 = vsel %vm638, %v1151, 0
        %v1235 = vsel %vm638, %v1152, 0
        %v1238 = vsel %vm638, %v1153, 0
        %v1241 = vsel %vm638, %v1154, 0
        %v1244 = vsel %vm638, %v1155, 0
        %v1247 = vsel %vm638, %v1156, 0
        %1249 = vmatprep.subr.bf16.mxu0 0
        %1250 = vmatpush1.bf16.msra.mxu0 0
        %1251 = vmatprep.subr.bf16.mxu0 0
        %1252 = vmatpush1.bf16.msra.mxu0 0
        %1253 = vmatprep.subr.bf16.mxu0 0
        %1254 = vmatpush1.bf16.msra.mxu0 0
        %1255 = vmatprep.subr.bf16.mxu0 0
        %1256 = vmatpush1.bf16.msra.mxu0 0
        %1257 = vmatprep.subr.bf16.mxu0 0
        %1258 = vmatpush1.bf16.msra.mxu0 0
        %1259 = vmatprep.subr.bf16.mxu0 0
        %1260 = vmatpush1.bf16.msra.mxu0 0
        %1261 = vmatprep.subr.bf16.mxu0 0
        %1262 = vmatpush1.bf16.msra.mxu0 0
        %1263 = vmatprep.subr.bf16.mxu0 %v1214
        %1264 = vmatpush1.bf16.msra.mxu0 %v1213
        %1265 = vmatprep.subr.bf16.mxu0 0
        %1266 = vmatpush2.bf16.msra.mxu0 0
        %1267 = vmatprep.subr.bf16.mxu0 0
        %1268 = vmatpush2.bf16.msra.mxu0 0
        %1269 = vmatprep.subr.bf16.mxu0 0
        %1270 = vmatpush2.bf16.msra.mxu0 0
        %1271 = vmatprep.subr.bf16.mxu0 0
        %1272 = vmatpush2.bf16.msra.mxu0 0
        %1273 = vmatprep.subr.bf16.mxu0 0
        %1274 = vmatpush2.bf16.msra.mxu0 0
        %1275 = vmatprep.subr.bf16.mxu0 0
        %1276 = vmatpush2.bf16.msra.mxu0 0
        %1277 = vmatprep.subr.bf16.mxu0 0
        %1278 = vmatpush2.bf16.msra.mxu0 0
        %1279 = vmatprep.subr.bf16.mxu0 0
        %1280 = vmatpush2.bf16.msra.mxu0 0
        %1281 = vmatprep.mubr.bf16.mxu0 0
        %1282 = vmatmul.mubr.bf16.gmra.mxu0 %v1226
        %v1283 = vpop.f32.mrf.mxu0
        %v1284 = vadd.f32 %v1168, %v1283
        %v1285 = vpop.f32.mrf.mxu0
        %v1286 = vadd.f32 %v1172, %v1285
        %v1287 = vpop.f32.mrf.mxu0
        %v1288 = vadd.f32 %v1168, %v1287
        %v1289 = vpop.f32.mrf.mxu0
        %v1290 = vadd.f32 %v1172, %v1289
        %1291 = vmatprep.mubr.bf16.mxu0 0
        %1292 = vmatmul.mubr.bf16.gmra.mxu0 %v1229
        %v1293 = vpop.f32.mrf.mxu0
        %v1294 = vadd.f32 %v1168, %v1293
        %v1295 = vpop.f32.mrf.mxu0
        %v1296 = vadd.f32 %v1172, %v1295
        %v1297 = vpop.f32.mrf.mxu0
        %v1298 = vadd.f32 %v1168, %v1297
        %v1299 = vpop.f32.mrf.mxu0
        %v1300 = vadd.f32 %v1172, %v1299
        %1301 = vmatprep.mubr.bf16.mxu0 0
        %1302 = vmatmul.mubr.bf16.gmra.mxu0 %v1232
        %v1303 = vpop.f32.mrf.mxu0
        %v1304 = vadd.f32 %v1168, %v1303
        %v1305 = vpop.f32.mrf.mxu0
        %v1306 = vadd.f32 %v1172, %v1305
        %v1307 = vpop.f32.mrf.mxu0
        %v1308 = vadd.f32 %v1168, %v1307
        %v1309 = vpop.f32.mrf.mxu0
        %v1310 = vadd.f32 %v1172, %v1309
        %1311 = vmatprep.mubr.bf16.mxu0 0
        %1312 = vmatmul.mubr.bf16.gmra.mxu0 %v1235
        %v1313 = vpop.f32.mrf.mxu0
        %v1314 = vadd.f32 %v1168, %v1313
        %v1315 = vpop.f32.mrf.mxu0
        %v1316 = vadd.f32 %v1172, %v1315
        %v1317 = vpop.f32.mrf.mxu0
        %v1318 = vadd.f32 %v1168, %v1317
        %v1319 = vpop.f32.mrf.mxu0
        %v1320 = vadd.f32 %v1172, %v1319
        %1321 = vmatprep.mubr.bf16.mxu0 0
        %1322 = vmatmul.mubr.bf16.gmra.mxu0 %v1238
        %v1323 = vpop.f32.mrf.mxu0
        %v1324 = vadd.f32 %v1168, %v1323
        %v1325 = vpop.f32.mrf.mxu0
        %v1326 = vadd.f32 %v1172, %v1325
        %v1327 = vpop.f32.mrf.mxu0
        %v1328 = vadd.f32 %v1168, %v1327
        %v1329 = vpop.f32.mrf.mxu0
        %v1330 = vadd.f32 %v1172, %v1329
        %1331 = vmatprep.mubr.bf16.mxu0 0
        %1332 = vmatmul.mubr.bf16.gmra.mxu0 %v1241
        %v1333 = vpop.f32.mrf.mxu0
        %v1334 = vadd.f32 %v1168, %v1333
        %v1335 = vpop.f32.mrf.mxu0
        %v1336 = vadd.f32 %v1172, %v1335
        %v1337 = vpop.f32.mrf.mxu0
        %v1338 = vadd.f32 %v1168, %v1337
        %v1339 = vpop.f32.mrf.mxu0
        %v1340 = vadd.f32 %v1172, %v1339
        %1341 = vmatprep.mubr.bf16.mxu0 0
        %1342 = vmatmul.mubr.bf16.gmra.mxu0 %v1244
        %v1343 = vpop.f32.mrf.mxu0
        %v1344 = vadd.f32 %v1168, %v1343
        %v1345 = vpop.f32.mrf.mxu0
        %v1346 = vadd.f32 %v1172, %v1345
        %v1347 = vpop.f32.mrf.mxu0
        %v1348 = vadd.f32 %v1168, %v1347
        %v1349 = vpop.f32.mrf.mxu0
        %v1350 = vadd.f32 %v1172, %v1349
        %1351 = vmatprep.mubr.bf16.mxu0 0
        %1352 = vmatmul.mubr.bf16.gmra.mxu0 %v1247
        %v1353 = vpop.f32.mrf.mxu0
        %v1354 = vadd.f32 %v1168, %v1353
        %v1355 = vpop.f32.mrf.mxu0
        %v1356 = vadd.f32 %v1172, %v1355
        %v1357 = vpop.f32.mrf.mxu0
        %v1358 = vadd.f32 %v1168, %v1357
        %v1359 = vpop.f32.mrf.mxu0
        %v1360 = vadd.f32 %v1172, %v1359
        %1361 = vdwg.mxu0
        %1362 = vmatprep.subr.bf16.mxu0 0
        %1363 = vmatpush1.bf16.msra.mxu0 0
        %1364 = vmatprep.subr.bf16.mxu0 0
        %1365 = vmatpush1.bf16.msra.mxu0 0
        %1366 = vmatprep.subr.bf16.mxu0 0
        %1367 = vmatpush1.bf16.msra.mxu0 0
        %1368 = vmatprep.subr.bf16.mxu0 0
        %1369 = vmatpush1.bf16.msra.mxu0 0
        %1370 = vmatprep.subr.bf16.mxu0 0
        %1371 = vmatpush1.bf16.msra.mxu0 0
        %1372 = vmatprep.subr.bf16.mxu0 0
        %1373 = vmatpush1.bf16.msra.mxu0 0
        %1374 = vmatprep.subr.bf16.mxu0 0
        %1375 = vmatpush1.bf16.msra.mxu0 0
        %1376 = vmatprep.subr.bf16.mxu0 %v1216
        %1377 = vmatpush1.bf16.msra.mxu0 %v1215
        %1378 = vmatprep.subr.bf16.mxu0 0
        %1379 = vmatpush2.bf16.msra.mxu0 0
        %1380 = vmatprep.subr.bf16.mxu0 0
        %1381 = vmatpush2.bf16.msra.mxu0 0
        %1382 = vmatprep.subr.bf16.mxu0 0
        %1383 = vmatpush2.bf16.msra.mxu0 0
        %1384 = vmatprep.subr.bf16.mxu0 0
        %1385 = vmatpush2.bf16.msra.mxu0 0
        %1386 = vmatprep.subr.bf16.mxu0 0
        %1387 = vmatpush2.bf16.msra.mxu0 0
        %1388 = vmatprep.subr.bf16.mxu0 0
        %1389 = vmatpush2.bf16.msra.mxu0 0
        %1390 = vmatprep.subr.bf16.mxu0 0
        %1391 = vmatpush2.bf16.msra.mxu0 0
        %1392 = vmatprep.subr.bf16.mxu0 0
        %1393 = vmatpush2.bf16.msra.mxu0 0
        %1394 = vmatprep.mubr.bf16.mxu0 0
        %1395 = vmatmul.mubr.bf16.gmra.mxu0 %v1226
        %v1396 = vpop.f32.mrf.mxu0
        %v1397 = vadd.f32 %v1176, %v1396
        %v1398 = vpop.f32.mrf.mxu0
        %v1399 = vadd.f32 %v1180, %v1398
        %v1400 = vpop.f32.mrf.mxu0
        %v1401 = vadd.f32 %v1176, %v1400
        %v1402 = vpop.f32.mrf.mxu0
        %v1403 = vadd.f32 %v1180, %v1402
        %1404 = vmatprep.mubr.bf16.mxu0 0
        %1405 = vmatmul.mubr.bf16.gmra.mxu0 %v1229
        %v1406 = vpop.f32.mrf.mxu0
        %v1407 = vadd.f32 %v1176, %v1406
        %v1408 = vpop.f32.mrf.mxu0
        %v1409 = vadd.f32 %v1180, %v1408
        %v1410 = vpop.f32.mrf.mxu0
        %v1411 = vadd.f32 %v1176, %v1410
        %v1412 = vpop.f32.mrf.mxu0
        %v1413 = vadd.f32 %v1180, %v1412
        %1414 = vmatprep.mubr.bf16.mxu0 0
        %1415 = vmatmul.mubr.bf16.gmra.mxu0 %v1232
        %v1416 = vpop.f32.mrf.mxu0
        %v1417 = vadd.f32 %v1176, %v1416
        %v1418 = vpop.f32.mrf.mxu0
        %v1419 = vadd.f32 %v1180, %v1418
        %v1420 = vpop.f32.mrf.mxu0
        %v1421 = vadd.f32 %v1176, %v1420
        %v1422 = vpop.f32.mrf.mxu0
        %v1423 = vadd.f32 %v1180, %v1422
        %1424 = vmatprep.mubr.bf16.mxu0 0
        %1425 = vmatmul.mubr.bf16.gmra.mxu0 %v1235
        %v1426 = vpop.f32.mrf.mxu0
        %v1427 = vadd.f32 %v1176, %v1426
        %v1428 = vpop.f32.mrf.mxu0
        %v1429 = vadd.f32 %v1180, %v1428
        %v1430 = vpop.f32.mrf.mxu0
        %v1431 = vadd.f32 %v1176, %v1430
        %v1432 = vpop.f32.mrf.mxu0
        %v1433 = vadd.f32 %v1180, %v1432
        %1434 = vmatprep.mubr.bf16.mxu0 0
        %1435 = vmatmul.mubr.bf16.gmra.mxu0 %v1238
        %v1436 = vpop.f32.mrf.mxu0
        %v1437 = vadd.f32 %v1176, %v1436
        %v1438 = vpop.f32.mrf.mxu0
        %v1439 = vadd.f32 %v1180, %v1438
        %v1440 = vpop.f32.mrf.mxu0
        %v1441 = vadd.f32 %v1176, %v1440
        %v1442 = vpop.f32.mrf.mxu0
        %v1443 = vadd.f32 %v1180, %v1442
        %1444 = vmatprep.mubr.bf16.mxu0 0
        %1445 = vmatmul.mubr.bf16.gmra.mxu0 %v1241
        %v1446 = vpop.f32.mrf.mxu0
        %v1447 = vadd.f32 %v1176, %v1446
        %v1448 = vpop.f32.mrf.mxu0
        %v1449 = vadd.f32 %v1180, %v1448
        %v1450 = vpop.f32.mrf.mxu0
        %v1451 = vadd.f32 %v1176, %v1450
        %v1452 = vpop.f32.mrf.mxu0
        %v1453 = vadd.f32 %v1180, %v1452
        %1454 = vmatprep.mubr.bf16.mxu0 0
        %1455 = vmatmul.mubr.bf16.gmra.mxu0 %v1244
        %v1456 = vpop.f32.mrf.mxu0
        %v1457 = vadd.f32 %v1176, %v1456
        %v1458 = vpop.f32.mrf.mxu0
        %v1459 = vadd.f32 %v1180, %v1458
        %v1460 = vpop.f32.mrf.mxu0
        %v1461 = vadd.f32 %v1176, %v1460
        %v1462 = vpop.f32.mrf.mxu0
        %v1463 = vadd.f32 %v1180, %v1462
        %1464 = vmatprep.mubr.bf16.mxu0 0
        %1465 = vmatmul.mubr.bf16.gmra.mxu0 %v1247
        %v1466 = vpop.f32.mrf.mxu0
        %v1467 = vadd.f32 %v1176, %v1466
        %v1468 = vpop.f32.mrf.mxu0
        %v1469 = vadd.f32 %v1180, %v1468
        %v1470 = vpop.f32.mrf.mxu0
        %v1471 = vadd.f32 %v1176, %v1470
        %v1472 = vpop.f32.mrf.mxu0
        %v1473 = vadd.f32 %v1180, %v1472
        %1474 = vdwg.mxu0
        %1475 = vmatprep.subr.bf16.mxu0 0
        %1476 = vmatpush1.bf16.msra.mxu0 0
        %1477 = vmatprep.subr.bf16.mxu0 0
        %1478 = vmatpush1.bf16.msra.mxu0 0
        %1479 = vmatprep.subr.bf16.mxu0 0
        %1480 = vmatpush1.bf16.msra.mxu0 0
        %1481 = vmatprep.subr.bf16.mxu0 0
        %1482 = vmatpush1.bf16.msra.mxu0 0
        %1483 = vmatprep.subr.bf16.mxu0 0
        %1484 = vmatpush1.bf16.msra.mxu0 0
        %1485 = vmatprep.subr.bf16.mxu0 0
        %1486 = vmatpush1.bf16.msra.mxu0 0
        %1487 = vmatprep.subr.bf16.mxu0 0
        %1488 = vmatpush1.bf16.msra.mxu0 0
        %1489 = vmatprep.subr.bf16.mxu0 %v1218
        %1490 = vmatpush1.bf16.msra.mxu0 %v1217
        %1491 = vmatprep.subr.bf16.mxu0 0
        %1492 = vmatpush2.bf16.msra.mxu0 0
        %1493 = vmatprep.subr.bf16.mxu0 0
        %1494 = vmatpush2.bf16.msra.mxu0 0
        %1495 = vmatprep.subr.bf16.mxu0 0
        %1496 = vmatpush2.bf16.msra.mxu0 0
        %1497 = vmatprep.subr.bf16.mxu0 0
        %1498 = vmatpush2.bf16.msra.mxu0 0
        %1499 = vmatprep.subr.bf16.mxu0 0
        %1500 = vmatpush2.bf16.msra.mxu0 0
        %1501 = vmatprep.subr.bf16.mxu0 0
        %1502 = vmatpush2.bf16.msra.mxu0 0
        %1503 = vmatprep.subr.bf16.mxu0 0
        %1504 = vmatpush2.bf16.msra.mxu0 0
        %1505 = vmatprep.subr.bf16.mxu0 0
        %1506 = vmatpush2.bf16.msra.mxu0 0
        %1507 = vmatprep.mubr.bf16.mxu0 0
        %1508 = vmatmul.mubr.bf16.gmra.mxu0 %v1226
        %v1509 = vpop.f32.mrf.mxu0
        %v1510 = vadd.f32 %v1184, %v1509
        %v1511 = vpop.f32.mrf.mxu0
        %v1512 = vadd.f32 %v1188, %v1511
        %v1513 = vpop.f32.mrf.mxu0
        %v1514 = vadd.f32 %v1184, %v1513
        %v1515 = vpop.f32.mrf.mxu0
        %v1516 = vadd.f32 %v1188, %v1515
        %1517 = vmatprep.mubr.bf16.mxu0 0
        %1518 = vmatmul.mubr.bf16.gmra.mxu0 %v1229
        %v1519 = vpop.f32.mrf.mxu0
        %v1520 = vadd.f32 %v1184, %v1519
        %v1521 = vpop.f32.mrf.mxu0
        %v1522 = vadd.f32 %v1188, %v1521
        %v1523 = vpop.f32.mrf.mxu0
        %v1524 = vadd.f32 %v1184, %v1523
        %v1525 = vpop.f32.mrf.mxu0
        %v1526 = vadd.f32 %v1188, %v1525
        %1527 = vmatprep.mubr.bf16.mxu0 0
        %1528 = vmatmul.mubr.bf16.gmra.mxu0 %v1232
        %v1529 = vpop.f32.mrf.mxu0
        %v1530 = vadd.f32 %v1184, %v1529
        %v1531 = vpop.f32.mrf.mxu0
        %v1532 = vadd.f32 %v1188, %v1531
        %v1533 = vpop.f32.mrf.mxu0
        %v1534 = vadd.f32 %v1184, %v1533
        %v1535 = vpop.f32.mrf.mxu0
        %v1536 = vadd.f32 %v1188, %v1535
        %1537 = vmatprep.mubr.bf16.mxu0 0
        %1538 = vmatmul.mubr.bf16.gmra.mxu0 %v1235
        %v1539 = vpop.f32.mrf.mxu0
        %v1540 = vadd.f32 %v1184, %v1539
        %v1541 = vpop.f32.mrf.mxu0
        %v1542 = vadd.f32 %v1188, %v1541
        %v1543 = vpop.f32.mrf.mxu0
        %v1544 = vadd.f32 %v1184, %v1543
        %v1545 = vpop.f32.mrf.mxu0
        %v1546 = vadd.f32 %v1188, %v1545
        %1547 = vmatprep.mubr.bf16.mxu0 0
        %1548 = vmatmul.mubr.bf16.gmra.mxu0 %v1238
        %v1549 = vpop.f32.mrf.mxu0
        %v1550 = vadd.f32 %v1184, %v1549
        %v1551 = vpop.f32.mrf.mxu0
        %v1552 = vadd.f32 %v1188, %v1551
        %v1553 = vpop.f32.mrf.mxu0
        %v1554 = vadd.f32 %v1184, %v1553
        %v1555 = vpop.f32.mrf.mxu0
        %v1556 = vadd.f32 %v1188, %v1555
        %1557 = vmatprep.mubr.bf16.mxu0 0
        %1558 = vmatmul.mubr.bf16.gmra.mxu0 %v1241
        %v1559 = vpop.f32.mrf.mxu0
        %v1560 = vadd.f32 %v1184, %v1559
        %v1561 = vpop.f32.mrf.mxu0
        %v1562 = vadd.f32 %v1188, %v1561
        %v1563 = vpop.f32.mrf.mxu0
        %v1564 = vadd.f32 %v1184, %v1563
        %v1565 = vpop.f32.mrf.mxu0
        %v1566 = vadd.f32 %v1188, %v1565
        %1567 = vmatprep.mubr.bf16.mxu0 0
        %1568 = vmatmul.mubr.bf16.gmra.mxu0 %v1244
        %v1569 = vpop.f32.mrf.mxu0
        %v1570 = vadd.f32 %v1184, %v1569
        %v1571 = vpop.f32.mrf.mxu0
        %v1572 = vadd.f32 %v1188, %v1571
        %v1573 = vpop.f32.mrf.mxu0
        %v1574 = vadd.f32 %v1184, %v1573
        %v1575 = vpop.f32.mrf.mxu0
        %v1576 = vadd.f32 %v1188, %v1575
        %1577 = vmatprep.mubr.bf16.mxu0 0
        %1578 = vmatmul.mubr.bf16.gmra.mxu0 %v1247
        %v1579 = vpop.f32.mrf.mxu0
        %v1580 = vadd.f32 %v1184, %v1579
        %v1581 = vpop.f32.mrf.mxu0
        %v1582 = vadd.f32 %v1188, %v1581
        %v1583 = vpop.f32.mrf.mxu0
        %v1584 = vadd.f32 %v1184, %v1583
        %v1585 = vpop.f32.mrf.mxu0
        %v1586 = vadd.f32 %v1188, %v1585
        %1587 = vdwg.mxu0
        %v1588 = vpack.c.bf16 %v1134, %v1133
        %v1589 = vpack.c.bf16 %v1136, %v1135
        %v1590 = vpack.c.bf16 %v1138, %v1137
        %v1591 = vpack.c.bf16 %v1140, %v1139
        %v1592 = vpack.c.bf16 %v1142, %v1141
        %v1593 = vpack.c.bf16 %v1144, %v1143
        %v1594 = vpack.c.bf16 %v1146, %v1145
        %v1595 = vpack.c.bf16 %v1148, %v1147
        %v1596 = vld [vmem:[#allocation3] sm:$0xff]
        %v1597 = vld [vmem:[#allocation3 + $0x8] sm:$0xff]
        %v1598 = vld [vmem:[#allocation3 + $0x10] sm:$0xff]
        %v1599 = vld [vmem:[#allocation3 + $0x18] sm:$0xff]
        %v1600 = vld [vmem:[#allocation3 + $0x20] sm:$0xff]
        %v1601 = vld [vmem:[#allocation3 + $0x28] sm:$0xff]
        %v1602 = vld [vmem:[#allocation3 + $0x30] sm:$0xff]
        %v1603 = vld [vmem:[#allocation3 + $0x38] sm:$0xff]
        %v1612 = vunpack.c.l.b16 %v1596
        %v1613 = vunpack.c.h.b16 %v1596
        %v1614 = vunpack.c.l.b16 %v1597
        %v1615 = vunpack.c.h.b16 %v1597
        %v1616 = vunpack.c.l.b16 %v1598
        %v1617 = vunpack.c.h.b16 %v1598
        %v1618 = vunpack.c.l.b16 %v1599
        %v1619 = vunpack.c.h.b16 %v1599
        %v1620 = vunpack.c.l.b16 %v1600
        %v1621 = vunpack.c.h.b16 %v1600
        %v1622 = vunpack.c.l.b16 %v1601
        %v1623 = vunpack.c.h.b16 %v1601
        %v1624 = vunpack.c.l.b16 %v1602
        %v1625 = vunpack.c.h.b16 %v1602
        %v1626 = vunpack.c.l.b16 %v1603
        %v1627 = vunpack.c.h.b16 %v1603
        %v1628 = vpack.c.b16 %v1614, %v1612
        %v1629 = vpack.c.b16 %v1615, %v1613
        %v1630 = vpack.c.b16 %v1618, %v1616
        %v1631 = vpack.c.b16 %v1619, %v1617
        %v1632 = vpack.c.b16 %v1622, %v1620
        %v1633 = vpack.c.b16 %v1623, %v1621
        %v1634 = vpack.c.b16 %v1626, %v1624
        %v1635 = vpack.c.b16 %v1627, %v1625
        %vm1644 = vcmask 523264
        %v1646 = vsel %vm1644, %v1588, 0
        %v1649 = vsel %vm1644, %v1589, 0
        %v1652 = vsel %vm1644, %v1590, 0
        %v1655 = vsel %vm1644, %v1591, 0
        %v1658 = vsel %vm1644, %v1592, 0
        %v1661 = vsel %vm1644, %v1593, 0
        %v1664 = vsel %vm1644, %v1594, 0
        %v1667 = vsel %vm1644, %v1595, 0
        %1669 = vmatprep.subr.bf16.mxu0 0
        %1670 = vmatpush1.bf16.msra.mxu0 0
        %1671 = vmatprep.subr.bf16.mxu0 0
        %1672 = vmatpush1.bf16.msra.mxu0 0
        %1673 = vmatprep.subr.bf16.mxu0 0
        %1674 = vmatpush1.bf16.msra.mxu0 0
        %1675 = vmatprep.subr.bf16.mxu0 0
        %1676 = vmatpush1.bf16.msra.mxu0 0
        %1677 = vmatprep.subr.bf16.mxu0 %v1635
        %1678 = vmatpush1.bf16.msra.mxu0 %v1634
        %1679 = vmatprep.subr.bf16.mxu0 %v1633
        %1680 = vmatpush1.bf16.msra.mxu0 %v1632
        %1681 = vmatprep.subr.bf16.mxu0 %v1631
        %1682 = vmatpush1.bf16.msra.mxu0 %v1630
        %1683 = vmatprep.subr.bf16.mxu0 %v1629
        %1684 = vmatpush1.bf16.msra.mxu0 %v1628
        %1685 = vmatprep.subr.bf16.mxu0 0
        %1686 = vmatpush2.bf16.msra.mxu0 0
        %1687 = vmatprep.subr.bf16.mxu0 0
        %1688 = vmatpush2.bf16.msra.mxu0 0
        %1689 = vmatprep.subr.bf16.mxu0 0
        %1690 = vmatpush2.bf16.msra.mxu0 0
        %1691 = vmatprep.subr.bf16.mxu0 0
        %1692 = vmatpush2.bf16.msra.mxu0 0
        %1693 = vmatprep.subr.bf16.mxu0 0
        %1694 = vmatpush2.bf16.msra.mxu0 0
        %1695 = vmatprep.subr.bf16.mxu0 0
        %1696 = vmatpush2.bf16.msra.mxu0 0
        %1697 = vmatprep.subr.bf16.mxu0 0
        %1698 = vmatpush2.bf16.msra.mxu0 0
        %1699 = vmatprep.subr.bf16.mxu0 0
        %1700 = vmatpush2.bf16.msra.mxu0 0
        %1701 = vmatprep.mubr.bf16.mxu0 0
        %1702 = vmatmul.mubr.bf16.gmra.mxu0 %v1646
        %v1703 = vpop.f32.mrf.mxu0
        %v1704 = vadd.f32 0.0, %v1703
        %v1705 = vpop.f32.mrf.mxu0
        %v1706 = vadd.f32 0.0, %v1705
        %v1707 = vpop.f32.mrf.mxu0
        %v1708 = vadd.f32 0.0, %v1707
        %v1709 = vpop.f32.mrf.mxu0
        %v1710 = vadd.f32 0.0, %v1709
        %1711 = vmatprep.mubr.bf16.mxu0 0
        %1712 = vmatmul.mubr.bf16.gmra.mxu0 %v1649
        %v1713 = vpop.f32.mrf.mxu0
        %v1714 = vadd.f32 0.0, %v1713
        %v1715 = vpop.f32.mrf.mxu0
        %v1716 = vadd.f32 0.0, %v1715
        %v1717 = vpop.f32.mrf.mxu0
        %v1718 = vadd.f32 0.0, %v1717
        %v1719 = vpop.f32.mrf.mxu0
        %v1720 = vadd.f32 0.0, %v1719
        %1721 = vmatprep.mubr.bf16.mxu0 0
        %1722 = vmatmul.mubr.bf16.gmra.mxu0 %v1652
        %v1723 = vpop.f32.mrf.mxu0
        %v1724 = vadd.f32 0.0, %v1723
        %v1725 = vpop.f32.mrf.mxu0
        %v1726 = vadd.f32 0.0, %v1725
        %v1727 = vpop.f32.mrf.mxu0
        %v1728 = vadd.f32 0.0, %v1727
        %v1729 = vpop.f32.mrf.mxu0
        %v1730 = vadd.f32 0.0, %v1729
        %1731 = vmatprep.mubr.bf16.mxu0 0
        %1732 = vmatmul.mubr.bf16.gmra.mxu0 %v1655
        %v1733 = vpop.f32.mrf.mxu0
        %v1734 = vadd.f32 0.0, %v1733
        %v1735 = vpop.f32.mrf.mxu0
        %v1736 = vadd.f32 0.0, %v1735
        %v1737 = vpop.f32.mrf.mxu0
        %v1738 = vadd.f32 0.0, %v1737
        %v1739 = vpop.f32.mrf.mxu0
        %v1740 = vadd.f32 0.0, %v1739
        %1741 = vmatprep.mubr.bf16.mxu0 0
        %1742 = vmatmul.mubr.bf16.gmra.mxu0 %v1658
        %v1743 = vpop.f32.mrf.mxu0
        %v1744 = vadd.f32 0.0, %v1743
        %v1745 = vpop.f32.mrf.mxu0
        %v1746 = vadd.f32 0.0, %v1745
        %v1747 = vpop.f32.mrf.mxu0
        %v1748 = vadd.f32 0.0, %v1747
        %v1749 = vpop.f32.mrf.mxu0
        %v1750 = vadd.f32 0.0, %v1749
        %1751 = vmatprep.mubr.bf16.mxu0 0
        %1752 = vmatmul.mubr.bf16.gmra.mxu0 %v1661
        %v1753 = vpop.f32.mrf.mxu0
        %v1754 = vadd.f32 0.0, %v1753
        %v1755 = vpop.f32.mrf.mxu0
        %v1756 = vadd.f32 0.0, %v1755
        %v1757 = vpop.f32.mrf.mxu0
        %v1758 = vadd.f32 0.0, %v1757
        %v1759 = vpop.f32.mrf.mxu0
        %v1760 = vadd.f32 0.0, %v1759
        %1761 = vmatprep.mubr.bf16.mxu0 0
        %1762 = vmatmul.mubr.bf16.gmra.mxu0 %v1664
        %v1763 = vpop.f32.mrf.mxu0
        %v1764 = vadd.f32 0.0, %v1763
        %v1765 = vpop.f32.mrf.mxu0
        %v1766 = vadd.f32 0.0, %v1765
        %v1767 = vpop.f32.mrf.mxu0
        %v1768 = vadd.f32 0.0, %v1767
        %v1769 = vpop.f32.mrf.mxu0
        %v1770 = vadd.f32 0.0, %v1769
        %1771 = vmatprep.mubr.bf16.mxu0 0
        %1772 = vmatmul.mubr.bf16.gmra.mxu0 %v1667
        %v1773 = vpop.f32.mrf.mxu0
        %v1774 = vadd.f32 0.0, %v1773
        %v1775 = vpop.f32.mrf.mxu0
        %v1776 = vadd.f32 0.0, %v1775
        %v1777 = vpop.f32.mrf.mxu0
        %v1778 = vadd.f32 0.0, %v1777
        %v1779 = vpop.f32.mrf.mxu0
        %v1780 = vadd.f32 0.0, %v1779
        %1781 = vdwg.mxu0
        %v1782 = vadd.f32 %v1510, %v1704
        %v1783 = vadd.f32 %v1512, %v1706
        %v1784 = vadd.f32 %v1514, %v1708
        %v1785 = vadd.f32 %v1516, %v1710
        %v1786 = vadd.f32 %v1520, %v1714
        %v1787 = vadd.f32 %v1522, %v1716
        %v1788 = vadd.f32 %v1524, %v1718
        %v1789 = vadd.f32 %v1526, %v1720
        %v1790 = vadd.f32 %v1530, %v1724
        %v1791 = vadd.f32 %v1532, %v1726
        %v1792 = vadd.f32 %v1534, %v1728
        %v1793 = vadd.f32 %v1536, %v1730
        %v1794 = vadd.f32 %v1540, %v1734
        %v1795 = vadd.f32 %v1542, %v1736
        %v1796 = vadd.f32 %v1544, %v1738
        %v1797 = vadd.f32 %v1546, %v1740
        %v1798 = vadd.f32 %v1550, %v1744
        %v1799 = vadd.f32 %v1552, %v1746
        %v1800 = vadd.f32 %v1554, %v1748
        %v1801 = vadd.f32 %v1556, %v1750
        %v1802 = vadd.f32 %v1560, %v1754
        %v1803 = vadd.f32 %v1562, %v1756
        %v1804 = vadd.f32 %v1564, %v1758
        %v1805 = vadd.f32 %v1566, %v1760
        %v1806 = vadd.f32 %v1570, %v1764
        %v1807 = vadd.f32 %v1572, %v1766
        %v1808 = vadd.f32 %v1574, %v1768
        %v1809 = vadd.f32 %v1576, %v1770
        %v1810 = vadd.f32 %v1580, %v1774
        %v1811 = vadd.f32 %v1582, %v1776
        %v1812 = vadd.f32 %v1584, %v1778
        %v1813 = vadd.f32 %v1586, %v1780
        %v1814 = vadd.f32 %v1284, %v1286
        %v1815 = vadd.f32 %v1814, %v1397
        %v1816 = vadd.f32 %v1815, %v1399
        %1817 = vadd.xlane.f32.xlu0 %v1816
        %v1818 = vpop.xlane.xlu0 %1817
        %v1819 = vadd.f32 %v1288, %v1290
        %v1820 = vadd.f32 %v1819, %v1401
        %v1821 = vadd.f32 %v1820, %v1403
        %1822 = vadd.xlane.f32.xlu0 %v1821
        %v1823 = vpop.xlane.xlu0 %1822
        %v1824 = vadd.f32 %v1294, %v1296
        %v1825 = vadd.f32 %v1824, %v1407
        %v1826 = vadd.f32 %v1825, %v1409
        %1827 = vadd.xlane.f32.xlu0 %v1826
        %v1828 = vpop.xlane.xlu0 %1827
        %v1829 = vadd.f32 %v1298, %v1300
        %v1830 = vadd.f32 %v1829, %v1411
        %v1831 = vadd.f32 %v1830, %v1413
        %1832 = vadd.xlane.f32.xlu0 %v1831
        %v1833 = vpop.xlane.xlu0 %1832
        %v1834 = vadd.f32 %v1304, %v1306
        %v1835 = vadd.f32 %v1834, %v1417
        %v1836 = vadd.f32 %v1835, %v1419
        %1837 = vadd.xlane.f32.xlu0 %v1836
        %v1838 = vpop.xlane.xlu0 %1837
        %v1839 = vadd.f32 %v1308, %v1310
        %v1840 = vadd.f32 %v1839, %v1421
        %v1841 = vadd.f32 %v1840, %v1423
        %1842 = vadd.xlane.f32.xlu0 %v1841
        %v1843 = vpop.xlane.xlu0 %1842
        %v1844 = vadd.f32 %v1314, %v1316
        %v1845 = vadd.f32 %v1844, %v1427
        %v1846 = vadd.f32 %v1845, %v1429
        %1847 = vadd.xlane.f32.xlu0 %v1846
        %v1848 = vpop.xlane.xlu0 %1847
        %v1849 = vadd.f32 %v1318, %v1320
        %v1850 = vadd.f32 %v1849, %v1431
        %v1851 = vadd.f32 %v1850, %v1433
        %1852 = vadd.xlane.f32.xlu0 %v1851
        %v1853 = vpop.xlane.xlu0 %1852
        %v1854 = vadd.f32 %v1324, %v1326
        %v1855 = vadd.f32 %v1854, %v1437
        %v1856 = vadd.f32 %v1855, %v1439
        %1857 = vadd.xlane.f32.xlu0 %v1856
        %v1858 = vpop.xlane.xlu0 %1857
        %v1859 = vadd.f32 %v1328, %v1330
        %v1860 = vadd.f32 %v1859, %v1441
        %v1861 = vadd.f32 %v1860, %v1443
        %1862 = vadd.xlane.f32.xlu0 %v1861
        %v1863 = vpop.xlane.xlu0 %1862
        %v1864 = vadd.f32 %v1334, %v1336
        %v1865 = vadd.f32 %v1864, %v1447
        %v1866 = vadd.f32 %v1865, %v1449
        %1867 = vadd.xlane.f32.xlu0 %v1866
        %v1868 = vpop.xlane.xlu0 %1867
        %v1869 = vadd.f32 %v1338, %v1340
        %v1870 = vadd.f32 %v1869, %v1451
        %v1871 = vadd.f32 %v1870, %v1453
        %1872 = vadd.xlane.f32.xlu0 %v1871
        %v1873 = vpop.xlane.xlu0 %1872
        %v1874 = vadd.f32 %v1344, %v1346
        %v1875 = vadd.f32 %v1874, %v1457
        %v1876 = vadd.f32 %v1875, %v1459
        %1877 = vadd.xlane.f32.xlu0 %v1876
        %v1878 = vpop.xlane.xlu0 %1877
        %v1879 = vadd.f32 %v1348, %v1350
        %v1880 = vadd.f32 %v1879, %v1461
        %v1881 = vadd.f32 %v1880, %v1463
        %1882 = vadd.xlane.f32.xlu0 %v1881
        %v1883 = vpop.xlane.xlu0 %1882
        %v1884 = vadd.f32 %v1354, %v1356
        %v1885 = vadd.f32 %v1884, %v1467
        %v1886 = vadd.f32 %v1885, %v1469
        %1887 = vadd.xlane.f32.xlu0 %v1886
        %v1888 = vpop.xlane.xlu0 %1887
        %v1889 = vadd.f32 %v1358, %v1360
        %v1890 = vadd.f32 %v1889, %v1471
        %v1891 = vadd.f32 %v1890, %v1473
        %1892 = vadd.xlane.f32.xlu0 %v1891
        %v1893 = vpop.xlane.xlu0 %1892
        %v1894 = vrcp.pop 512.0
        %v1895 = vmul.f32 %v1818, %v1894
        %v1896 = vmul.f32 %v1823, %v1894
        %v1897 = vmul.f32 %v1828, %v1894
        %v1898 = vmul.f32 %v1833, %v1894
        %v1899 = vmul.f32 %v1838, %v1894
        %v1900 = vmul.f32 %v1843, %v1894
        %v1901 = vmul.f32 %v1848, %v1894
        %v1902 = vmul.f32 %v1853, %v1894
        %v1903 = vmul.f32 %v1858, %v1894
        %v1904 = vmul.f32 %v1863, %v1894
        %v1905 = vmul.f32 %v1868, %v1894
        %v1906 = vmul.f32 %v1873, %v1894
        %v1907 = vmul.f32 %v1878, %v1894
        %v1908 = vmul.f32 %v1883, %v1894
        %v1909 = vmul.f32 %v1888, %v1894
        %v1910 = vmul.f32 %v1893, %v1894
        %v1911 = vsub.f32 %v1284, %v1895
        %v1912 = vsub.f32 %v1286, %v1895
        %v1913 = vsub.f32 %v1397, %v1895
        %v1914 = vsub.f32 %v1399, %v1895
        %v1915 = vsub.f32 %v1288, %v1896
        %v1916 = vsub.f32 %v1290, %v1896
        %v1917 = vsub.f32 %v1401, %v1896
        %v1918 = vsub.f32 %v1403, %v1896
        %v1919 = vsub.f32 %v1294, %v1897
        %v1920 = vsub.f32 %v1296, %v1897
        %v1921 = vsub.f32 %v1407, %v1897
        %v1922 = vsub.f32 %v1409, %v1897
        %v1923 = vsub.f32 %v1298, %v1898
        %v1924 = vsub.f32 %v1300, %v1898
        %v1925 = vsub.f32 %v1411, %v1898
        %v1926 = vsub.f32 %v1413, %v1898
        %v1927 = vsub.f32 %v1304, %v1899
        %v1928 = vsub.f32 %v1306, %v1899
        %v1929 = vsub.f32 %v1417, %v1899
        %v1930 = vsub.f32 %v1419, %v1899
        %v1931 = vsub.f32 %v1308, %v1900
        %v1932 = vsub.f32 %v1310, %v1900
        %v1933 = vsub.f32 %v1421, %v1900
        %v1934 = vsub.f32 %v1423, %v1900
        %v1935 = vsub.f32 %v1314, %v1901
        %v1936 = vsub.f32 %v1316, %v1901
        %v1937 = vsub.f32 %v1427, %v1901
        %v1938 = vsub.f32 %v1429, %v1901
        %v1939 = vsub.f32 %v1318, %v1902
        %v1940 = vsub.f32 %v1320, %v1902
        %v1941 = vsub.f32 %v1431, %v1902
        %v1942 = vsub.f32 %v1433, %v1902
        %v1943 = vsub.f32 %v1324, %v1903
        %v1944 = vsub.f32 %v1326, %v1903
        %v1945 = vsub.f32 %v1437, %v1903
        %v1946 = vsub.f32 %v1439, %v1903
        %v1947 = vsub.f32 %v1328, %v1904
        %v1948 = vsub.f32 %v1330, %v1904
        %v1949 = vsub.f32 %v1441, %v1904
        %v1950 = vsub.f32 %v1443, %v1904
        %v1951 = vsub.f32 %v1334, %v1905
        %v1952 = vsub.f32 %v1336, %v1905
        %v1953 = vsub.f32 %v1447, %v1905
        %v1954 = vsub.f32 %v1449, %v1905
        %v1955 = vsub.f32 %v1338, %v1906
        %v1956 = vsub.f32 %v1340, %v1906
        %v1957 = vsub.f32 %v1451, %v1906
        %v1958 = vsub.f32 %v1453, %v1906
        %v1959 = vsub.f32 %v1344, %v1907
        %v1960 = vsub.f32 %v1346, %v1907
        %v1961 = vsub.f32 %v1457, %v1907
        %v1962 = vsub.f32 %v1459, %v1907
        %v1963 = vsub.f32 %v1348, %v1908
        %v1964 = vsub.f32 %v1350, %v1908
        %v1965 = vsub.f32 %v1461, %v1908
        %v1966 = vsub.f32 %v1463, %v1908
        %v1967 = vsub.f32 %v1354, %v1909
        %v1968 = vsub.f32 %v1356, %v1909
        %v1969 = vsub.f32 %v1467, %v1909
        %v1970 = vsub.f32 %v1469, %v1909
        %v1971 = vsub.f32 %v1358, %v1910
        %v1972 = vsub.f32 %v1360, %v1910
        %v1973 = vsub.f32 %v1471, %v1910
        %v1974 = vsub.f32 %v1473, %v1910
        %v1975 = vmul.f32 %v1911, %v1911
        %v1976 = vmul.f32 %v1912, %v1912
        %v1977 = vmul.f32 %v1913, %v1913
        %v1978 = vmul.f32 %v1914, %v1914
        %v1979 = vmul.f32 %v1915, %v1915
        %v1980 = vmul.f32 %v1916, %v1916
        %v1981 = vmul.f32 %v1917, %v1917
        %v1982 = vmul.f32 %v1918, %v1918
        %v1983 = vmul.f32 %v1919, %v1919
        %v1984 = vmul.f32 %v1920, %v1920
        %v1985 = vmul.f32 %v1921, %v1921
        %v1986 = vmul.f32 %v1922, %v1922
        %v1987 = vmul.f32 %v1923, %v1923
        %v1988 = vmul.f32 %v1924, %v1924
        %v1989 = vmul.f32 %v1925, %v1925
        %v1990 = vmul.f32 %v1926, %v1926
        %v1991 = vmul.f32 %v1927, %v1927
        %v1992 = vmul.f32 %v1928, %v1928
        %v1993 = vmul.f32 %v1929, %v1929
        %v1994 = vmul.f32 %v1930, %v1930
        %v1995 = vmul.f32 %v1931, %v1931
        %v1996 = vmul.f32 %v1932, %v1932
        %v1997 = vmul.f32 %v1933, %v1933
        %v1998 = vmul.f32 %v1934, %v1934
        %v1999 = vmul.f32 %v1935, %v1935
        %v2000 = vmul.f32 %v1936, %v1936
        %v2001 = vmul.f32 %v1937, %v1937
        %v2002 = vmul.f32 %v1938, %v1938
        %v2003 = vmul.f32 %v1939, %v1939
        %v2004 = vmul.f32 %v1940, %v1940
        %v2005 = vmul.f32 %v1941, %v1941
        %v2006 = vmul.f32 %v1942, %v1942
        %v2007 = vmul.f32 %v1943, %v1943
        %v2008 = vmul.f32 %v1944, %v1944
        %v2009 = vmul.f32 %v1945, %v1945
        %v2010 = vmul.f32 %v1946, %v1946
        %v2011 = vmul.f32 %v1947, %v1947
        %v2012 = vmul.f32 %v1948, %v1948
        %v2013 = vmul.f32 %v1949, %v1949
        %v2014 = vmul.f32 %v1950, %v1950
        %v2015 = vmul.f32 %v1951, %v1951
        %v2016 = vmul.f32 %v1952, %v1952
        %v2017 = vmul.f32 %v1953, %v1953
        %v2018 = vmul.f32 %v1954, %v1954
        %v2019 = vmul.f32 %v1955, %v1955
        %v2020 = vmul.f32 %v1956, %v1956
        %v2021 = vmul.f32 %v1957, %v1957
        %v2022 = vmul.f32 %v1958, %v1958
        %v2023 = vmul.f32 %v1959, %v1959
        %v2024 = vmul.f32 %v1960, %v1960
        %v2025 = vmul.f32 %v1961, %v1961
        %v2026 = vmul.f32 %v1962, %v1962
        %v2027 = vmul.f32 %v1963, %v1963
        %v2028 = vmul.f32 %v1964, %v1964
        %v2029 = vmul.f32 %v1965, %v1965
        %v2030 = vmul.f32 %v1966, %v1966
        %v2031 = vmul.f32 %v1967, %v1967
        %v2032 = vmul.f32 %v1968, %v1968
        %v2033 = vmul.f32 %v1969, %v1969
        %v2034 = vmul.f32 %v1970, %v1970
        %v2035 = vmul.f32 %v1971, %v1971
        %v2036 = vmul.f32 %v1972, %v1972
        %v2037 = vmul.f32 %v1973, %v1973
        %v2038 = vmul.f32 %v1974, %v1974
        %v2039 = vadd.f32 %v1975, %v1976
        %v2040 = vadd.f32 %v2039, %v1977
        %v2041 = vadd.f32 %v2040, %v1978
        %2042 = vadd.xlane.f32.xlu0 %v2041
        %v2043 = vpop.xlane.xlu0 %2042
        %v2044 = vadd.f32 %v1979, %v1980
        %v2045 = vadd.f32 %v2044, %v1981
        %v2046 = vadd.f32 %v2045, %v1982
        %2047 = vadd.xlane.f32.xlu0 %v2046
        %v2048 = vpop.xlane.xlu0 %2047
        %v2049 = vadd.f32 %v1983, %v1984
        %v2050 = vadd.f32 %v2049, %v1985
        %v2051 = vadd.f32 %v2050, %v1986
        %2052 = vadd.xlane.f32.xlu0 %v2051
        %v2053 = vpop.xlane.xlu0 %2052
        %v2054 = vadd.f32 %v1987, %v1988
        %v2055 = vadd.f32 %v2054, %v1989
        %v2056 = vadd.f32 %v2055, %v1990
        %2057 = vadd.xlane.f32.xlu0 %v2056
        %v2058 = vpop.xlane.xlu0 %2057
        %v2059 = vadd.f32 %v1991, %v1992
        %v2060 = vadd.f32 %v2059, %v1993
        %v2061 = vadd.f32 %v2060, %v1994
        %2062 = vadd.xlane.f32.xlu0 %v2061
        %v2063 = vpop.xlane.xlu0 %2062
        %v2064 = vadd.f32 %v1995, %v1996
        %v2065 = vadd.f32 %v2064, %v1997
        %v2066 = vadd.f32 %v2065, %v1998
        %2067 = vadd.xlane.f32.xlu0 %v2066
        %v2068 = vpop.xlane.xlu0 %2067
        %v2069 = vadd.f32 %v1999, %v2000
        %v2070 = vadd.f32 %v2069, %v2001
        %v2071 = vadd.f32 %v2070, %v2002
        %2072 = vadd.xlane.f32.xlu0 %v2071
        %v2073 = vpop.xlane.xlu0 %2072
        %v2074 = vadd.f32 %v2003, %v2004
        %v2075 = vadd.f32 %v2074, %v2005
        %v2076 = vadd.f32 %v2075, %v2006
        %2077 = vadd.xlane.f32.xlu0 %v2076
        %v2078 = vpop.xlane.xlu0 %2077
        %v2079 = vadd.f32 %v2007, %v2008
        %v2080 = vadd.f32 %v2079, %v2009
        %v2081 = vadd.f32 %v2080, %v2010
        %2082 = vadd.xlane.f32.xlu0 %v2081
        %v2083 = vpop.xlane.xlu0 %2082
        %v2084 = vadd.f32 %v2011, %v2012
        %v2085 = vadd.f32 %v2084, %v2013
        %v2086 = vadd.f32 %v2085, %v2014
        %2087 = vadd.xlane.f32.xlu0 %v2086
        %v2088 = vpop.xlane.xlu0 %2087
        %v2089 = vadd.f32 %v2015, %v2016
        %v2090 = vadd.f32 %v2089, %v2017
        %v2091 = vadd.f32 %v2090, %v2018
        %2092 = vadd.xlane.f32.xlu0 %v2091
        %v2093 = vpop.xlane.xlu0 %2092
        %v2094 = vadd.f32 %v2019, %v2020
        %v2095 = vadd.f32 %v2094, %v2021
        %v2096 = vadd.f32 %v2095, %v2022
        %2097 = vadd.xlane.f32.xlu0 %v2096
        %v2098 = vpop.xlane.xlu0 %2097
        %v2099 = vadd.f32 %v2023, %v2024
        %v2100 = vadd.f32 %v2099, %v2025
        %v2101 = vadd.f32 %v2100, %v2026
        %2102 = vadd.xlane.f32.xlu0 %v2101
        %v2103 = vpop.xlane.xlu0 %2102
        %v2104 = vadd.f32 %v2027, %v2028
        %v2105 = vadd.f32 %v2104, %v2029
        %v2106 = vadd.f32 %v2105, %v2030
        %2107 = vadd.xlane.f32.xlu0 %v2106
        %v2108 = vpop.xlane.xlu0 %2107
        %v2109 = vadd.f32 %v2031, %v2032
        %v2110 = vadd.f32 %v2109, %v2033
        %v2111 = vadd.f32 %v2110, %v2034
        %2112 = vadd.xlane.f32.xlu0 %v2111
        %v2113 = vpop.xlane.xlu0 %2112
        %v2114 = vadd.f32 %v2035, %v2036
        %v2115 = vadd.f32 %v2114, %v2037
        %v2116 = vadd.f32 %v2115, %v2038
        %2117 = vadd.xlane.f32.xlu0 %v2116
        %v2118 = vpop.xlane.xlu0 %2117
        %v2119 = vmul.f32 %v2043, %v1894
        %v2120 = vmul.f32 %v2048, %v1894
        %v2121 = vmul.f32 %v2053, %v1894
        %v2122 = vmul.f32 %v2058, %v1894
        %v2123 = vmul.f32 %v2063, %v1894
        %v2124 = vmul.f32 %v2068, %v1894
        %v2125 = vmul.f32 %v2073, %v1894
        %v2126 = vmul.f32 %v2078, %v1894
        %v2127 = vmul.f32 %v2083, %v1894
        %v2128 = vmul.f32 %v2088, %v1894
        %v2129 = vmul.f32 %v2093, %v1894
        %v2130 = vmul.f32 %v2098, %v1894
        %v2131 = vmul.f32 %v2103, %v1894
        %v2132 = vmul.f32 %v2108, %v1894
        %v2133 = vmul.f32 %v2113, %v1894
        %v2134 = vmul.f32 %v2118, %v1894
        %v2135 = vadd.f32 %v2119, 1e-05
        %v2136 = vadd.f32 %v2120, 1e-05
        %v2137 = vadd.f32 %v2121, 1e-05
        %v2138 = vadd.f32 %v2122, 1e-05
        %v2139 = vadd.f32 %v2123, 1e-05
        %v2140 = vadd.f32 %v2124, 1e-05
        %v2141 = vadd.f32 %v2125, 1e-05
        %v2142 = vadd.f32 %v2126, 1e-05
        %v2143 = vadd.f32 %v2127, 1e-05
        %v2144 = vadd.f32 %v2128, 1e-05
        %v2145 = vadd.f32 %v2129, 1e-05
        %v2146 = vadd.f32 %v2130, 1e-05
        %v2147 = vadd.f32 %v2131, 1e-05
        %v2148 = vadd.f32 %v2132, 1e-05
        %v2149 = vadd.f32 %v2133, 1e-05
        %v2150 = vadd.f32 %v2134, 1e-05
        %v2151 = vrsqrt.pop %v2135
        %v2152 = vrsqrt.pop %v2136
        %v2153 = vrsqrt.pop %v2137
        %v2154 = vrsqrt.pop %v2138
        %v2155 = vrsqrt.pop %v2139
        %v2156 = vrsqrt.pop %v2140
        %v2157 = vrsqrt.pop %v2141
        %v2158 = vrsqrt.pop %v2142
        %v2159 = vrsqrt.pop %v2143
        %v2160 = vrsqrt.pop %v2144
        %v2161 = vrsqrt.pop %v2145
        %v2162 = vrsqrt.pop %v2146
        %v2163 = vrsqrt.pop %v2147
        %v2164 = vrsqrt.pop %v2148
        %v2165 = vrsqrt.pop %v2149
        %v2166 = vrsqrt.pop %v2150
        %v2167 = vmul.f32 %v1911, %v2151
        %v2168 = vmul.f32 %v1912, %v2151
        %v2169 = vmul.f32 %v1913, %v2151
        %v2170 = vmul.f32 %v1914, %v2151
        %v2171 = vmul.f32 %v1915, %v2152
        %v2172 = vmul.f32 %v1916, %v2152
        %v2173 = vmul.f32 %v1917, %v2152
        %v2174 = vmul.f32 %v1918, %v2152
        %v2175 = vmul.f32 %v1919, %v2153
        %v2176 = vmul.f32 %v1920, %v2153
        %v2177 = vmul.f32 %v1921, %v2153
        %v2178 = vmul.f32 %v1922, %v2153
        %v2179 = vmul.f32 %v1923, %v2154
        %v2180 = vmul.f32 %v1924, %v2154
        %v2181 = vmul.f32 %v1925, %v2154
        %v2182 = vmul.f32 %v1926, %v2154
        %v2183 = vmul.f32 %v1927, %v2155
        %v2184 = vmul.f32 %v1928, %v2155
        %v2185 = vmul.f32 %v1929, %v2155
        %v2186 = vmul.f32 %v1930, %v2155
        %v2187 = vmul.f32 %v1931, %v2156
        %v2188 = vmul.f32 %v1932, %v2156
        %v2189 = vmul.f32 %v1933, %v2156
        %v2190 = vmul.f32 %v1934, %v2156
        %v2191 = vmul.f32 %v1935, %v2157
        %v2192 = vmul.f32 %v1936, %v2157
        %v2193 = vmul.f32 %v1937, %v2157
        %v2194 = vmul.f32 %v1938, %v2157
        %v2195 = vmul.f32 %v1939, %v2158
        %v2196 = vmul.f32 %v1940, %v2158
        %v2197 = vmul.f32 %v1941, %v2158
        %v2198 = vmul.f32 %v1942, %v2158
        %v2199 = vmul.f32 %v1943, %v2159
        %v2200 = vmul.f32 %v1944, %v2159
        %v2201 = vmul.f32 %v1945, %v2159
        %v2202 = vmul.f32 %v1946, %v2159
        %v2203 = vmul.f32 %v1947, %v2160
        %v2204 = vmul.f32 %v1948, %v2160
        %v2205 = vmul.f32 %v1949, %v2160
        %v2206 = vmul.f32 %v1950, %v2160
        %v2207 = vmul.f32 %v1951, %v2161
        %v2208 = vmul.f32 %v1952, %v2161
        %v2209 = vmul.f32 %v1953, %v2161
        %v2210 = vmul.f32 %v1954, %v2161
        %v2211 = vmul.f32 %v1955, %v2162
        %v2212 = vmul.f32 %v1956, %v2162
        %v2213 = vmul.f32 %v1957, %v2162
        %v2214 = vmul.f32 %v1958, %v2162
        %v2215 = vmul.f32 %v1959, %v2163
        %v2216 = vmul.f32 %v1960, %v2163
        %v2217 = vmul.f32 %v1961, %v2163
        %v2218 = vmul.f32 %v1962, %v2163
        %v2219 = vmul.f32 %v1963, %v2164
        %v2220 = vmul.f32 %v1964, %v2164
        %v2221 = vmul.f32 %v1965, %v2164
        %v2222 = vmul.f32 %v1966, %v2164
        %v2223 = vmul.f32 %v1967, %v2165
        %v2224 = vmul.f32 %v1968, %v2165
        %v2225 = vmul.f32 %v1969, %v2165
        %v2226 = vmul.f32 %v1970, %v2165
        %v2227 = vmul.f32 %v1971, %v2166
        %v2228 = vmul.f32 %v1972, %v2166
        %v2229 = vmul.f32 %v1973, %v2166
        %v2230 = vmul.f32 %v1974, %v2166
        %vm2231 = vcmp.ge.f32.partialorder %v2167, 0.0
        %vm2232 = vcmp.ge.f32.partialorder %v2168, 0.0
        %vm2233 = vcmp.ge.f32.partialorder %v2169, 0.0
        %vm2234 = vcmp.ge.f32.partialorder %v2170, 0.0
        %vm2235 = vcmp.ge.f32.partialorder %v2171, 0.0
        %vm2236 = vcmp.ge.f32.partialorder %v2172, 0.0
        %vm2237 = vcmp.ge.f32.partialorder %v2173, 0.0
        %vm2238 = vcmp.ge.f32.partialorder %v2174, 0.0
        %vm2239 = vcmp.ge.f32.partialorder %v2175, 0.0
        %vm2240 = vcmp.ge.f32.partialorder %v2176, 0.0
        %vm2241 = vcmp.ge.f32.partialorder %v2177, 0.0
        %vm2242 = vcmp.ge.f32.partialorder %v2178, 0.0
        %vm2243 = vcmp.ge.f32.partialorder %v2179, 0.0
        %vm2244 = vcmp.ge.f32.partialorder %v2180, 0.0
        %vm2245 = vcmp.ge.f32.partialorder %v2181, 0.0
        %vm2246 = vcmp.ge.f32.partialorder %v2182, 0.0
        %vm2247 = vcmp.ge.f32.partialorder %v2183, 0.0
        %vm2248 = vcmp.ge.f32.partialorder %v2184, 0.0
        %vm2249 = vcmp.ge.f32.partialorder %v2185, 0.0
        %vm2250 = vcmp.ge.f32.partialorder %v2186, 0.0
        %vm2251 = vcmp.ge.f32.partialorder %v2187, 0.0
        %vm2252 = vcmp.ge.f32.partialorder %v2188, 0.0
        %vm2253 = vcmp.ge.f32.partialorder %v2189, 0.0
        %vm2254 = vcmp.ge.f32.partialorder %v2190, 0.0
        %vm2255 = vcmp.ge.f32.partialorder %v2191, 0.0
        %vm2256 = vcmp.ge.f32.partialorder %v2192, 0.0
        %vm2257 = vcmp.ge.f32.partialorder %v2193, 0.0
        %vm2258 = vcmp.ge.f32.partialorder %v2194, 0.0
        %vm2259 = vcmp.ge.f32.partialorder %v2195, 0.0
        %vm2260 = vcmp.ge.f32.partialorder %v2196, 0.0
        %vm2261 = vcmp.ge.f32.partialorder %v2197, 0.0
        %vm2262 = vcmp.ge.f32.partialorder %v2198, 0.0
        %vm2263 = vcmp.ge.f32.partialorder %v2199, 0.0
        %vm2264 = vcmp.ge.f32.partialorder %v2200, 0.0
        %vm2265 = vcmp.ge.f32.partialorder %v2201, 0.0
        %vm2266 = vcmp.ge.f32.partialorder %v2202, 0.0
        %vm2267 = vcmp.ge.f32.partialorder %v2203, 0.0
        %vm2268 = vcmp.ge.f32.partialorder %v2204, 0.0
        %vm2269 = vcmp.ge.f32.partialorder %v2205, 0.0
        %vm2270 = vcmp.ge.f32.partialorder %v2206, 0.0
        %vm2271 = vcmp.ge.f32.partialorder %v2207, 0.0
        %vm2272 = vcmp.ge.f32.partialorder %v2208, 0.0
        %vm2273 = vcmp.ge.f32.partialorder %v2209, 0.0
        %vm2274 = vcmp.ge.f32.partialorder %v2210, 0.0
        %vm2275 = vcmp.ge.f32.partialorder %v2211, 0.0
        %vm2276 = vcmp.ge.f32.partialorder %v2212, 0.0
        %vm2277 = vcmp.ge.f32.partialorder %v2213, 0.0
        %vm2278 = vcmp.ge.f32.partialorder %v2214, 0.0
        %vm2279 = vcmp.ge.f32.partialorder %v2215, 0.0
        %vm2280 = vcmp.ge.f32.partialorder %v2216, 0.0
        %vm2281 = vcmp.ge.f32.partialorder %v2217, 0.0
        %vm2282 = vcmp.ge.f32.partialorder %v2218, 0.0
        %vm2283 = vcmp.ge.f32.partialorder %v2219, 0.0
        %vm2284 = vcmp.ge.f32.partialorder %v2220, 0.0
        %vm2285 = vcmp.ge.f32.partialorder %v2221, 0.0
        %vm2286 = vcmp.ge.f32.partialorder %v2222, 0.0
        %vm2287 = vcmp.ge.f32.partialorder %v2223, 0.0
        %vm2288 = vcmp.ge.f32.partialorder %v2224, 0.0
        %vm2289 = vcmp.ge.f32.partialorder %v2225, 0.0
        %vm2290 = vcmp.ge.f32.partialorder %v2226, 0.0
        %vm2291 = vcmp.ge.f32.partialorder %v2227, 0.0
        %vm2292 = vcmp.ge.f32.partialorder %v2228, 0.0
        %vm2293 = vcmp.ge.f32.partialorder %v2229, 0.0
        %vm2294 = vcmp.ge.f32.partialorder %v2230, 0.0
        %v2295 = vmul.f32 %v2167, 0.1
        %v2296 = vmul.f32 %v2168, 0.1
        %v2297 = vmul.f32 %v2169, 0.1
        %v2298 = vmul.f32 %v2170, 0.1
        %v2299 = vmul.f32 %v2171, 0.1
        %v2300 = vmul.f32 %v2172, 0.1
        %v2301 = vmul.f32 %v2173, 0.1
        %v2302 = vmul.f32 %v2174, 0.1
        %v2303 = vmul.f32 %v2175, 0.1
        %v2304 = vmul.f32 %v2176, 0.1
        %v2305 = vmul.f32 %v2177, 0.1
        %v2306 = vmul.f32 %v2178, 0.1
        %v2307 = vmul.f32 %v2179, 0.1
        %v2308 = vmul.f32 %v2180, 0.1
        %v2309 = vmul.f32 %v2181, 0.1
        %v2310 = vmul.f32 %v2182, 0.1
        %v2311 = vmul.f32 %v2183, 0.1
        %v2312 = vmul.f32 %v2184, 0.1
        %v2313 = vmul.f32 %v2185, 0.1
        %v2314 = vmul.f32 %v2186, 0.1
        %v2315 = vmul.f32 %v2187, 0.1
        %v2316 = vmul.f32 %v2188, 0.1
        %v2317 = vmul.f32 %v2189, 0.1
        %v2318 = vmul.f32 %v2190, 0.1
        %v2319 = vmul.f32 %v2191, 0.1
        %v2320 = vmul.f32 %v2192, 0.1
        %v2321 = vmul.f32 %v2193, 0.1
        %v2322 = vmul.f32 %v2194, 0.1
        %v2323 = vmul.f32 %v2195, 0.1
        %v2324 = vmul.f32 %v2196, 0.1
        %v2325 = vmul.f32 %v2197, 0.1
        %v2326 = vmul.f32 %v2198, 0.1
        %v2327 = vmul.f32 %v2199, 0.1
        %v2328 = vmul.f32 %v2200, 0.1
        %v2329 = vmul.f32 %v2201, 0.1
        %v2330 = vmul.f32 %v2202, 0.1
        %v2331 = vmul.f32 %v2203, 0.1
        %v2332 = vmul.f32 %v2204, 0.1
        %v2333 = vmul.f32 %v2205, 0.1
        %v2334 = vmul.f32 %v2206, 0.1
        %v2335 = vmul.f32 %v2207, 0.1
        %v2336 = vmul.f32 %v2208, 0.1
        %v2337 = vmul.f32 %v2209, 0.1
        %v2338 = vmul.f32 %v2210, 0.1
        %v2339 = vmul.f32 %v2211, 0.1
        %v2340 = vmul.f32 %v2212, 0.1
        %v2341 = vmul.f32 %v2213, 0.1
        %v2342 = vmul.f32 %v2214, 0.1
        %v2343 = vmul.f32 %v2215, 0.1
        %v2344 = vmul.f32 %v2216, 0.1
        %v2345 = vmul.f32 %v2217, 0.1
        %v2346 = vmul.f32 %v2218, 0.1
        %v2347 = vmul.f32 %v2219, 0.1
        %v2348 = vmul.f32 %v2220, 0.1
        %v2349 = vmul.f32 %v2221, 0.1
        %v2350 = vmul.f32 %v2222, 0.1
        %v2351 = vmul.f32 %v2223, 0.1
        %v2352 = vmul.f32 %v2224, 0.1
        %v2353 = vmul.f32 %v2225, 0.1
        %v2354 = vmul.f32 %v2226, 0.1
        %v2355 = vmul.f32 %v2227, 0.1
        %v2356 = vmul.f32 %v2228, 0.1
        %v2357 = vmul.f32 %v2229, 0.1
        %v2358 = vmul.f32 %v2230, 0.1
        %v2359 = vsel %vm2231, %v2167, %v2295
        %v2360 = vsel %vm2232, %v2168, %v2296
        %v2361 = vsel %vm2233, %v2169, %v2297
        %v2362 = vsel %vm2234, %v2170, %v2298
        %v2363 = vsel %vm2235, %v2171, %v2299
        %v2364 = vsel %vm2236, %v2172, %v2300
        %v2365 = vsel %vm2237, %v2173, %v2301
        %v2366 = vsel %vm2238, %v2174, %v2302
        %v2367 = vsel %vm2239, %v2175, %v2303
        %v2368 = vsel %vm2240, %v2176, %v2304
        %v2369 = vsel %vm2241, %v2177, %v2305
        %v2370 = vsel %vm2242, %v2178, %v2306
        %v2371 = vsel %vm2243, %v2179, %v2307
        %v2372 = vsel %vm2244, %v2180, %v2308
        %v2373 = vsel %vm2245, %v2181, %v2309
        %v2374 = vsel %vm2246, %v2182, %v2310
        %v2375 = vsel %vm2247, %v2183, %v2311
        %v2376 = vsel %vm2248, %v2184, %v2312
        %v2377 = vsel %vm2249, %v2185, %v2313
        %v2378 = vsel %vm2250, %v2186, %v2314
        %v2379 = vsel %vm2251, %v2187, %v2315
        %v2380 = vsel %vm2252, %v2188, %v2316
        %v2381 = vsel %vm2253, %v2189, %v2317
        %v2382 = vsel %vm2254, %v2190, %v2318
        %v2383 = vsel %vm2255, %v2191, %v2319
        %v2384 = vsel %vm2256, %v2192, %v2320
        %v2385 = vsel %vm2257, %v2193, %v2321
        %v2386 = vsel %vm2258, %v2194, %v2322
        %v2387 = vsel %vm2259, %v2195, %v2323
        %v2388 = vsel %vm2260, %v2196, %v2324
        %v2389 = vsel %vm2261, %v2197, %v2325
        %v2390 = vsel %vm2262, %v2198, %v2326
        %v2391 = vsel %vm2263, %v2199, %v2327
        %v2392 = vsel %vm2264, %v2200, %v2328
        %v2393 = vsel %vm2265, %v2201, %v2329
        %v2394 = vsel %vm2266, %v2202, %v2330
        %v2395 = vsel %vm2267, %v2203, %v2331
        %v2396 = vsel %vm2268, %v2204, %v2332
        %v2397 = vsel %vm2269, %v2205, %v2333
        %v2398 = vsel %vm2270, %v2206, %v2334
        %v2399 = vsel %vm2271, %v2207, %v2335
        %v2400 = vsel %vm2272, %v2208, %v2336
        %v2401 = vsel %vm2273, %v2209, %v2337
        %v2402 = vsel %vm2274, %v2210, %v2338
        %v2403 = vsel %vm2275, %v2211, %v2339
        %v2404 = vsel %vm2276, %v2212, %v2340
        %v2405 = vsel %vm2277, %v2213, %v2341
        %v2406 = vsel %vm2278, %v2214, %v2342
        %v2407 = vsel %vm2279, %v2215, %v2343
        %v2408 = vsel %vm2280, %v2216, %v2344
        %v2409 = vsel %vm2281, %v2217, %v2345
        %v2410 = vsel %vm2282, %v2218, %v2346
        %v2411 = vsel %vm2283, %v2219, %v2347
        %v2412 = vsel %vm2284, %v2220, %v2348
        %v2413 = vsel %vm2285, %v2221, %v2349
        %v2414 = vsel %vm2286, %v2222, %v2350
        %v2415 = vsel %vm2287, %v2223, %v2351
        %v2416 = vsel %vm2288, %v2224, %v2352
        %v2417 = vsel %vm2289, %v2225, %v2353
        %v2418 = vsel %vm2290, %v2226, %v2354
        %v2419 = vsel %vm2291, %v2227, %v2355
        %v2420 = vsel %vm2292, %v2228, %v2356
        %v2421 = vsel %vm2293, %v2229, %v2357
        %v2422 = vsel %vm2294, %v2230, %v2358
        %v2423 = vpack.c.bf16 %v2363, %v2359
        %v2424 = vpack.c.bf16 %v2364, %v2360
        %v2425 = vpack.c.bf16 %v2365, %v2361
        %v2426 = vpack.c.bf16 %v2366, %v2362
        %v2427 = vpack.c.bf16 %v2371, %v2367
        %v2428 = vpack.c.bf16 %v2372, %v2368
        %v2429 = vpack.c.bf16 %v2373, %v2369
        %v2430 = vpack.c.bf16 %v2374, %v2370
        %v2431 = vpack.c.bf16 %v2379, %v2375
        %v2432 = vpack.c.bf16 %v2380, %v2376
        %v2433 = vpack.c.bf16 %v2381, %v2377
        %v2434 = vpack.c.bf16 %v2382, %v2378
        %v2435 = vpack.c.bf16 %v2387, %v2383
        %v2436 = vpack.c.bf16 %v2388, %v2384
        %v2437 = vpack.c.bf16 %v2389, %v2385
        %v2438 = vpack.c.bf16 %v2390, %v2386
        %v2439 = vpack.c.bf16 %v2395, %v2391
        %v2440 = vpack.c.bf16 %v2396, %v2392
        %v2441 = vpack.c.bf16 %v2397, %v2393
        %v2442 = vpack.c.bf16 %v2398, %v2394
        %v2443 = vpack.c.bf16 %v2403, %v2399
        %v2444 = vpack.c.bf16 %v2404, %v2400
        %v2445 = vpack.c.bf16 %v2405, %v2401
        %v2446 = vpack.c.bf16 %v2406, %v2402
        %v2447 = vpack.c.bf16 %v2411, %v2407
        %v2448 = vpack.c.bf16 %v2412, %v2408
        %v2449 = vpack.c.bf16 %v2413, %v2409
        %v2450 = vpack.c.bf16 %v2414, %v2410
        %v2451 = vpack.c.bf16 %v2419, %v2415
        %v2452 = vpack.c.bf16 %v2420, %v2416
        %v2453 = vpack.c.bf16 %v2421, %v2417
        %v2454 = vpack.c.bf16 %v2422, %v2418
        %v2455 = vld [vmem:[#allocation7] sm:$0xff]
        %v2456 = vld [vmem:[#allocation7 + $0x8] sm:$0xff]
        %v2457 = vld [vmem:[#allocation7 + $0x10] sm:$0xff]
        %v2458 = vld [vmem:[#allocation7 + $0x18] sm:$0xff]
        %v2459 = vld [vmem:[#allocation7 + $0x20] sm:$0xff]
        %v2460 = vld [vmem:[#allocation7 + $0x28] sm:$0xff]
        %v2461 = vld [vmem:[#allocation7 + $0x30] sm:$0xff]
        %v2462 = vld [vmem:[#allocation7 + $0x38] sm:$0xff]
        %v2463 = vld [vmem:[#allocation7 + $0x40] sm:$0xff]
        %v2464 = vld [vmem:[#allocation7 + $0x48] sm:$0xff]
        %v2465 = vld [vmem:[#allocation7 + $0x50] sm:$0xff]
        %v2466 = vld [vmem:[#allocation7 + $0x58] sm:$0xff]
        %v2467 = vld [vmem:[#allocation7 + $0x60] sm:$0xff]
        %v2468 = vld [vmem:[#allocation7 + $0x68] sm:$0xff]
        %v2469 = vld [vmem:[#allocation7 + $0x70] sm:$0xff]
        %v2470 = vld [vmem:[#allocation7 + $0x78] sm:$0xff]
        %v2471 = vld [vmem:[#allocation7 + $0x80] sm:$0xff]
        %v2472 = vld [vmem:[#allocation7 + $0x88] sm:$0xff]
        %v2473 = vld [vmem:[#allocation7 + $0x90] sm:$0xff]
        %v2474 = vld [vmem:[#allocation7 + $0x98] sm:$0xff]
        %v2475 = vld [vmem:[#allocation7 + $0xa0] sm:$0xff]
        %v2476 = vld [vmem:[#allocation7 + $0xa8] sm:$0xff]
        %v2477 = vld [vmem:[#allocation7 + $0xb0] sm:$0xff]
        %v2478 = vld [vmem:[#allocation7 + $0xb8] sm:$0xff]
        %v2479 = vld [vmem:[#allocation7 + $0xc0] sm:$0xff]
        %v2480 = vld [vmem:[#allocation7 + $0xc8] sm:$0xff]
        %v2481 = vld [vmem:[#allocation7 + $0xd0] sm:$0xff]
        %v2482 = vld [vmem:[#allocation7 + $0xd8] sm:$0xff]
        %v2483 = vld [vmem:[#allocation7 + $0xe0] sm:$0xff]
        %v2484 = vld [vmem:[#allocation7 + $0xe8] sm:$0xff]
        %v2485 = vld [vmem:[#allocation7 + $0xf0] sm:$0xff]
        %v2486 = vld [vmem:[#allocation7 + $0xf8] sm:$0xff]
        %v2487 = vld [vmem:[#allocation7 + $0x100] sm:$0xff]
        %v2488 = vld [vmem:[#allocation7 + $0x108] sm:$0xff]
        %v2489 = vld [vmem:[#allocation7 + $0x110] sm:$0xff]
        %v2490 = vld [vmem:[#allocation7 + $0x118] sm:$0xff]
        %v2491 = vld [vmem:[#allocation7 + $0x120] sm:$0xff]
        %v2492 = vld [vmem:[#allocation7 + $0x128] sm:$0xff]
        %v2493 = vld [vmem:[#allocation7 + $0x130] sm:$0xff]
        %v2494 = vld [vmem:[#allocation7 + $0x138] sm:$0xff]
        %v2495 = vld [vmem:[#allocation7 + $0x140] sm:$0xff]
        %v2496 = vld [vmem:[#allocation7 + $0x148] sm:$0xff]
        %v2497 = vld [vmem:[#allocation7 + $0x150] sm:$0xff]
        %v2498 = vld [vmem:[#allocation7 + $0x158] sm:$0xff]
        %v2499 = vld [vmem:[#allocation7 + $0x160] sm:$0xff]
        %v2500 = vld [vmem:[#allocation7 + $0x168] sm:$0xff]
        %v2501 = vld [vmem:[#allocation7 + $0x170] sm:$0xff]
        %v2502 = vld [vmem:[#allocation7 + $0x178] sm:$0xff]
        %v2503 = vld [vmem:[#allocation7 + $0x180] sm:$0xff]
        %v2504 = vld [vmem:[#allocation7 + $0x188] sm:$0xff]
        %v2505 = vld [vmem:[#allocation7 + $0x190] sm:$0xff]
        %v2506 = vld [vmem:[#allocation7 + $0x198] sm:$0xff]
        %v2507 = vld [vmem:[#allocation7 + $0x1a0] sm:$0xff]
        %v2508 = vld [vmem:[#allocation7 + $0x1a8] sm:$0xff]
        %v2509 = vld [vmem:[#allocation7 + $0x1b0] sm:$0xff]
        %v2510 = vld [vmem:[#allocation7 + $0x1b8] sm:$0xff]
        %v2511 = vld [vmem:[#allocation7 + $0x1c0] sm:$0xff]
        %v2512 = vld [vmem:[#allocation7 + $0x1c8] sm:$0xff]
        %v2513 = vld [vmem:[#allocation7 + $0x1d0] sm:$0xff]
        %v2514 = vld [vmem:[#allocation7 + $0x1d8] sm:$0xff]
        %v2515 = vld [vmem:[#allocation7 + $0x1e0] sm:$0xff]
        %v2516 = vld [vmem:[#allocation7 + $0x1e8] sm:$0xff]
        %v2517 = vld [vmem:[#allocation7 + $0x1f0] sm:$0xff]
        %v2518 = vld [vmem:[#allocation7 + $0x1f8] sm:$0xff]
        %v2519 = vld [vmem:[%s10] sm:$0x3]
        %v2521 = vlaneseq
        %v2522 = vshrl.u32 %v2521, 7
        %v2523 = vsub.s32 0, %v2522
        %v2524 = vrot.slane %v2519, %v2523
        %v2525 = vlaneseq
        %v2526 = vshrl.u32 %v2525, 7
        %v2527 = vsub.s32 1, %v2526
        %v2528 = vrot.slane %v2519, %v2527
        %v2595 = vunpack.c.l.b16 %v2455
        %v2596 = vunpack.c.h.b16 %v2455
        %v2597 = vunpack.c.l.b16 %v2456
        %v2598 = vunpack.c.h.b16 %v2456
        %v2599 = vunpack.c.l.b16 %v2457
        %v2600 = vunpack.c.h.b16 %v2457
        %v2601 = vunpack.c.l.b16 %v2458
        %v2602 = vunpack.c.h.b16 %v2458
        %v2603 = vunpack.c.l.b16 %v2459
        %v2604 = vunpack.c.h.b16 %v2459
        %v2605 = vunpack.c.l.b16 %v2460
        %v2606 = vunpack.c.h.b16 %v2460
        %v2607 = vunpack.c.l.b16 %v2461
        %v2608 = vunpack.c.h.b16 %v2461
        %v2609 = vunpack.c.l.b16 %v2462
        %v2610 = vunpack.c.h.b16 %v2462
        %v2611 = vunpack.c.l.b16 %v2463
        %v2612 = vunpack.c.h.b16 %v2463
        %v2613 = vunpack.c.l.b16 %v2464
        %v2614 = vunpack.c.h.b16 %v2464
        %v2615 = vunpack.c.l.b16 %v2465
        %v2616 = vunpack.c.h.b16 %v2465
        %v2617 = vunpack.c.l.b16 %v2466
        %v2618 = vunpack.c.h.b16 %v2466
        %v2619 = vunpack.c.l.b16 %v2467
        %v2620 = vunpack.c.h.b16 %v2467
        %v2621 = vunpack.c.l.b16 %v2468
        %v2622 = vunpack.c.h.b16 %v2468
        %v2623 = vunpack.c.l.b16 %v2469
        %v2624 = vunpack.c.h.b16 %v2469
        %v2625 = vunpack.c.l.b16 %v2470
        %v2626 = vunpack.c.h.b16 %v2470
        %v2627 = vunpack.c.l.b16 %v2471
        %v2628 = vunpack.c.h.b16 %v2471
        %v2629 = vunpack.c.l.b16 %v2472
        %v2630 = vunpack.c.h.b16 %v2472
        %v2631 = vunpack.c.l.b16 %v2473
        %v2632 = vunpack.c.h.b16 %v2473
        %v2633 = vunpack.c.l.b16 %v2474
        %v2634 = vunpack.c.h.b16 %v2474
        %v2635 = vunpack.c.l.b16 %v2475
        %v2636 = vunpack.c.h.b16 %v2475
        %v2637 = vunpack.c.l.b16 %v2476
        %v2638 = vunpack.c.h.b16 %v2476
        %v2639 = vunpack.c.l.b16 %v2477
        %v2640 = vunpack.c.h.b16 %v2477
        %v2641 = vunpack.c.l.b16 %v2478
        %v2642 = vunpack.c.h.b16 %v2478
        %v2643 = vunpack.c.l.b16 %v2479
        %v2644 = vunpack.c.h.b16 %v2479
        %v2645 = vunpack.c.l.b16 %v2480
        %v2646 = vunpack.c.h.b16 %v2480
        %v2647 = vunpack.c.l.b16 %v2481
        %v2648 = vunpack.c.h.b16 %v2481
        %v2649 = vunpack.c.l.b16 %v2482
        %v2650 = vunpack.c.h.b16 %v2482
        %v2651 = vunpack.c.l.b16 %v2483
        %v2652 = vunpack.c.h.b16 %v2483
        %v2653 = vunpack.c.l.b16 %v2484
        %v2654 = vunpack.c.h.b16 %v2484
        %v2655 = vunpack.c.l.b16 %v2485
        %v2656 = vunpack.c.h.b16 %v2485
        %v2657 = vunpack.c.l.b16 %v2486
        %v2658 = vunpack.c.h.b16 %v2486
        %v2659 = vunpack.c.l.b16 %v2487
        %v2660 = vunpack.c.h.b16 %v2487
        %v2661 = vunpack.c.l.b16 %v2488
        %v2662 = vunpack.c.h.b16 %v2488
        %v2663 = vunpack.c.l.b16 %v2489
        %v2664 = vunpack.c.h.b16 %v2489
        %v2665 = vunpack.c.l.b16 %v2490
        %v2666 = vunpack.c.h.b16 %v2490
        %v2667 = vunpack.c.l.b16 %v2491
        %v2668 = vunpack.c.h.b16 %v2491
        %v2669 = vunpack.c.l.b16 %v2492
        %v2670 = vunpack.c.h.b16 %v2492
        %v2671 = vunpack.c.l.b16 %v2493
        %v2672 = vunpack.c.h.b16 %v2493
        %v2673 = vunpack.c.l.b16 %v2494
        %v2674 = vunpack.c.h.b16 %v2494
        %v2675 = vunpack.c.l.b16 %v2495
        %v2676 = vunpack.c.h.b16 %v2495
        %v2677 = vunpack.c.l.b16 %v2496
        %v2678 = vunpack.c.h.b16 %v2496
        %v2679 = vunpack.c.l.b16 %v2497
        %v2680 = vunpack.c.h.b16 %v2497
        %v2681 = vunpack.c.l.b16 %v2498
        %v2682 = vunpack.c.h.b16 %v2498
        %v2683 = vunpack.c.l.b16 %v2499
        %v2684 = vunpack.c.h.b16 %v2499
        %v2685 = vunpack.c.l.b16 %v2500
        %v2686 = vunpack.c.h.b16 %v2500
        %v2687 = vunpack.c.l.b16 %v2501
        %v2688 = vunpack.c.h.b16 %v2501
        %v2689 = vunpack.c.l.b16 %v2502
        %v2690 = vunpack.c.h.b16 %v2502
        %v2691 = vunpack.c.l.b16 %v2503
        %v2692 = vunpack.c.h.b16 %v2503
        %v2693 = vunpack.c.l.b16 %v2504
        %v2694 = vunpack.c.h.b16 %v2504
        %v2695 = vunpack.c.l.b16 %v2505
        %v2696 = vunpack.c.h.b16 %v2505
        %v2697 = vunpack.c.l.b16 %v2506
        %v2698 = vunpack.c.h.b16 %v2506
        %v2699 = vunpack.c.l.b16 %v2507
        %v2700 = vunpack.c.h.b16 %v2507
        %v2701 = vunpack.c.l.b16 %v2508
        %v2702 = vunpack.c.h.b16 %v2508
        %v2703 = vunpack.c.l.b16 %v2509
        %v2704 = vunpack.c.h.b16 %v2509
        %v2705 = vunpack.c.l.b16 %v2510
        %v2706 = vunpack.c.h.b16 %v2510
        %v2707 = vunpack.c.l.b16 %v2511
        %v2708 = vunpack.c.h.b16 %v2511
        %v2709 = vunpack.c.l.b16 %v2512
        %v2710 = vunpack.c.h.b16 %v2512
        %v2711 = vunpack.c.l.b16 %v2513
        %v2712 = vunpack.c.h.b16 %v2513
        %v2713 = vunpack.c.l.b16 %v2514
        %v2714 = vunpack.c.h.b16 %v2514
        %v2715 = vunpack.c.l.b16 %v2515
        %v2716 = vunpack.c.h.b16 %v2515
        %v2717 = vunpack.c.l.b16 %v2516
        %v2718 = vunpack.c.h.b16 %v2516
        %v2719 = vunpack.c.l.b16 %v2517
        %v2720 = vunpack.c.h.b16 %v2517
        %v2721 = vunpack.c.l.b16 %v2518
        %v2722 = vunpack.c.h.b16 %v2518
        %v2723 = vpack.c.b16 %v2597, %v2595
        %v2724 = vpack.c.b16 %v2598, %v2596
        %v2725 = vpack.c.b16 %v2601, %v2599
        %v2726 = vpack.c.b16 %v2602, %v2600
        %v2727 = vpack.c.b16 %v2605, %v2603
        %v2728 = vpack.c.b16 %v2606, %v2604
        %v2729 = vpack.c.b16 %v2609, %v2607
        %v2730 = vpack.c.b16 %v2610, %v2608
        %v2731 = vpack.c.b16 %v2613, %v2611
        %v2732 = vpack.c.b16 %v2614, %v2612
        %v2733 = vpack.c.b16 %v2617, %v2615
        %v2734 = vpack.c.b16 %v2618, %v2616
        %v2735 = vpack.c.b16 %v2621, %v2619
        %v2736 = vpack.c.b16 %v2622, %v2620
        %v2737 = vpack.c.b16 %v2625, %v2623
        %v2738 = vpack.c.b16 %v2626, %v2624
        %v2739 = vpack.c.b16 %v2629, %v2627
        %v2740 = vpack.c.b16 %v2630, %v2628
        %v2741 = vpack.c.b16 %v2633, %v2631
        %v2742 = vpack.c.b16 %v2634, %v2632
        %v2743 = vpack.c.b16 %v2637, %v2635
        %v2744 = vpack.c.b16 %v2638, %v2636
        %v2745 = vpack.c.b16 %v2641, %v2639
        %v2746 = vpack.c.b16 %v2642, %v2640
        %v2747 = vpack.c.b16 %v2645, %v2643
        %v2748 = vpack.c.b16 %v2646, %v2644
        %v2749 = vpack.c.b16 %v2649, %v2647
        %v2750 = vpack.c.b16 %v2650, %v2648
        %v2751 = vpack.c.b16 %v2653, %v2651
        %v2752 = vpack.c.b16 %v2654, %v2652
        %v2753 = vpack.c.b16 %v2657, %v2655
        %v2754 = vpack.c.b16 %v2658, %v2656
        %v2755 = vpack.c.b16 %v2661, %v2659
        %v2756 = vpack.c.b16 %v2662, %v2660
        %v2757 = vpack.c.b16 %v2665, %v2663
        %v2758 = vpack.c.b16 %v2666, %v2664
        %v2759 = vpack.c.b16 %v2669, %v2667
        %v2760 = vpack.c.b16 %v2670, %v2668
        %v2761 = vpack.c.b16 %v2673, %v2671
        %v2762 = vpack.c.b16 %v2674, %v2672
        %v2763 = vpack.c.b16 %v2677, %v2675
        %v2764 = vpack.c.b16 %v2678, %v2676
        %v2765 = vpack.c.b16 %v2681, %v2679
        %v2766 = vpack.c.b16 %v2682, %v2680
        %v2767 = vpack.c.b16 %v2685, %v2683
        %v2768 = vpack.c.b16 %v2686, %v2684
        %v2769 = vpack.c.b16 %v2689, %v2687
        %v2770 = vpack.c.b16 %v2690, %v2688
        %v2771 = vpack.c.b16 %v2693, %v2691
        %v2772 = vpack.c.b16 %v2694, %v2692
        %v2773 = vpack.c.b16 %v2697, %v2695
        %v2774 = vpack.c.b16 %v2698, %v2696
        %v2775 = vpack.c.b16 %v2701, %v2699
        %v2776 = vpack.c.b16 %v2702, %v2700
        %v2777 = vpack.c.b16 %v2705, %v2703
        %v2778 = vpack.c.b16 %v2706, %v2704
        %v2779 = vpack.c.b16 %v2709, %v2707
        %v2780 = vpack.c.b16 %v2710, %v2708
        %v2781 = vpack.c.b16 %v2713, %v2711
        %v2782 = vpack.c.b16 %v2714, %v2712
        %v2783 = vpack.c.b16 %v2717, %v2715
        %v2784 = vpack.c.b16 %v2718, %v2716
        %v2785 = vpack.c.b16 %v2721, %v2719
        %v2786 = vpack.c.b16 %v2722, %v2720
        %2851 = vmatprep.subr.bf16.mxu0 %v2738
        %2852 = vmatpush1.bf16.msra.mxu0 %v2737
        %2853 = vmatprep.subr.bf16.mxu0 %v2736
        %2854 = vmatpush1.bf16.msra.mxu0 %v2735
        %2855 = vmatprep.subr.bf16.mxu0 %v2734
        %2856 = vmatpush1.bf16.msra.mxu0 %v2733
        %2857 = vmatprep.subr.bf16.mxu0 %v2732
        %2858 = vmatpush1.bf16.msra.mxu0 %v2731
        %2859 = vmatprep.subr.bf16.mxu0 %v2730
        %2860 = vmatpush1.bf16.msra.mxu0 %v2729
        %2861 = vmatprep.subr.bf16.mxu0 %v2728
        %2862 = vmatpush1.bf16.msra.mxu0 %v2727
        %2863 = vmatprep.subr.bf16.mxu0 %v2726
        %2864 = vmatpush1.bf16.msra.mxu0 %v2725
        %2865 = vmatprep.subr.bf16.mxu0 %v2724
        %2866 = vmatpush1.bf16.msra.mxu0 %v2723
        %2867 = vmatprep.subr.bf16.mxu0 %v2754
        %2868 = vmatpush2.bf16.msra.mxu0 %v2753
        %2869 = vmatprep.subr.bf16.mxu0 %v2752
        %2870 = vmatpush2.bf16.msra.mxu0 %v2751
        %2871 = vmatprep.subr.bf16.mxu0 %v2750
        %2872 = vmatpush2.bf16.msra.mxu0 %v2749
        %2873 = vmatprep.subr.bf16.mxu0 %v2748
        %2874 = vmatpush2.bf16.msra.mxu0 %v2747
        %2875 = vmatprep.subr.bf16.mxu0 %v2746
        %2876 = vmatpush2.bf16.msra.mxu0 %v2745
        %2877 = vmatprep.subr.bf16.mxu0 %v2744
        %2878 = vmatpush2.bf16.msra.mxu0 %v2743
        %2879 = vmatprep.subr.bf16.mxu0 %v2742
        %2880 = vmatpush2.bf16.msra.mxu0 %v2741
        %2881 = vmatprep.subr.bf16.mxu0 %v2740
        %2882 = vmatpush2.bf16.msra.mxu0 %v2739
        %2883 = vmatprep.mubr.bf16.mxu0 %v2424
        %2884 = vmatmul.mubr.bf16.gmra.mxu0 %v2423
        %v2885 = vpop.f32.mrf.mxu0
        %v2886 = vadd.f32 %v2524, %v2885
        %v2887 = vpop.f32.mrf.mxu0
        %v2888 = vadd.f32 %v2528, %v2887
        %v2889 = vpop.f32.mrf.mxu0
        %v2890 = vadd.f32 %v2524, %v2889
        %v2891 = vpop.f32.mrf.mxu0
        %v2892 = vadd.f32 %v2528, %v2891
        %2893 = vmatprep.mubr.bf16.mxu0 %v2428
        %2894 = vmatmul.mubr.bf16.gmra.mxu0 %v2427
        %v2895 = vpop.f32.mrf.mxu0
        %v2896 = vadd.f32 %v2524, %v2895
        %v2897 = vpop.f32.mrf.mxu0
        %v2898 = vadd.f32 %v2528, %v2897
        %v2899 = vpop.f32.mrf.mxu0
        %v2900 = vadd.f32 %v2524, %v2899
        %v2901 = vpop.f32.mrf.mxu0
        %v2902 = vadd.f32 %v2528, %v2901
        %2903 = vmatprep.mubr.bf16.mxu0 %v2432
        %2904 = vmatmul.mubr.bf16.gmra.mxu0 %v2431
        %v2905 = vpop.f32.mrf.mxu0
        %v2906 = vadd.f32 %v2524, %v2905
        %v2907 = vpop.f32.mrf.mxu0
        %v2908 = vadd.f32 %v2528, %v2907
        %v2909 = vpop.f32.mrf.mxu0
        %v2910 = vadd.f32 %v2524, %v2909
        %v2911 = vpop.f32.mrf.mxu0
        %v2912 = vadd.f32 %v2528, %v2911
        %2913 = vmatprep.mubr.bf16.mxu0 %v2436
        %2914 = vmatmul.mubr.bf16.gmra.mxu0 %v2435
        %v2915 = vpop.f32.mrf.mxu0
        %v2916 = vadd.f32 %v2524, %v2915
        %v2917 = vpop.f32.mrf.mxu0
        %v2918 = vadd.f32 %v2528, %v2917
        %v2919 = vpop.f32.mrf.mxu0
        %v2920 = vadd.f32 %v2524, %v2919
        %v2921 = vpop.f32.mrf.mxu0
        %v2922 = vadd.f32 %v2528, %v2921
        %2923 = vmatprep.mubr.bf16.mxu0 %v2440
        %2924 = vmatmul.mubr.bf16.gmra.mxu0 %v2439
        %v2925 = vpop.f32.mrf.mxu0
        %v2926 = vadd.f32 %v2524, %v2925
        %v2927 = vpop.f32.mrf.mxu0
        %v2928 = vadd.f32 %v2528, %v2927
        %v2929 = vpop.f32.mrf.mxu0
        %v2930 = vadd.f32 %v2524, %v2929
        %v2931 = vpop.f32.mrf.mxu0
        %v2932 = vadd.f32 %v2528, %v2931
        %2933 = vmatprep.mubr.bf16.mxu0 %v2444
        %2934 = vmatmul.mubr.bf16.gmra.mxu0 %v2443
        %v2935 = vpop.f32.mrf.mxu0
        %v2936 = vadd.f32 %v2524, %v2935
        %v2937 = vpop.f32.mrf.mxu0
        %v2938 = vadd.f32 %v2528, %v2937
        %v2939 = vpop.f32.mrf.mxu0
        %v2940 = vadd.f32 %v2524, %v2939
        %v2941 = vpop.f32.mrf.mxu0
        %v2942 = vadd.f32 %v2528, %v2941
        %2943 = vmatprep.mubr.bf16.mxu0 %v2448
        %2944 = vmatmul.mubr.bf16.gmra.mxu0 %v2447
        %v2945 = vpop.f32.mrf.mxu0
        %v2946 = vadd.f32 %v2524, %v2945
        %v2947 = vpop.f32.mrf.mxu0
        %v2948 = vadd.f32 %v2528, %v2947
        %v2949 = vpop.f32.mrf.mxu0
        %v2950 = vadd.f32 %v2524, %v2949
        %v2951 = vpop.f32.mrf.mxu0
        %v2952 = vadd.f32 %v2528, %v2951
        %2953 = vmatprep.mubr.bf16.mxu0 %v2452
        %2954 = vmatmul.mubr.bf16.gmra.mxu0 %v2451
        %v2955 = vpop.f32.mrf.mxu0
        %v2956 = vadd.f32 %v2524, %v2955
        %v2957 = vpop.f32.mrf.mxu0
        %v2958 = vadd.f32 %v2528, %v2957
        %v2959 = vpop.f32.mrf.mxu0
        %v2960 = vadd.f32 %v2524, %v2959
        %v2961 = vpop.f32.mrf.mxu0
        %v2962 = vadd.f32 %v2528, %v2961
        %2963 = vdwg.mxu0
        %2964 = vmatprep.subr.bf16.mxu0 %v2770
        %2965 = vmatpush1.bf16.msra.mxu0 %v2769
        %2966 = vmatprep.subr.bf16.mxu0 %v2768
        %2967 = vmatpush1.bf16.msra.mxu0 %v2767
        %2968 = vmatprep.subr.bf16.mxu0 %v2766
        %2969 = vmatpush1.bf16.msra.mxu0 %v2765
        %2970 = vmatprep.subr.bf16.mxu0 %v2764
        %2971 = vmatpush1.bf16.msra.mxu0 %v2763
        %2972 = vmatprep.subr.bf16.mxu0 %v2762
        %2973 = vmatpush1.bf16.msra.mxu0 %v2761
        %2974 = vmatprep.subr.bf16.mxu0 %v2760
        %2975 = vmatpush1.bf16.msra.mxu0 %v2759
        %2976 = vmatprep.subr.bf16.mxu0 %v2758
        %2977 = vmatpush1.bf16.msra.mxu0 %v2757
        %2978 = vmatprep.subr.bf16.mxu0 %v2756
        %2979 = vmatpush1.bf16.msra.mxu0 %v2755
        %2980 = vmatprep.subr.bf16.mxu0 %v2786
        %2981 = vmatpush2.bf16.msra.mxu0 %v2785
        %2982 = vmatprep.subr.bf16.mxu0 %v2784
        %2983 = vmatpush2.bf16.msra.mxu0 %v2783
        %2984 = vmatprep.subr.bf16.mxu0 %v2782
        %2985 = vmatpush2.bf16.msra.mxu0 %v2781
        %2986 = vmatprep.subr.bf16.mxu0 %v2780
        %2987 = vmatpush2.bf16.msra.mxu0 %v2779
        %2988 = vmatprep.subr.bf16.mxu0 %v2778
        %2989 = vmatpush2.bf16.msra.mxu0 %v2777
        %2990 = vmatprep.subr.bf16.mxu0 %v2776
        %2991 = vmatpush2.bf16.msra.mxu0 %v2775
        %2992 = vmatprep.subr.bf16.mxu0 %v2774
        %2993 = vmatpush2.bf16.msra.mxu0 %v2773
        %2994 = vmatprep.subr.bf16.mxu0 %v2772
        %2995 = vmatpush2.bf16.msra.mxu0 %v2771
        %2996 = vmatprep.mubr.bf16.mxu0 %v2426
        %2997 = vmatmul.mubr.bf16.gmra.mxu0 %v2425
        %v2998 = vpop.f32.mrf.mxu0
        %v2999 = vadd.f32 %v2886, %v2998
        %v3000 = vpop.f32.mrf.mxu0
        %v3001 = vadd.f32 %v2888, %v3000
        %v3002 = vpop.f32.mrf.mxu0
        %v3003 = vadd.f32 %v2890, %v3002
        %v3004 = vpop.f32.mrf.mxu0
        %v3005 = vadd.f32 %v2892, %v3004
        %3006 = vmatprep.mubr.bf16.mxu0 %v2430
        %3007 = vmatmul.mubr.bf16.gmra.mxu0 %v2429
        %v3008 = vpop.f32.mrf.mxu0
        %v3009 = vadd.f32 %v2896, %v3008
        %v3010 = vpop.f32.mrf.mxu0
        %v3011 = vadd.f32 %v2898, %v3010
        %v3012 = vpop.f32.mrf.mxu0
        %v3013 = vadd.f32 %v2900, %v3012
        %v3014 = vpop.f32.mrf.mxu0
        %v3015 = vadd.f32 %v2902, %v3014
        %3016 = vmatprep.mubr.bf16.mxu0 %v2434
        %3017 = vmatmul.mubr.bf16.gmra.mxu0 %v2433
        %v3018 = vpop.f32.mrf.mxu0
        %v3019 = vadd.f32 %v2906, %v3018
        %v3020 = vpop.f32.mrf.mxu0
        %v3021 = vadd.f32 %v2908, %v3020
        %v3022 = vpop.f32.mrf.mxu0
        %v3023 = vadd.f32 %v2910, %v3022
        %v3024 = vpop.f32.mrf.mxu0
        %v3025 = vadd.f32 %v2912, %v3024
        %3026 = vmatprep.mubr.bf16.mxu0 %v2438
        %3027 = vmatmul.mubr.bf16.gmra.mxu0 %v2437
        %v3028 = vpop.f32.mrf.mxu0
        %v3029 = vadd.f32 %v2916, %v3028
        %v3030 = vpop.f32.mrf.mxu0
        %v3031 = vadd.f32 %v2918, %v3030
        %v3032 = vpop.f32.mrf.mxu0
        %v3033 = vadd.f32 %v2920, %v3032
        %v3034 = vpop.f32.mrf.mxu0
        %v3035 = vadd.f32 %v2922, %v3034
        %3036 = vmatprep.mubr.bf16.mxu0 %v2442
        %3037 = vmatmul.mubr.bf16.gmra.mxu0 %v2441
        %v3038 = vpop.f32.mrf.mxu0
        %v3039 = vadd.f32 %v2926, %v3038
        %v3040 = vpop.f32.mrf.mxu0
        %v3041 = vadd.f32 %v2928, %v3040
        %v3042 = vpop.f32.mrf.mxu0
        %v3043 = vadd.f32 %v2930, %v3042
        %v3044 = vpop.f32.mrf.mxu0
        %v3045 = vadd.f32 %v2932, %v3044
        %3046 = vmatprep.mubr.bf16.mxu0 %v2446
        %3047 = vmatmul.mubr.bf16.gmra.mxu0 %v2445
        %v3048 = vpop.f32.mrf.mxu0
        %v3049 = vadd.f32 %v2936, %v3048
        %v3050 = vpop.f32.mrf.mxu0
        %v3051 = vadd.f32 %v2938, %v3050
        %v3052 = vpop.f32.mrf.mxu0
        %v3053 = vadd.f32 %v2940, %v3052
        %v3054 = vpop.f32.mrf.mxu0
        %v3055 = vadd.f32 %v2942, %v3054
        %3056 = vmatprep.mubr.bf16.mxu0 %v2450
        %3057 = vmatmul.mubr.bf16.gmra.mxu0 %v2449
        %v3058 = vpop.f32.mrf.mxu0
        %v3059 = vadd.f32 %v2946, %v3058
        %v3060 = vpop.f32.mrf.mxu0
        %v3061 = vadd.f32 %v2948, %v3060
        %v3062 = vpop.f32.mrf.mxu0
        %v3063 = vadd.f32 %v2950, %v3062
        %v3064 = vpop.f32.mrf.mxu0
        %v3065 = vadd.f32 %v2952, %v3064
        %3066 = vmatprep.mubr.bf16.mxu0 %v2454
        %3067 = vmatmul.mubr.bf16.gmra.mxu0 %v2453
        %v3068 = vpop.f32.mrf.mxu0
        %v3069 = vadd.f32 %v2956, %v3068
        %v3070 = vpop.f32.mrf.mxu0
        %v3071 = vadd.f32 %v2958, %v3070
        %v3072 = vpop.f32.mrf.mxu0
        %v3073 = vadd.f32 %v2960, %v3072
        %v3074 = vpop.f32.mrf.mxu0
        %v3075 = vadd.f32 %v2962, %v3074
        %3076 = vdwg.mxu0
        %v3077 = vadd.f32 %v2999, %v1782
        %v3078 = vadd.f32 %v3001, %v1783
        %v3079 = vadd.f32 %v3003, %v1784
        %v3080 = vadd.f32 %v3005, %v1785
        %v3081 = vadd.f32 %v3009, %v1786
        %v3082 = vadd.f32 %v3011, %v1787
        %v3083 = vadd.f32 %v3013, %v1788
        %v3084 = vadd.f32 %v3015, %v1789
        %v3085 = vadd.f32 %v3019, %v1790
        %v3086 = vadd.f32 %v3021, %v1791
        %v3087 = vadd.f32 %v3023, %v1792
        %v3088 = vadd.f32 %v3025, %v1793
        %v3089 = vadd.f32 %v3029, %v1794
        %v3090 = vadd.f32 %v3031, %v1795
        %v3091 = vadd.f32 %v3033, %v1796
        %v3092 = vadd.f32 %v3035, %v1797
        %v3093 = vadd.f32 %v3039, %v1798
        %v3094 = vadd.f32 %v3041, %v1799
        %v3095 = vadd.f32 %v3043, %v1800
        %v3096 = vadd.f32 %v3045, %v1801
        %v3097 = vadd.f32 %v3049, %v1802
        %v3098 = vadd.f32 %v3051, %v1803
        %v3099 = vadd.f32 %v3053, %v1804
        %v3100 = vadd.f32 %v3055, %v1805
        %v3101 = vadd.f32 %v3059, %v1806
        %v3102 = vadd.f32 %v3061, %v1807
        %v3103 = vadd.f32 %v3063, %v1808
        %v3104 = vadd.f32 %v3065, %v1809
        %v3105 = vadd.f32 %v3069, %v1810
        %v3106 = vadd.f32 %v3071, %v1811
        %v3107 = vadd.f32 %v3073, %v1812
        %v3108 = vadd.f32 %v3075, %v1813
        %v3109 = vpack.c.bf16 %v3079, %v3077
        %v3110 = vpack.c.bf16 %v3080, %v3078
        %v3111 = vpack.c.bf16 %v3083, %v3081
        %v3112 = vpack.c.bf16 %v3084, %v3082
        %v3113 = vpack.c.bf16 %v3087, %v3085
        %v3114 = vpack.c.bf16 %v3088, %v3086
        %v3115 = vpack.c.bf16 %v3091, %v3089
        %v3116 = vpack.c.bf16 %v3092, %v3090
        %v3117 = vpack.c.bf16 %v3095, %v3093
        %v3118 = vpack.c.bf16 %v3096, %v3094
        %v3119 = vpack.c.bf16 %v3099, %v3097
        %v3120 = vpack.c.bf16 %v3100, %v3098
        %v3121 = vpack.c.bf16 %v3103, %v3101
        %v3122 = vpack.c.bf16 %v3104, %v3102
        %v3123 = vpack.c.bf16 %v3107, %v3105
        %v3124 = vpack.c.bf16 %v3108, %v3106
        %v3125 = vld [vmem:[%s11] sm:$0xf]
        %v3126 = vld [vmem:[%s11 + $0x4] sm:$0xf]
        %v3127 = vld [vmem:[%s11 + $0x8] sm:$0xf]
        %v3128 = vld [vmem:[%s11 + $0xc] sm:$0xf]
        %v3129 = vld [vmem:[%s11 + $0x10] sm:$0xf]
        %v3130 = vld [vmem:[%s11 + $0x14] sm:$0xf]
        %v3131 = vld [vmem:[%s11 + $0x18] sm:$0xf]
        %v3132 = vld [vmem:[%s11 + $0x1c] sm:$0xf]
        %v3133 = vld [vmem:[%s11 + $0x20] sm:$0xf]
        %v3134 = vld [vmem:[%s11 + $0x24] sm:$0xf]
        %v3135 = vld [vmem:[%s11 + $0x28] sm:$0xf]
        %v3136 = vld [vmem:[%s11 + $0x2c] sm:$0xf]
        %v3137 = vld [vmem:[%s11 + $0x30] sm:$0xf]
        %v3138 = vld [vmem:[%s11 + $0x34] sm:$0xf]
        %v3139 = vld [vmem:[%s11 + $0x38] sm:$0xf]
        %v3140 = vld [vmem:[%s11 + $0x3c] sm:$0xf]
        %v3141 = vld [vmem:[%s11 + $0x40] sm:$0xf]
        %v3142 = vld [vmem:[%s11 + $0x44] sm:$0xf]
        %v3143 = vld [vmem:[%s11 + $0x48] sm:$0xf]
        %v3144 = vld [vmem:[%s11 + $0x4c] sm:$0xf]
        %v3145 = vld [vmem:[%s11 + $0x50] sm:$0xf]
        %v3146 = vld [vmem:[%s11 + $0x54] sm:$0xf]
        %v3147 = vld [vmem:[%s11 + $0x58] sm:$0xf]
        %v3148 = vld [vmem:[%s11 + $0x5c] sm:$0xf]
        %v3149 = vld [vmem:[%s11 + $0x60] sm:$0xf]
        %v3150 = vld [vmem:[%s11 + $0x64] sm:$0xf]
        %v3151 = vld [vmem:[%s11 + $0x68] sm:$0xf]
        %v3152 = vld [vmem:[%s11 + $0x6c] sm:$0xf]
        %v3153 = vld [vmem:[%s11 + $0x70] sm:$0xf]
        %v3154 = vld [vmem:[%s11 + $0x74] sm:$0xf]
        %v3155 = vld [vmem:[%s11 + $0x78] sm:$0xf]
        %v3156 = vld [vmem:[%s11 + $0x7c] sm:$0xf]
        %v3157 = vld [vmem:[%s12] sm:$0x1]
        %v3159 = vlaneseq
        %v3160 = vshrl.u32 %v3159, 7
        %v3161 = vsub.s32 0, %v3160
        %v3162 = vrot.slane %v3157, %v3161
        %v3196 = vunpack.c.l.b16 %v3125
        %v3197 = vunpack.c.l.b16 %v3126
        %v3198 = vunpack.c.l.b16 %v3127
        %v3199 = vunpack.c.l.b16 %v3128
        %v3200 = vunpack.c.l.b16 %v3129
        %v3201 = vunpack.c.l.b16 %v3130
        %v3202 = vunpack.c.l.b16 %v3131
        %v3203 = vunpack.c.l.b16 %v3132
        %v3204 = vunpack.c.l.b16 %v3133
        %v3205 = vunpack.c.l.b16 %v3134
        %v3206 = vunpack.c.l.b16 %v3135
        %v3207 = vunpack.c.l.b16 %v3136
        %v3208 = vunpack.c.l.b16 %v3137
        %v3209 = vunpack.c.l.b16 %v3138
        %v3210 = vunpack.c.l.b16 %v3139
        %v3211 = vunpack.c.l.b16 %v3140
        %v3212 = vunpack.c.l.b16 %v3141
        %v3213 = vunpack.c.l.b16 %v3142
        %v3214 = vunpack.c.l.b16 %v3143
        %v3215 = vunpack.c.l.b16 %v3144
        %v3216 = vunpack.c.l.b16 %v3145
        %v3217 = vunpack.c.l.b16 %v3146
        %v3218 = vunpack.c.l.b16 %v3147
        %v3219 = vunpack.c.l.b16 %v3148
        %v3220 = vunpack.c.l.b16 %v3149
        %v3221 = vunpack.c.l.b16 %v3150
        %v3222 = vunpack.c.l.b16 %v3151
        %v3223 = vunpack.c.l.b16 %v3152
        %v3224 = vunpack.c.l.b16 %v3153
        %v3225 = vunpack.c.l.b16 %v3154
        %v3226 = vunpack.c.l.b16 %v3155
        %v3227 = vunpack.c.l.b16 %v3156
        %v3228 = vpack.c.b16 %v3197, %v3196
        %v3229 = vpack.c.b16 %v3199, %v3198
        %v3230 = vpack.c.b16 %v3201, %v3200
        %v3231 = vpack.c.b16 %v3203, %v3202
        %v3232 = vpack.c.b16 %v3205, %v3204
        %v3233 = vpack.c.b16 %v3207, %v3206
        %v3234 = vpack.c.b16 %v3209, %v3208
        %v3235 = vpack.c.b16 %v3211, %v3210
        %v3236 = vpack.c.b16 %v3213, %v3212
        %v3237 = vpack.c.b16 %v3215, %v3214
        %v3238 = vpack.c.b16 %v3217, %v3216
        %v3239 = vpack.c.b16 %v3219, %v3218
        %v3240 = vpack.c.b16 %v3221, %v3220
        %v3241 = vpack.c.b16 %v3223, %v3222
        %v3242 = vpack.c.b16 %v3225, %v3224
        %v3243 = vpack.c.b16 %v3227, %v3226
        %3260 = vmatprep.subr.bf16.mxu0 0
        %3261 = vmatpush1.bf16.msra.mxu0 %v3235
        %3262 = vmatprep.subr.bf16.mxu0 0
        %3263 = vmatpush1.bf16.msra.mxu0 %v3234
        %3264 = vmatprep.subr.bf16.mxu0 0
        %3265 = vmatpush1.bf16.msra.mxu0 %v3233
        %3266 = vmatprep.subr.bf16.mxu0 0
        %3267 = vmatpush1.bf16.msra.mxu0 %v3232
        %3268 = vmatprep.subr.bf16.mxu0 0
        %3269 = vmatpush1.bf16.msra.mxu0 %v3231
        %3270 = vmatprep.subr.bf16.mxu0 0
        %3271 = vmatpush1.bf16.msra.mxu0 %v3230
        %3272 = vmatprep.subr.bf16.mxu0 0
        %3273 = vmatpush1.bf16.msra.mxu0 %v3229
        %3274 = vmatprep.subr.bf16.mxu0 0
        %3275 = vmatpush1.bf16.msra.mxu0 %v3228
        %3276 = vmatprep.subr.bf16.mxu0 0
        %3277 = vmatpush2.bf16.msra.mxu0 %v3243
        %3278 = vmatprep.subr.bf16.mxu0 0
        %3279 = vmatpush2.bf16.msra.mxu0 %v3242
        %3280 = vmatprep.subr.bf16.mxu0 0
        %3281 = vmatpush2.bf16.msra.mxu0 %v3241
        %3282 = vmatprep.subr.bf16.mxu0 0
        %3283 = vmatpush2.bf16.msra.mxu0 %v3240
        %3284 = vmatprep.subr.bf16.mxu0 0
        %3285 = vmatpush2.bf16.msra.mxu0 %v3239
        %3286 = vmatprep.subr.bf16.mxu0 0
        %3287 = vmatpush2.bf16.msra.mxu0 %v3238
        %3288 = vmatprep.subr.bf16.mxu0 0
        %3289 = vmatpush2.bf16.msra.mxu0 %v3237
        %3290 = vmatprep.subr.bf16.mxu0 0
        %3291 = vmatpush2.bf16.msra.mxu0 %v3236
        %3292 = vmatprep.mubr.bf16.mxu0 %v3110
        %3293 = vmatmul.mubr.bf16.gmra.mxu0 %v3109
        %v3294 = vpop.f32.mrf.mxu0
        %v3295 = vadd.f32 %v3162, %v3294
        %v3296 = vpop.f32.mrf.mxu0
        %v3297 = vpop.f32.mrf.mxu0
        %v3298 = vadd.f32 %v3162, %v3297
        %v3299 = vpop.f32.mrf.mxu0
        %3300 = vmatprep.mubr.bf16.mxu0 %v3112
        %3301 = vmatmul.mubr.bf16.gmra.mxu0 %v3111
        %v3302 = vpop.f32.mrf.mxu0
        %v3303 = vadd.f32 %v3162, %v3302
        %v3304 = vpop.f32.mrf.mxu0
        %v3305 = vpop.f32.mrf.mxu0
        %v3306 = vadd.f32 %v3162, %v3305
        %v3307 = vpop.f32.mrf.mxu0
        %3308 = vmatprep.mubr.bf16.mxu0 %v3114
        %3309 = vmatmul.mubr.bf16.gmra.mxu0 %v3113
        %v3310 = vpop.f32.mrf.mxu0
        %v3311 = vadd.f32 %v3162, %v3310
        %v3312 = vpop.f32.mrf.mxu0
        %v3313 = vpop.f32.mrf.mxu0
        %v3314 = vadd.f32 %v3162, %v3313
        %v3315 = vpop.f32.mrf.mxu0
        %3316 = vmatprep.mubr.bf16.mxu0 %v3116
        %3317 = vmatmul.mubr.bf16.gmra.mxu0 %v3115
        %v3318 = vpop.f32.mrf.mxu0
        %v3319 = vadd.f32 %v3162, %v3318
        %v3320 = vpop.f32.mrf.mxu0
        %v3321 = vpop.f32.mrf.mxu0
        %v3322 = vadd.f32 %v3162, %v3321
        %v3323 = vpop.f32.mrf.mxu0
        %3324 = vmatprep.mubr.bf16.mxu0 %v3118
        %3325 = vmatmul.mubr.bf16.gmra.mxu0 %v3117
        %v3326 = vpop.f32.mrf.mxu0
        %v3327 = vadd.f32 %v3162, %v3326
        %v3328 = vpop.f32.mrf.mxu0
        %v3329 = vpop.f32.mrf.mxu0
        %v3330 = vadd.f32 %v3162, %v3329
        %v3331 = vpop.f32.mrf.mxu0
        %3332 = vmatprep.mubr.bf16.mxu0 %v3120
        %3333 = vmatmul.mubr.bf16.gmra.mxu0 %v3119
        %v3334 = vpop.f32.mrf.mxu0
        %v3335 = vadd.f32 %v3162, %v3334
        %v3336 = vpop.f32.mrf.mxu0
        %v3337 = vpop.f32.mrf.mxu0
        %v3338 = vadd.f32 %v3162, %v3337
        %v3339 = vpop.f32.mrf.mxu0
        %3340 = vmatprep.mubr.bf16.mxu0 %v3122
        %3341 = vmatmul.mubr.bf16.gmra.mxu0 %v3121
        %v3342 = vpop.f32.mrf.mxu0
        %v3343 = vadd.f32 %v3162, %v3342
        %v3344 = vpop.f32.mrf.mxu0
        %v3345 = vpop.f32.mrf.mxu0
        %v3346 = vadd.f32 %v3162, %v3345
        %v3347 = vpop.f32.mrf.mxu0
        %3348 = vmatprep.mubr.bf16.mxu0 %v3124
        %3349 = vmatmul.mubr.bf16.gmra.mxu0 %v3123
        %v3350 = vpop.f32.mrf.mxu0
        %v3351 = vadd.f32 %v3162, %v3350
        %v3352 = vpop.f32.mrf.mxu0
        %v3353 = vpop.f32.mrf.mxu0
        %v3354 = vadd.f32 %v3162, %v3353
        %v3355 = vpop.f32.mrf.mxu0
        %3356 = vdwg.mxu0
        %v3357 = vadd.f32 %v3077, %v3078
        %3358 = vadd.xlane.f32.xlu0 %v3357
        %v3359 = vpop.xlane.xlu0 %3358
        %v3360 = vadd.f32 %v3079, %v3080
        %3361 = vadd.xlane.f32.xlu0 %v3360
        %v3362 = vpop.xlane.xlu0 %3361
        %v3363 = vadd.f32 %v3081, %v3082
        %3364 = vadd.xlane.f32.xlu0 %v3363
        %v3365 = vpop.xlane.xlu0 %3364
        %v3366 = vadd.f32 %v3083, %v3084
        %3367 = vadd.xlane.f32.xlu0 %v3366
        %v3368 = vpop.xlane.xlu0 %3367
        %v3369 = vadd.f32 %v3085, %v3086
        %3370 = vadd.xlane.f32.xlu0 %v3369
        %v3371 = vpop.xlane.xlu0 %3370
        %v3372 = vadd.f32 %v3087, %v3088
        %3373 = vadd.xlane.f32.xlu0 %v3372
        %v3374 = vpop.xlane.xlu0 %3373
        %v3375 = vadd.f32 %v3089, %v3090
        %3376 = vadd.xlane.f32.xlu0 %v3375
        %v3377 = vpop.xlane.xlu0 %3376
        %v3378 = vadd.f32 %v3091, %v3092
        %3379 = vadd.xlane.f32.xlu0 %v3378
        %v3380 = vpop.xlane.xlu0 %3379
        %v3381 = vadd.f32 %v3093, %v3094
        %3382 = vadd.xlane.f32.xlu0 %v3381
        %v3383 = vpop.xlane.xlu0 %3382
        %v3384 = vadd.f32 %v3095, %v3096
        %3385 = vadd.xlane.f32.xlu0 %v3384
        %v3386 = vpop.xlane.xlu0 %3385
        %v3387 = vadd.f32 %v3097, %v3098
        %3388 = vadd.xlane.f32.xlu0 %v3387
        %v3389 = vpop.xlane.xlu0 %3388
        %v3390 = vadd.f32 %v3099, %v3100
        %3391 = vadd.xlane.f32.xlu0 %v3390
        %v3392 = vpop.xlane.xlu0 %3391
        %v3393 = vadd.f32 %v3101, %v3102
        %3394 = vadd.xlane.f32.xlu0 %v3393
        %v3395 = vpop.xlane.xlu0 %3394
        %v3396 = vadd.f32 %v3103, %v3104
        %3397 = vadd.xlane.f32.xlu0 %v3396
        %v3398 = vpop.xlane.xlu0 %3397
        %v3399 = vadd.f32 %v3105, %v3106
        %3400 = vadd.xlane.f32.xlu0 %v3399
        %v3401 = vpop.xlane.xlu0 %3400
        %v3402 = vadd.f32 %v3107, %v3108
        %3403 = vadd.xlane.f32.xlu0 %v3402
        %v3404 = vpop.xlane.xlu0 %3403
        %v3405 = vrcp.pop 256.0
        %v3406 = vmul.f32 %v3359, %v3405
        %v3407 = vmul.f32 %v3362, %v3405
        %v3408 = vmul.f32 %v3365, %v3405
        %v3409 = vmul.f32 %v3368, %v3405
        %v3410 = vmul.f32 %v3371, %v3405
        %v3411 = vmul.f32 %v3374, %v3405
        %v3412 = vmul.f32 %v3377, %v3405
        %v3413 = vmul.f32 %v3380, %v3405
        %v3414 = vmul.f32 %v3383, %v3405
        %v3415 = vmul.f32 %v3386, %v3405
        %v3416 = vmul.f32 %v3389, %v3405
        %v3417 = vmul.f32 %v3392, %v3405
        %v3418 = vmul.f32 %v3395, %v3405
        %v3419 = vmul.f32 %v3398, %v3405
        %v3420 = vmul.f32 %v3401, %v3405
        %v3421 = vmul.f32 %v3404, %v3405
        %v3422 = vsub.f32 %v3077, %v3406
        %v3423 = vsub.f32 %v3078, %v3406
        %v3424 = vsub.f32 %v3079, %v3407
        %v3425 = vsub.f32 %v3080, %v3407
        %v3426 = vsub.f32 %v3081, %v3408
        %v3427 = vsub.f32 %v3082, %v3408
        %v3428 = vsub.f32 %v3083, %v3409
        %v3429 = vsub.f32 %v3084, %v3409
        %v3430 = vsub.f32 %v3085, %v3410
        %v3431 = vsub.f32 %v3086, %v3410
        %v3432 = vsub.f32 %v3087, %v3411
        %v3433 = vsub.f32 %v3088, %v3411
        %v3434 = vsub.f32 %v3089, %v3412
        %v3435 = vsub.f32 %v3090, %v3412
        %v3436 = vsub.f32 %v3091, %v3413
        %v3437 = vsub.f32 %v3092, %v3413
        %v3438 = vsub.f32 %v3093, %v3414
        %v3439 = vsub.f32 %v3094, %v3414
        %v3440 = vsub.f32 %v3095, %v3415
        %v3441 = vsub.f32 %v3096, %v3415
        %v3442 = vsub.f32 %v3097, %v3416
        %v3443 = vsub.f32 %v3098, %v3416
        %v3444 = vsub.f32 %v3099, %v3417
        %v3445 = vsub.f32 %v3100, %v3417
        %v3446 = vsub.f32 %v3101, %v3418
        %v3447 = vsub.f32 %v3102, %v3418
        %v3448 = vsub.f32 %v3103, %v3419
        %v3449 = vsub.f32 %v3104, %v3419
        %v3450 = vsub.f32 %v3105, %v3420
        %v3451 = vsub.f32 %v3106, %v3420
        %v3452 = vsub.f32 %v3107, %v3421
        %v3453 = vsub.f32 %v3108, %v3421
        %v3454 = vmul.f32 %v3422, %v3422
        %v3455 = vmul.f32 %v3423, %v3423
        %v3456 = vmul.f32 %v3424, %v3424
        %v3457 = vmul.f32 %v3425, %v3425
        %v3458 = vmul.f32 %v3426, %v3426
        %v3459 = vmul.f32 %v3427, %v3427
        %v3460 = vmul.f32 %v3428, %v3428
        %v3461 = vmul.f32 %v3429, %v3429
        %v3462 = vmul.f32 %v3430, %v3430
        %v3463 = vmul.f32 %v3431, %v3431
        %v3464 = vmul.f32 %v3432, %v3432
        %v3465 = vmul.f32 %v3433, %v3433
        %v3466 = vmul.f32 %v3434, %v3434
        %v3467 = vmul.f32 %v3435, %v3435
        %v3468 = vmul.f32 %v3436, %v3436
        %v3469 = vmul.f32 %v3437, %v3437
        %v3470 = vmul.f32 %v3438, %v3438
        %v3471 = vmul.f32 %v3439, %v3439
        %v3472 = vmul.f32 %v3440, %v3440
        %v3473 = vmul.f32 %v3441, %v3441
        %v3474 = vmul.f32 %v3442, %v3442
        %v3475 = vmul.f32 %v3443, %v3443
        %v3476 = vmul.f32 %v3444, %v3444
        %v3477 = vmul.f32 %v3445, %v3445
        %v3478 = vmul.f32 %v3446, %v3446
        %v3479 = vmul.f32 %v3447, %v3447
        %v3480 = vmul.f32 %v3448, %v3448
        %v3481 = vmul.f32 %v3449, %v3449
        %v3482 = vmul.f32 %v3450, %v3450
        %v3483 = vmul.f32 %v3451, %v3451
        %v3484 = vmul.f32 %v3452, %v3452
        %v3485 = vmul.f32 %v3453, %v3453
        %v3486 = vadd.f32 %v3454, %v3455
        %3487 = vadd.xlane.f32.xlu0 %v3486
        %v3488 = vpop.xlane.xlu0 %3487
        %v3489 = vadd.f32 %v3456, %v3457
        %3490 = vadd.xlane.f32.xlu0 %v3489
        %v3491 = vpop.xlane.xlu0 %3490
        %v3492 = vadd.f32 %v3458, %v3459
        %3493 = vadd.xlane.f32.xlu0 %v3492
        %v3494 = vpop.xlane.xlu0 %3493
        %v3495 = vadd.f32 %v3460, %v3461
        %3496 = vadd.xlane.f32.xlu0 %v3495
        %v3497 = vpop.xlane.xlu0 %3496
        %v3498 = vadd.f32 %v3462, %v3463
        %3499 = vadd.xlane.f32.xlu0 %v3498
        %v3500 = vpop.xlane.xlu0 %3499
        %v3501 = vadd.f32 %v3464, %v3465
        %3502 = vadd.xlane.f32.xlu0 %v3501
        %v3503 = vpop.xlane.xlu0 %3502
        %v3504 = vadd.f32 %v3466, %v3467
        %3505 = vadd.xlane.f32.xlu0 %v3504
        %v3506 = vpop.xlane.xlu0 %3505
        %v3507 = vadd.f32 %v3468, %v3469
        %3508 = vadd.xlane.f32.xlu0 %v3507
        %v3509 = vpop.xlane.xlu0 %3508
        %v3510 = vadd.f32 %v3470, %v3471
        %3511 = vadd.xlane.f32.xlu0 %v3510
        %v3512 = vpop.xlane.xlu0 %3511
        %v3513 = vadd.f32 %v3472, %v3473
        %3514 = vadd.xlane.f32.xlu0 %v3513
        %v3515 = vpop.xlane.xlu0 %3514
        %v3516 = vadd.f32 %v3474, %v3475
        %3517 = vadd.xlane.f32.xlu0 %v3516
        %v3518 = vpop.xlane.xlu0 %3517
        %v3519 = vadd.f32 %v3476, %v3477
        %3520 = vadd.xlane.f32.xlu0 %v3519
        %v3521 = vpop.xlane.xlu0 %3520
        %v3522 = vadd.f32 %v3478, %v3479
        %3523 = vadd.xlane.f32.xlu0 %v3522
        %v3524 = vpop.xlane.xlu0 %3523
        %v3525 = vadd.f32 %v3480, %v3481
        %3526 = vadd.xlane.f32.xlu0 %v3525
        %v3527 = vpop.xlane.xlu0 %3526
        %v3528 = vadd.f32 %v3482, %v3483
        %3529 = vadd.xlane.f32.xlu0 %v3528
        %v3530 = vpop.xlane.xlu0 %3529
        %v3531 = vadd.f32 %v3484, %v3485
        %3532 = vadd.xlane.f32.xlu0 %v3531
        %v3533 = vpop.xlane.xlu0 %3532
        %v3534 = vmul.f32 %v3488, %v3405
        %v3535 = vmul.f32 %v3491, %v3405
        %v3536 = vmul.f32 %v3494, %v3405
        %v3537 = vmul.f32 %v3497, %v3405
        %v3538 = vmul.f32 %v3500, %v3405
        %v3539 = vmul.f32 %v3503, %v3405
        %v3540 = vmul.f32 %v3506, %v3405
        %v3541 = vmul.f32 %v3509, %v3405
        %v3542 = vmul.f32 %v3512, %v3405
        %v3543 = vmul.f32 %v3515, %v3405
        %v3544 = vmul.f32 %v3518, %v3405
        %v3545 = vmul.f32 %v3521, %v3405
        %v3546 = vmul.f32 %v3524, %v3405
        %v3547 = vmul.f32 %v3527, %v3405
        %v3548 = vmul.f32 %v3530, %v3405
        %v3549 = vmul.f32 %v3533, %v3405
        %v3550 = vadd.f32 %v3534, 1e-05
        %v3551 = vadd.f32 %v3535, 1e-05
        %v3552 = vadd.f32 %v3536, 1e-05
        %v3553 = vadd.f32 %v3537, 1e-05
        %v3554 = vadd.f32 %v3538, 1e-05
        %v3555 = vadd.f32 %v3539, 1e-05
        %v3556 = vadd.f32 %v3540, 1e-05
        %v3557 = vadd.f32 %v3541, 1e-05
        %v3558 = vadd.f32 %v3542, 1e-05
        %v3559 = vadd.f32 %v3543, 1e-05
        %v3560 = vadd.f32 %v3544, 1e-05
        %v3561 = vadd.f32 %v3545, 1e-05
        %v3562 = vadd.f32 %v3546, 1e-05
        %v3563 = vadd.f32 %v3547, 1e-05
        %v3564 = vadd.f32 %v3548, 1e-05
        %v3565 = vadd.f32 %v3549, 1e-05
        %v3566 = vrsqrt.pop %v3550
        %v3567 = vrsqrt.pop %v3551
        %v3568 = vrsqrt.pop %v3552
        %v3569 = vrsqrt.pop %v3553
        %v3570 = vrsqrt.pop %v3554
        %v3571 = vrsqrt.pop %v3555
        %v3572 = vrsqrt.pop %v3556
        %v3573 = vrsqrt.pop %v3557
        %v3574 = vrsqrt.pop %v3558
        %v3575 = vrsqrt.pop %v3559
        %v3576 = vrsqrt.pop %v3560
        %v3577 = vrsqrt.pop %v3561
        %v3578 = vrsqrt.pop %v3562
        %v3579 = vrsqrt.pop %v3563
        %v3580 = vrsqrt.pop %v3564
        %v3581 = vrsqrt.pop %v3565
        %v3582 = vmul.f32 %v3422, %v3566
        %v3583 = vmul.f32 %v3423, %v3566
        %v3584 = vmul.f32 %v3424, %v3567
        %v3585 = vmul.f32 %v3425, %v3567
        %v3586 = vmul.f32 %v3426, %v3568
        %v3587 = vmul.f32 %v3427, %v3568
        %v3588 = vmul.f32 %v3428, %v3569
        %v3589 = vmul.f32 %v3429, %v3569
        %v3590 = vmul.f32 %v3430, %v3570
        %v3591 = vmul.f32 %v3431, %v3570
        %v3592 = vmul.f32 %v3432, %v3571
        %v3593 = vmul.f32 %v3433, %v3571
        %v3594 = vmul.f32 %v3434, %v3572
        %v3595 = vmul.f32 %v3435, %v3572
        %v3596 = vmul.f32 %v3436, %v3573
        %v3597 = vmul.f32 %v3437, %v3573
        %v3598 = vmul.f32 %v3438, %v3574
        %v3599 = vmul.f32 %v3439, %v3574
        %v3600 = vmul.f32 %v3440, %v3575
        %v3601 = vmul.f32 %v3441, %v3575
        %v3602 = vmul.f32 %v3442, %v3576
        %v3603 = vmul.f32 %v3443, %v3576
        %v3604 = vmul.f32 %v3444, %v3577
        %v3605 = vmul.f32 %v3445, %v3577
        %v3606 = vmul.f32 %v3446, %v3578
        %v3607 = vmul.f32 %v3447, %v3578
        %v3608 = vmul.f32 %v3448, %v3579
        %v3609 = vmul.f32 %v3449, %v3579
        %v3610 = vmul.f32 %v3450, %v3580
        %v3611 = vmul.f32 %v3451, %v3580
        %v3612 = vmul.f32 %v3452, %v3581
        %v3613 = vmul.f32 %v3453, %v3581
        %vm3614 = vcmp.ge.f32.partialorder %v3582, 0.0
        %vm3615 = vcmp.ge.f32.partialorder %v3583, 0.0
        %vm3616 = vcmp.ge.f32.partialorder %v3584, 0.0
        %vm3617 = vcmp.ge.f32.partialorder %v3585, 0.0
        %vm3618 = vcmp.ge.f32.partialorder %v3586, 0.0
        %vm3619 = vcmp.ge.f32.partialorder %v3587, 0.0
        %vm3620 = vcmp.ge.f32.partialorder %v3588, 0.0
        %vm3621 = vcmp.ge.f32.partialorder %v3589, 0.0
        %vm3622 = vcmp.ge.f32.partialorder %v3590, 0.0
        %vm3623 = vcmp.ge.f32.partialorder %v3591, 0.0
        %vm3624 = vcmp.ge.f32.partialorder %v3592, 0.0
        %vm3625 = vcmp.ge.f32.partialorder %v3593, 0.0
        %vm3626 = vcmp.ge.f32.partialorder %v3594, 0.0
        %vm3627 = vcmp.ge.f32.partialorder %v3595, 0.0
        %vm3628 = vcmp.ge.f32.partialorder %v3596, 0.0
        %vm3629 = vcmp.ge.f32.partialorder %v3597, 0.0
        %vm3630 = vcmp.ge.f32.partialorder %v3598, 0.0
        %vm3631 = vcmp.ge.f32.partialorder %v3599, 0.0
        %vm3632 = vcmp.ge.f32.partialorder %v3600, 0.0
        %vm3633 = vcmp.ge.f32.partialorder %v3601, 0.0
        %vm3634 = vcmp.ge.f32.partialorder %v3602, 0.0
        %vm3635 = vcmp.ge.f32.partialorder %v3603, 0.0
        %vm3636 = vcmp.ge.f32.partialorder %v3604, 0.0
        %vm3637 = vcmp.ge.f32.partialorder %v3605, 0.0
        %vm3638 = vcmp.ge.f32.partialorder %v3606, 0.0
        %vm3639 = vcmp.ge.f32.partialorder %v3607, 0.0
        %vm3640 = vcmp.ge.f32.partialorder %v3608, 0.0
        %vm3641 = vcmp.ge.f32.partialorder %v3609, 0.0
        %vm3642 = vcmp.ge.f32.partialorder %v3610, 0.0
        %vm3643 = vcmp.ge.f32.partialorder %v3611, 0.0
        %vm3644 = vcmp.ge.f32.partialorder %v3612, 0.0
        %vm3645 = vcmp.ge.f32.partialorder %v3613, 0.0
        %v3646 = vmul.f32 %v3582, 0.1
        %v3647 = vmul.f32 %v3583, 0.1
        %v3648 = vmul.f32 %v3584, 0.1
        %v3649 = vmul.f32 %v3585, 0.1
        %v3650 = vmul.f32 %v3586, 0.1
        %v3651 = vmul.f32 %v3587, 0.1
        %v3652 = vmul.f32 %v3588, 0.1
        %v3653 = vmul.f32 %v3589, 0.1
        %v3654 = vmul.f32 %v3590, 0.1
        %v3655 = vmul.f32 %v3591, 0.1
        %v3656 = vmul.f32 %v3592, 0.1
        %v3657 = vmul.f32 %v3593, 0.1
        %v3658 = vmul.f32 %v3594, 0.1
        %v3659 = vmul.f32 %v3595, 0.1
        %v3660 = vmul.f32 %v3596, 0.1
        %v3661 = vmul.f32 %v3597, 0.1
        %v3662 = vmul.f32 %v3598, 0.1
        %v3663 = vmul.f32 %v3599, 0.1
        %v3664 = vmul.f32 %v3600, 0.1
        %v3665 = vmul.f32 %v3601, 0.1
        %v3666 = vmul.f32 %v3602, 0.1
        %v3667 = vmul.f32 %v3603, 0.1
        %v3668 = vmul.f32 %v3604, 0.1
        %v3669 = vmul.f32 %v3605, 0.1
        %v3670 = vmul.f32 %v3606, 0.1
        %v3671 = vmul.f32 %v3607, 0.1
        %v3672 = vmul.f32 %v3608, 0.1
        %v3673 = vmul.f32 %v3609, 0.1
        %v3674 = vmul.f32 %v3610, 0.1
        %v3675 = vmul.f32 %v3611, 0.1
        %v3676 = vmul.f32 %v3612, 0.1
        %v3677 = vmul.f32 %v3613, 0.1
        %v3678 = vsel %vm3614, %v3582, %v3646
        %v3679 = vsel %vm3615, %v3583, %v3647
        %v3680 = vsel %vm3616, %v3584, %v3648
        %v3681 = vsel %vm3617, %v3585, %v3649
        %v3682 = vsel %vm3618, %v3586, %v3650
        %v3683 = vsel %vm3619, %v3587, %v3651
        %v3684 = vsel %vm3620, %v3588, %v3652
        %v3685 = vsel %vm3621, %v3589, %v3653
        %v3686 = vsel %vm3622, %v3590, %v3654
        %v3687 = vsel %vm3623, %v3591, %v3655
        %v3688 = vsel %vm3624, %v3592, %v3656
        %v3689 = vsel %vm3625, %v3593, %v3657
        %v3690 = vsel %vm3626, %v3594, %v3658
        %v3691 = vsel %vm3627, %v3595, %v3659
        %v3692 = vsel %vm3628, %v3596, %v3660
        %v3693 = vsel %vm3629, %v3597, %v3661
        %v3694 = vsel %vm3630, %v3598, %v3662
        %v3695 = vsel %vm3631, %v3599, %v3663
        %v3696 = vsel %vm3632, %v3600, %v3664
        %v3697 = vsel %vm3633, %v3601, %v3665
        %v3698 = vsel %vm3634, %v3602, %v3666
        %v3699 = vsel %vm3635, %v3603, %v3667
        %v3700 = vsel %vm3636, %v3604, %v3668
        %v3701 = vsel %vm3637, %v3605, %v3669
        %v3702 = vsel %vm3638, %v3606, %v3670
        %v3703 = vsel %vm3639, %v3607, %v3671
        %v3704 = vsel %vm3640, %v3608, %v3672
        %v3705 = vsel %vm3641, %v3609, %v3673
        %v3706 = vsel %vm3642, %v3610, %v3674
        %v3707 = vsel %vm3643, %v3611, %v3675
        %v3708 = vsel %vm3644, %v3612, %v3676
        %v3709 = vsel %vm3645, %v3613, %v3677
        %v3710 = vpack.c.bf16 %v3680, %v3678
        %v3711 = vpack.c.bf16 %v3681, %v3679
        %v3712 = vpack.c.bf16 %v3684, %v3682
        %v3713 = vpack.c.bf16 %v3685, %v3683
        %v3714 = vpack.c.bf16 %v3688, %v3686
        %v3715 = vpack.c.bf16 %v3689, %v3687
        %v3716 = vpack.c.bf16 %v3692, %v3690
        %v3717 = vpack.c.bf16 %v3693, %v3691
        %v3718 = vpack.c.bf16 %v3696, %v3694
        %v3719 = vpack.c.bf16 %v3697, %v3695
        %v3720 = vpack.c.bf16 %v3700, %v3698
        %v3721 = vpack.c.bf16 %v3701, %v3699
        %v3722 = vpack.c.bf16 %v3704, %v3702
        %v3723 = vpack.c.bf16 %v3705, %v3703
        %v3724 = vpack.c.bf16 %v3708, %v3706
        %v3725 = vpack.c.bf16 %v3709, %v3707
        %v3726 = vld [vmem:[%s13] sm:$0xf]
        %v3727 = vld [vmem:[%s13 + $0x4] sm:$0xf]
        %v3728 = vld [vmem:[%s13 + $0x8] sm:$0xf]
        %v3729 = vld [vmem:[%s13 + $0xc] sm:$0xf]
        %v3730 = vld [vmem:[%s13 + $0x10] sm:$0xf]
        %v3731 = vld [vmem:[%s13 + $0x14] sm:$0xf]
        %v3732 = vld [vmem:[%s13 + $0x18] sm:$0xf]
        %v3733 = vld [vmem:[%s13 + $0x1c] sm:$0xf]
        %v3734 = vld [vmem:[%s13 + $0x20] sm:$0xf]
        %v3735 = vld [vmem:[%s13 + $0x24] sm:$0xf]
        %v3736 = vld [vmem:[%s13 + $0x28] sm:$0xf]
        %v3737 = vld [vmem:[%s13 + $0x2c] sm:$0xf]
        %v3738 = vld [vmem:[%s13 + $0x30] sm:$0xf]
        %v3739 = vld [vmem:[%s13 + $0x34] sm:$0xf]
        %v3740 = vld [vmem:[%s13 + $0x38] sm:$0xf]
        %v3741 = vld [vmem:[%s13 + $0x3c] sm:$0xf]
        %v3742 = vld [vmem:[%s13 + $0x40] sm:$0xf]
        %v3743 = vld [vmem:[%s13 + $0x44] sm:$0xf]
        %v3744 = vld [vmem:[%s13 + $0x48] sm:$0xf]
        %v3745 = vld [vmem:[%s13 + $0x4c] sm:$0xf]
        %v3746 = vld [vmem:[%s13 + $0x50] sm:$0xf]
        %v3747 = vld [vmem:[%s13 + $0x54] sm:$0xf]
        %v3748 = vld [vmem:[%s13 + $0x58] sm:$0xf]
        %v3749 = vld [vmem:[%s13 + $0x5c] sm:$0xf]
        %v3750 = vld [vmem:[%s13 + $0x60] sm:$0xf]
        %v3751 = vld [vmem:[%s13 + $0x64] sm:$0xf]
        %v3752 = vld [vmem:[%s13 + $0x68] sm:$0xf]
        %v3753 = vld [vmem:[%s13 + $0x6c] sm:$0xf]
        %v3754 = vld [vmem:[%s13 + $0x70] sm:$0xf]
        %v3755 = vld [vmem:[%s13 + $0x74] sm:$0xf]
        %v3756 = vld [vmem:[%s13 + $0x78] sm:$0xf]
        %v3757 = vld [vmem:[%s13 + $0x7c] sm:$0xf]
        %v3758 = vld [vmem:[%s14] sm:$0x1]
        %v3760 = vlaneseq
        %v3761 = vshrl.u32 %v3760, 7
        %v3762 = vsub.s32 0, %v3761
        %v3763 = vrot.slane %v3758, %v3762
        %v3797 = vunpack.c.l.b16 %v3726
        %v3798 = vunpack.c.l.b16 %v3727
        %v3799 = vunpack.c.l.b16 %v3728
        %v3800 = vunpack.c.l.b16 %v3729
        %v3801 = vunpack.c.l.b16 %v3730
        %v3802 = vunpack.c.l.b16 %v3731
        %v3803 = vunpack.c.l.b16 %v3732
        %v3804 = vunpack.c.l.b16 %v3733
        %v3805 = vunpack.c.l.b16 %v3734
        %v3806 = vunpack.c.l.b16 %v3735
        %v3807 = vunpack.c.l.b16 %v3736
        %v3808 = vunpack.c.l.b16 %v3737
        %v3809 = vunpack.c.l.b16 %v3738
        %v3810 = vunpack.c.l.b16 %v3739
        %v3811 = vunpack.c.l.b16 %v3740
        %v3812 = vunpack.c.l.b16 %v3741
        %v3813 = vunpack.c.l.b16 %v3742
        %v3814 = vunpack.c.l.b16 %v3743
        %v3815 = vunpack.c.l.b16 %v3744
        %v3816 = vunpack.c.l.b16 %v3745
        %v3817 = vunpack.c.l.b16 %v3746
        %v3818 = vunpack.c.l.b16 %v3747
        %v3819 = vunpack.c.l.b16 %v3748
        %v3820 = vunpack.c.l.b16 %v3749
        %v3821 = vunpack.c.l.b16 %v3750
        %v3822 = vunpack.c.l.b16 %v3751
        %v3823 = vunpack.c.l.b16 %v3752
        %v3824 = vunpack.c.l.b16 %v3753
        %v3825 = vunpack.c.l.b16 %v3754
        %v3826 = vunpack.c.l.b16 %v3755
        %v3827 = vunpack.c.l.b16 %v3756
        %v3828 = vunpack.c.l.b16 %v3757
        %v3829 = vpack.c.b16 %v3798, %v3797
        %v3830 = vpack.c.b16 %v3800, %v3799
        %v3831 = vpack.c.b16 %v3802, %v3801
        %v3832 = vpack.c.b16 %v3804, %v3803
        %v3833 = vpack.c.b16 %v3806, %v3805
        %v3834 = vpack.c.b16 %v3808, %v3807
        %v3835 = vpack.c.b16 %v3810, %v3809
        %v3836 = vpack.c.b16 %v3812, %v3811
        %v3837 = vpack.c.b16 %v3814, %v3813
        %v3838 = vpack.c.b16 %v3816, %v3815
        %v3839 = vpack.c.b16 %v3818, %v3817
        %v3840 = vpack.c.b16 %v3820, %v3819
        %v3841 = vpack.c.b16 %v3822, %v3821
        %v3842 = vpack.c.b16 %v3824, %v3823
        %v3843 = vpack.c.b16 %v3826, %v3825
        %v3844 = vpack.c.b16 %v3828, %v3827
        %3861 = vmatprep.subr.bf16.mxu0 0
        %3862 = vmatpush1.bf16.msra.mxu0 %v3836
        %3863 = vmatprep.subr.bf16.mxu0 0
        %3864 = vmatpush1.bf16.msra.mxu0 %v3835
        %3865 = vmatprep.subr.bf16.mxu0 0
        %3866 = vmatpush1.bf16.msra.mxu0 %v3834
        %3867 = vmatprep.subr.bf16.mxu0 0
        %3868 = vmatpush1.bf16.msra.mxu0 %v3833
        %3869 = vmatprep.subr.bf16.mxu0 0
        %3870 = vmatpush1.bf16.msra.mxu0 %v3832
        %3871 = vmatprep.subr.bf16.mxu0 0
        %3872 = vmatpush1.bf16.msra.mxu0 %v3831
        %3873 = vmatprep.subr.bf16.mxu0 0
        %3874 = vmatpush1.bf16.msra.mxu0 %v3830
        %3875 = vmatprep.subr.bf16.mxu0 0
        %3876 = vmatpush1.bf16.msra.mxu0 %v3829
        %3877 = vmatprep.subr.bf16.mxu0 0
        %3878 = vmatpush2.bf16.msra.mxu0 %v3844
        %3879 = vmatprep.subr.bf16.mxu0 0
        %3880 = vmatpush2.bf16.msra.mxu0 %v3843
        %3881 = vmatprep.subr.bf16.mxu0 0
        %3882 = vmatpush2.bf16.msra.mxu0 %v3842
        %3883 = vmatprep.subr.bf16.mxu0 0
        %3884 = vmatpush2.bf16.msra.mxu0 %v3841
        %3885 = vmatprep.subr.bf16.mxu0 0
        %3886 = vmatpush2.bf16.msra.mxu0 %v3840
        %3887 = vmatprep.subr.bf16.mxu0 0
        %3888 = vmatpush2.bf16.msra.mxu0 %v3839
        %3889 = vmatprep.subr.bf16.mxu0 0
        %3890 = vmatpush2.bf16.msra.mxu0 %v3838
        %3891 = vmatprep.subr.bf16.mxu0 0
        %3892 = vmatpush2.bf16.msra.mxu0 %v3837
        %3893 = vmatprep.mubr.bf16.mxu0 %v3711
        %3894 = vmatmul.mubr.bf16.gmra.mxu0 %v3710
        %v3895 = vpop.f32.mrf.mxu0
        %v3896 = vadd.f32 %v3763, %v3895
        %v3897 = vpop.f32.mrf.mxu0
        %v3898 = vpop.f32.mrf.mxu0
        %v3899 = vadd.f32 %v3763, %v3898
        %v3900 = vpop.f32.mrf.mxu0
        %3901 = vmatprep.mubr.bf16.mxu0 %v3713
        %3902 = vmatmul.mubr.bf16.gmra.mxu0 %v3712
        %v3903 = vpop.f32.mrf.mxu0
        %v3904 = vadd.f32 %v3763, %v3903
        %v3905 = vpop.f32.mrf.mxu0
        %v3906 = vpop.f32.mrf.mxu0
        %v3907 = vadd.f32 %v3763, %v3906
        %v3908 = vpop.f32.mrf.mxu0
        %3909 = vmatprep.mubr.bf16.mxu0 %v3715
        %3910 = vmatmul.mubr.bf16.gmra.mxu0 %v3714
        %v3911 = vpop.f32.mrf.mxu0
        %v3912 = vadd.f32 %v3763, %v3911
        %v3913 = vpop.f32.mrf.mxu0
        %v3914 = vpop.f32.mrf.mxu0
        %v3915 = vadd.f32 %v3763, %v3914
        %v3916 = vpop.f32.mrf.mxu0
        %3917 = vmatprep.mubr.bf16.mxu0 %v3717
        %3918 = vmatmul.mubr.bf16.gmra.mxu0 %v3716
        %v3919 = vpop.f32.mrf.mxu0
        %v3920 = vadd.f32 %v3763, %v3919
        %v3921 = vpop.f32.mrf.mxu0
        %v3922 = vpop.f32.mrf.mxu0
        %v3923 = vadd.f32 %v3763, %v3922
        %v3924 = vpop.f32.mrf.mxu0
        %3925 = vmatprep.mubr.bf16.mxu0 %v3719
        %3926 = vmatmul.mubr.bf16.gmra.mxu0 %v3718
        %v3927 = vpop.f32.mrf.mxu0
        %v3928 = vadd.f32 %v3763, %v3927
        %v3929 = vpop.f32.mrf.mxu0
        %v3930 = vpop.f32.mrf.mxu0
        %v3931 = vadd.f32 %v3763, %v3930
        %v3932 = vpop.f32.mrf.mxu0
        %3933 = vmatprep.mubr.bf16.mxu0 %v3721
        %3934 = vmatmul.mubr.bf16.gmra.mxu0 %v3720
        %v3935 = vpop.f32.mrf.mxu0
        %v3936 = vadd.f32 %v3763, %v3935
        %v3937 = vpop.f32.mrf.mxu0
        %v3938 = vpop.f32.mrf.mxu0
        %v3939 = vadd.f32 %v3763, %v3938
        %v3940 = vpop.f32.mrf.mxu0
        %3941 = vmatprep.mubr.bf16.mxu0 %v3723
        %3942 = vmatmul.mubr.bf16.gmra.mxu0 %v3722
        %v3943 = vpop.f32.mrf.mxu0
        %v3944 = vadd.f32 %v3763, %v3943
        %v3945 = vpop.f32.mrf.mxu0
        %v3946 = vpop.f32.mrf.mxu0
        %v3947 = vadd.f32 %v3763, %v3946
        %v3948 = vpop.f32.mrf.mxu0
        %3949 = vmatprep.mubr.bf16.mxu0 %v3725
        %3950 = vmatmul.mubr.bf16.gmra.mxu0 %v3724
        %v3951 = vpop.f32.mrf.mxu0
        %v3952 = vadd.f32 %v3763, %v3951
        %v3953 = vpop.f32.mrf.mxu0
        %v3954 = vpop.f32.mrf.mxu0
        %v3955 = vadd.f32 %v3763, %v3954
        %v3956 = vpop.f32.mrf.mxu0
        %3957 = vdwg.mxu0
        %v3958 = vadd.f32 %v3896, %v3295
        %v3959 = vadd.f32 %v3899, %v3298
        %v3960 = vadd.f32 %v3904, %v3303
        %v3961 = vadd.f32 %v3907, %v3306
        %v3962 = vadd.f32 %v3912, %v3311
        %v3963 = vadd.f32 %v3915, %v3314
        %v3964 = vadd.f32 %v3920, %v3319
        %v3965 = vadd.f32 %v3923, %v3322
        %v3966 = vadd.f32 %v3928, %v3327
        %v3967 = vadd.f32 %v3931, %v3330
        %v3968 = vadd.f32 %v3936, %v3335
        %v3969 = vadd.f32 %v3939, %v3338
        %v3970 = vadd.f32 %v3944, %v3343
        %v3971 = vadd.f32 %v3947, %v3346
        %v3972 = vadd.f32 %v3952, %v3351
        %v3973 = vadd.f32 %v3955, %v3354
        %3974 = vadd.xlane.f32.xlu0 %v3958
        %v3975 = vpop.xlane.xlu0 %3974
        %3976 = vadd.xlane.f32.xlu0 %v3959
        %v3977 = vpop.xlane.xlu0 %3976
        %3978 = vadd.xlane.f32.xlu0 %v3960
        %v3979 = vpop.xlane.xlu0 %3978
        %3980 = vadd.xlane.f32.xlu0 %v3961
        %v3981 = vpop.xlane.xlu0 %3980
        %3982 = vadd.xlane.f32.xlu0 %v3962
        %v3983 = vpop.xlane.xlu0 %3982
        %3984 = vadd.xlane.f32.xlu0 %v3963
        %v3985 = vpop.xlane.xlu0 %3984
        %3986 = vadd.xlane.f32.xlu0 %v3964
        %v3987 = vpop.xlane.xlu0 %3986
        %3988 = vadd.xlane.f32.xlu0 %v3965
        %v3989 = vpop.xlane.xlu0 %3988
        %3990 = vadd.xlane.f32.xlu0 %v3966
        %v3991 = vpop.xlane.xlu0 %3990
        %3992 = vadd.xlane.f32.xlu0 %v3967
        %v3993 = vpop.xlane.xlu0 %3992
        %3994 = vadd.xlane.f32.xlu0 %v3968
        %v3995 = vpop.xlane.xlu0 %3994
        %3996 = vadd.xlane.f32.xlu0 %v3969
        %v3997 = vpop.xlane.xlu0 %3996
        %3998 = vadd.xlane.f32.xlu0 %v3970
        %v3999 = vpop.xlane.xlu0 %3998
        %4000 = vadd.xlane.f32.xlu0 %v3971
        %v4001 = vpop.xlane.xlu0 %4000
        %4002 = vadd.xlane.f32.xlu0 %v3972
        %v4003 = vpop.xlane.xlu0 %4002
        %4004 = vadd.xlane.f32.xlu0 %v3973
        %v4005 = vpop.xlane.xlu0 %4004
        %v4006 = vrcp.pop 128.0
        %v4007 = vmul.f32 %v3975, %v4006
        %v4008 = vmul.f32 %v3977, %v4006
        %v4009 = vmul.f32 %v3979, %v4006
        %v4010 = vmul.f32 %v3981, %v4006
        %v4011 = vmul.f32 %v3983, %v4006
        %v4012 = vmul.f32 %v3985, %v4006
        %v4013 = vmul.f32 %v3987, %v4006
        %v4014 = vmul.f32 %v3989, %v4006
        %v4015 = vmul.f32 %v3991, %v4006
        %v4016 = vmul.f32 %v3993, %v4006
        %v4017 = vmul.f32 %v3995, %v4006
        %v4018 = vmul.f32 %v3997, %v4006
        %v4019 = vmul.f32 %v3999, %v4006
        %v4020 = vmul.f32 %v4001, %v4006
        %v4021 = vmul.f32 %v4003, %v4006
        %v4022 = vmul.f32 %v4005, %v4006
        %v4023 = vsub.f32 %v3958, %v4007
        %v4024 = vsub.f32 %v3959, %v4008
        %v4025 = vsub.f32 %v3960, %v4009
        %v4026 = vsub.f32 %v3961, %v4010
        %v4027 = vsub.f32 %v3962, %v4011
        %v4028 = vsub.f32 %v3963, %v4012
        %v4029 = vsub.f32 %v3964, %v4013
        %v4030 = vsub.f32 %v3965, %v4014
        %v4031 = vsub.f32 %v3966, %v4015
        %v4032 = vsub.f32 %v3967, %v4016
        %v4033 = vsub.f32 %v3968, %v4017
        %v4034 = vsub.f32 %v3969, %v4018
        %v4035 = vsub.f32 %v3970, %v4019
        %v4036 = vsub.f32 %v3971, %v4020
        %v4037 = vsub.f32 %v3972, %v4021
        %v4038 = vsub.f32 %v3973, %v4022
        %v4039 = vmul.f32 %v4023, %v4023
        %v4040 = vmul.f32 %v4024, %v4024
        %v4041 = vmul.f32 %v4025, %v4025
        %v4042 = vmul.f32 %v4026, %v4026
        %v4043 = vmul.f32 %v4027, %v4027
        %v4044 = vmul.f32 %v4028, %v4028
        %v4045 = vmul.f32 %v4029, %v4029
        %v4046 = vmul.f32 %v4030, %v4030
        %v4047 = vmul.f32 %v4031, %v4031
        %v4048 = vmul.f32 %v4032, %v4032
        %v4049 = vmul.f32 %v4033, %v4033
        %v4050 = vmul.f32 %v4034, %v4034
        %v4051 = vmul.f32 %v4035, %v4035
        %v4052 = vmul.f32 %v4036, %v4036
        %v4053 = vmul.f32 %v4037, %v4037
        %v4054 = vmul.f32 %v4038, %v4038
        %4055 = vadd.xlane.f32.xlu0 %v4039
        %v4056 = vpop.xlane.xlu0 %4055
        %4057 = vadd.xlane.f32.xlu0 %v4040
        %v4058 = vpop.xlane.xlu0 %4057
        %4059 = vadd.xlane.f32.xlu0 %v4041
        %v4060 = vpop.xlane.xlu0 %4059
        %4061 = vadd.xlane.f32.xlu0 %v4042
        %v4062 = vpop.xlane.xlu0 %4061
        %4063 = vadd.xlane.f32.xlu0 %v4043
        %v4064 = vpop.xlane.xlu0 %4063
        %4065 = vadd.xlane.f32.xlu0 %v4044
        %v4066 = vpop.xlane.xlu0 %4065
        %4067 = vadd.xlane.f32.xlu0 %v4045
        %v4068 = vpop.xlane.xlu0 %4067
        %4069 = vadd.xlane.f32.xlu0 %v4046
        %v4070 = vpop.xlane.xlu0 %4069
        %4071 = vadd.xlane.f32.xlu0 %v4047
        %v4072 = vpop.xlane.xlu0 %4071
        %4073 = vadd.xlane.f32.xlu0 %v4048
        %v4074 = vpop.xlane.xlu0 %4073
        %4075 = vadd.xlane.f32.xlu0 %v4049
        %v4076 = vpop.xlane.xlu0 %4075
        %4077 = vadd.xlane.f32.xlu0 %v4050
        %v4078 = vpop.xlane.xlu0 %4077
        %4079 = vadd.xlane.f32.xlu0 %v4051
        %v4080 = vpop.xlane.xlu0 %4079
        %4081 = vadd.xlane.f32.xlu0 %v4052
        %v4082 = vpop.xlane.xlu0 %4081
        %4083 = vadd.xlane.f32.xlu0 %v4053
        %v4084 = vpop.xlane.xlu0 %4083
        %4085 = vadd.xlane.f32.xlu0 %v4054
        %v4086 = vpop.xlane.xlu0 %4085
        %v4087 = vmul.f32 %v4056, %v4006
        %v4088 = vmul.f32 %v4058, %v4006
        %v4089 = vmul.f32 %v4060, %v4006
        %v4090 = vmul.f32 %v4062, %v4006
        %v4091 = vmul.f32 %v4064, %v4006
        %v4092 = vmul.f32 %v4066, %v4006
        %v4093 = vmul.f32 %v4068, %v4006
        %v4094 = vmul.f32 %v4070, %v4006
        %v4095 = vmul.f32 %v4072, %v4006
        %v4096 = vmul.f32 %v4074, %v4006
        %v4097 = vmul.f32 %v4076, %v4006
        %v4098 = vmul.f32 %v4078, %v4006
        %v4099 = vmul.f32 %v4080, %v4006
        %v4100 = vmul.f32 %v4082, %v4006
        %v4101 = vmul.f32 %v4084, %v4006
        %v4102 = vmul.f32 %v4086, %v4006
        %v4103 = vadd.f32 %v4087, 1e-05
        %v4104 = vadd.f32 %v4088, 1e-05
        %v4105 = vadd.f32 %v4089, 1e-05
        %v4106 = vadd.f32 %v4090, 1e-05
        %v4107 = vadd.f32 %v4091, 1e-05
        %v4108 = vadd.f32 %v4092, 1e-05
        %v4109 = vadd.f32 %v4093, 1e-05
        %v4110 = vadd.f32 %v4094, 1e-05
        %v4111 = vadd.f32 %v4095, 1e-05
        %v4112 = vadd.f32 %v4096, 1e-05
        %v4113 = vadd.f32 %v4097, 1e-05
        %v4114 = vadd.f32 %v4098, 1e-05
        %v4115 = vadd.f32 %v4099, 1e-05
        %v4116 = vadd.f32 %v4100, 1e-05
        %v4117 = vadd.f32 %v4101, 1e-05
        %v4118 = vadd.f32 %v4102, 1e-05
        %v4119 = vrsqrt.pop %v4103
        %v4120 = vrsqrt.pop %v4104
        %v4121 = vrsqrt.pop %v4105
        %v4122 = vrsqrt.pop %v4106
        %v4123 = vrsqrt.pop %v4107
        %v4124 = vrsqrt.pop %v4108
        %v4125 = vrsqrt.pop %v4109
        %v4126 = vrsqrt.pop %v4110
        %v4127 = vrsqrt.pop %v4111
        %v4128 = vrsqrt.pop %v4112
        %v4129 = vrsqrt.pop %v4113
        %v4130 = vrsqrt.pop %v4114
        %v4131 = vrsqrt.pop %v4115
        %v4132 = vrsqrt.pop %v4116
        %v4133 = vrsqrt.pop %v4117
        %v4134 = vrsqrt.pop %v4118
        %v4135 = vmul.f32 %v4023, %v4119
        %v4136 = vmul.f32 %v4024, %v4120
        %v4137 = vmul.f32 %v4025, %v4121
        %v4138 = vmul.f32 %v4026, %v4122
        %v4139 = vmul.f32 %v4027, %v4123
        %v4140 = vmul.f32 %v4028, %v4124
        %v4141 = vmul.f32 %v4029, %v4125
        %v4142 = vmul.f32 %v4030, %v4126
        %v4143 = vmul.f32 %v4031, %v4127
        %v4144 = vmul.f32 %v4032, %v4128
        %v4145 = vmul.f32 %v4033, %v4129
        %v4146 = vmul.f32 %v4034, %v4130
        %v4147 = vmul.f32 %v4035, %v4131
        %v4148 = vmul.f32 %v4036, %v4132
        %v4149 = vmul.f32 %v4037, %v4133
        %v4150 = vmul.f32 %v4038, %v4134
        %vm4151 = vcmp.ge.f32.partialorder %v4135, 0.0
        %vm4152 = vcmp.ge.f32.partialorder %v4136, 0.0
        %vm4153 = vcmp.ge.f32.partialorder %v4137, 0.0
        %vm4154 = vcmp.ge.f32.partialorder %v4138, 0.0
        %vm4155 = vcmp.ge.f32.partialorder %v4139, 0.0
        %vm4156 = vcmp.ge.f32.partialorder %v4140, 0.0
        %vm4157 = vcmp.ge.f32.partialorder %v4141, 0.0
        %vm4158 = vcmp.ge.f32.partialorder %v4142, 0.0
        %vm4159 = vcmp.ge.f32.partialorder %v4143, 0.0
        %vm4160 = vcmp.ge.f32.partialorder %v4144, 0.0
        %vm4161 = vcmp.ge.f32.partialorder %v4145, 0.0
        %vm4162 = vcmp.ge.f32.partialorder %v4146, 0.0
        %vm4163 = vcmp.ge.f32.partialorder %v4147, 0.0
        %vm4164 = vcmp.ge.f32.partialorder %v4148, 0.0
        %vm4165 = vcmp.ge.f32.partialorder %v4149, 0.0
        %vm4166 = vcmp.ge.f32.partialorder %v4150, 0.0
        %v4167 = vmul.f32 %v4135, 0.1
        %v4168 = vmul.f32 %v4136, 0.1
        %v4169 = vmul.f32 %v4137, 0.1
        %v4170 = vmul.f32 %v4138, 0.1
        %v4171 = vmul.f32 %v4139, 0.1
        %v4172 = vmul.f32 %v4140, 0.1
        %v4173 = vmul.f32 %v4141, 0.1
        %v4174 = vmul.f32 %v4142, 0.1
        %v4175 = vmul.f32 %v4143, 0.1
        %v4176 = vmul.f32 %v4144, 0.1
        %v4177 = vmul.f32 %v4145, 0.1
        %v4178 = vmul.f32 %v4146, 0.1
        %v4179 = vmul.f32 %v4147, 0.1
        %v4180 = vmul.f32 %v4148, 0.1
        %v4181 = vmul.f32 %v4149, 0.1
        %v4182 = vmul.f32 %v4150, 0.1
        %v4183 = vsel %vm4151, %v4135, %v4167
        %v4184 = vsel %vm4152, %v4136, %v4168
        %v4185 = vsel %vm4153, %v4137, %v4169
        %v4186 = vsel %vm4154, %v4138, %v4170
        %v4187 = vsel %vm4155, %v4139, %v4171
        %v4188 = vsel %vm4156, %v4140, %v4172
        %v4189 = vsel %vm4157, %v4141, %v4173
        %v4190 = vsel %vm4158, %v4142, %v4174
        %v4191 = vsel %vm4159, %v4143, %v4175
        %v4192 = vsel %vm4160, %v4144, %v4176
        %v4193 = vsel %vm4161, %v4145, %v4177
        %v4194 = vsel %vm4162, %v4146, %v4178
        %v4195 = vsel %vm4163, %v4147, %v4179
        %v4196 = vsel %vm4164, %v4148, %v4180
        %v4197 = vsel %vm4165, %v4149, %v4181
        %v4198 = vsel %vm4166, %v4150, %v4182
        %v4199 = vld [vmem:[%s15] sm:$0x1]
        %v4201 = vlaneseq
        %v4202 = vshrl.u32 %v4201, 7
        %v4203 = vsub.s32 0, %v4202
        %v4204 = vrot.slane %v4199, %v4203
        %v4206 = vmul.f32 %v4183, %v4204
        %v4207 = vmul.f32 %v4184, %v4204
        %v4208 = vmul.f32 %v4185, %v4204
        %v4209 = vmul.f32 %v4186, %v4204
        %v4210 = vmul.f32 %v4187, %v4204
        %v4211 = vmul.f32 %v4188, %v4204
        %v4212 = vmul.f32 %v4189, %v4204
        %v4213 = vmul.f32 %v4190, %v4204
        %v4214 = vmul.f32 %v4191, %v4204
        %v4215 = vmul.f32 %v4192, %v4204
        %v4216 = vmul.f32 %v4193, %v4204
        %v4217 = vmul.f32 %v4194, %v4204
        %v4218 = vmul.f32 %v4195, %v4204
        %v4219 = vmul.f32 %v4196, %v4204
        %v4220 = vmul.f32 %v4197, %v4204
        %v4221 = vmul.f32 %v4198, %v4204
        %4222 = vadd.xlane.f32.xlu0 %v4206
        %v4223 = vpop.xlane.xlu0 %4222
        %4224 = vadd.xlane.f32.xlu0 %v4207
        %v4225 = vpop.xlane.xlu0 %4224
        %4226 = vadd.xlane.f32.xlu0 %v4208
        %v4227 = vpop.xlane.xlu0 %4226
        %4228 = vadd.xlane.f32.xlu0 %v4209
        %v4229 = vpop.xlane.xlu0 %4228
        %4230 = vadd.xlane.f32.xlu0 %v4210
        %v4231 = vpop.xlane.xlu0 %4230
        %4232 = vadd.xlane.f32.xlu0 %v4211
        %v4233 = vpop.xlane.xlu0 %4232
        %4234 = vadd.xlane.f32.xlu0 %v4212
        %v4235 = vpop.xlane.xlu0 %4234
        %4236 = vadd.xlane.f32.xlu0 %v4213
        %v4237 = vpop.xlane.xlu0 %4236
        %4238 = vadd.xlane.f32.xlu0 %v4214
        %v4239 = vpop.xlane.xlu0 %4238
        %4240 = vadd.xlane.f32.xlu0 %v4215
        %v4241 = vpop.xlane.xlu0 %4240
        %4242 = vadd.xlane.f32.xlu0 %v4216
        %v4243 = vpop.xlane.xlu0 %4242
        %4244 = vadd.xlane.f32.xlu0 %v4217
        %v4245 = vpop.xlane.xlu0 %4244
        %4246 = vadd.xlane.f32.xlu0 %v4218
        %v4247 = vpop.xlane.xlu0 %4246
        %4248 = vadd.xlane.f32.xlu0 %v4219
        %v4249 = vpop.xlane.xlu0 %4248
        %4250 = vadd.xlane.f32.xlu0 %v4220
        %v4251 = vpop.xlane.xlu0 %4250
        %4252 = vadd.xlane.f32.xlu0 %v4221
        %v4253 = vpop.xlane.xlu0 %4252
        %v4254 = vld [vmem:[#allocation2] sm:$0x1]
        %v4256 = vlaneseq
        %v4257 = vshrl.u32 %v4256, 7
        %v4258 = vsub.s32 0, %v4257
        %v4259 = vrot.slane %v4254, %v4258
        %v4261 = vadd.f32 %v4223, %v4259
        %v4262 = vadd.f32 %v4225, %v4259
        %v4263 = vadd.f32 %v4227, %v4259
        %v4264 = vadd.f32 %v4229, %v4259
        %v4265 = vadd.f32 %v4231, %v4259
        %v4266 = vadd.f32 %v4233, %v4259
        %v4267 = vadd.f32 %v4235, %v4259
        %v4268 = vadd.f32 %v4237, %v4259
        %v4269 = vadd.f32 %v4239, %v4259
        %v4270 = vadd.f32 %v4241, %v4259
        %v4271 = vadd.f32 %v4243, %v4259
        %v4272 = vadd.f32 %v4245, %v4259
        %v4273 = vadd.f32 %v4247, %v4259
        %v4274 = vadd.f32 %v4249, %v4259
        %v4275 = vadd.f32 %v4251, %v4259
        %v4276 = vadd.f32 %v4253, %v4259
        %vm4277 = vcmask 7168
        %4278 = vst.msk [vmem:[%s596] sm:$0xff] %vm4277, %v4261
        %4279 = vst.msk [vmem:[%s596 + $0x8] sm:$0xff] %vm4277, %v4262
        %4280 = vst.msk [vmem:[%s596 + $0x10] sm:$0xff] %vm4277, %v4263
        %4281 = vst.msk [vmem:[%s596 + $0x18] sm:$0xff] %vm4277, %v4264
        %4282 = vst.msk [vmem:[%s596 + $0x20] sm:$0xff] %vm4277, %v4265
        %4283 = vst.msk [vmem:[%s596 + $0x28] sm:$0xff] %vm4277, %v4266
        %4284 = vst.msk [vmem:[%s596 + $0x30] sm:$0xff] %vm4277, %v4267
        %4285 = vst.msk [vmem:[%s596 + $0x38] sm:$0xff] %vm4277, %v4268
        %4286 = vst.msk [vmem:[%s596 + $0x40] sm:$0xff] %vm4277, %v4269
        %4287 = vst.msk [vmem:[%s596 + $0x48] sm:$0xff] %vm4277, %v4270
        %4288 = vst.msk [vmem:[%s596 + $0x50] sm:$0xff] %vm4277, %v4271
        %4289 = vst.msk [vmem:[%s596 + $0x58] sm:$0xff] %vm4277, %v4272
        %4290 = vst.msk [vmem:[%s596 + $0x60] sm:$0xff] %vm4277, %v4273
        %4291 = vst.msk [vmem:[%s596 + $0x68] sm:$0xff] %vm4277, %v4274
        %4292 = vst.msk [vmem:[%s596 + $0x70] sm:$0xff] %vm4277, %v4275
        %4293 = vst.msk [vmem:[%s596 + $0x78] sm:$0xff] %vm4277, %v4276
        %s4294 = smul.u32 16, %s32
        %p4295 = scmp.lt.s32.totalorder %s4294, 31
        %s4296 = scalar_select %p4295, %s4294, 31
        %s4297 = smul.addr %s4296, 8
        %s4298 = scalar_lea.vmem %s17, %s4297
        // Predicated region
        $region101: #{tpu_custom_call.1} parent=87 // pred_check
          %p4299 = pneg %p412
        $region102: #{tpu_custom_call.1} parent=87 // pred_check_branch
          %4301 = sbr.rel (%p4299) target = $region104
        $region103: #{tpu_custom_call.1} parent=87 // pred_region
          %s4302 = smul.u32 16, %s32
        $region104: #{tpu_custom_call.1} parent=87 // pred_fallthru
          _
      $region88: #{tpu_custom_call.1} parent=5 // pred_fallthru
        _
      %p4303 = scmp.le.s32.totalorder 2, %s27
      // Predicated region
      $region105: #{tpu_custom_call.1} parent=5 // pred_check
        %p4304 = pneg %p4303
      $region106: #{tpu_custom_call.1} parent=5 // pred_check_branch
        %4306 = sbr.rel (%p4304) target = $region108
      $region107: #{tpu_custom_call.1} parent=5 // pred_region
        %s4307 = ssub.s32 %s27, 2
        // Predicated region
        $region109: #{tpu_custom_call.1} parent=107 // pred_check
          %p4308 = pneg %p418
        $region110: #{tpu_custom_call.1} parent=107 // pred_check_branch
          %4310 = sbr.rel (%p4308) target = $region112
        $region111: #{tpu_custom_call.1} parent=107 // pred_region
          %s4311 = smul.u32 16, %s33
          %p4312 = scmp.lt.s32.totalorder %s4311, 31
          %s4313 = scalar_select %p4312, %s4311, 31
          %s4314 = smul.addr %s4313, 8
          %s4315 = scalar_lea.vmem %s17, %s4314
        $region112: #{tpu_custom_call.1} parent=107 // pred_fallthru
          _
      $region108: #{tpu_custom_call.1} parent=5 // pred_fallthru
        _
    $region6: #{tpu_custom_call.1} parent=1 // loop_footer
      %s31 = sadd.s32 1, %s27
    $region7: #{tpu_custom_call.1} parent=1 // loop_footer_branch
      %26 = sbr.rel target = $region3
    $region8: #{tpu_custom_call.1} parent=1 // loop_exit
      _
    %4316 = vsyncpa [#allocation4], 1
    %s4317 = scalar_lea.sflag [#allocation4], 1
    %4318 = vsyncpa %s4317, 1
    %4319 = vsyncpa [#allocation6], 1

</llo_original>
